<compile_context>
chip_gen: v5e
topology: v5e:2x2
jax: 0.10.0
libtpu: 0.0.40
codegen_flags: <defaults>
</compile_context>

<pallas_src>
import functools

import jax
import jax.numpy as jnp
from jax import lax
from jax.experimental import pallas as pl
from jax.experimental.pallas import tpu as pltpu


def _silu(x):
    return x * jax.nn.sigmoid(x)


# ----------------------------------------------------------------------------
# Generation-aware launch parameters
# ----------------------------------------------------------------------------
def _tpu_generation_params():
    kind = ""
    try:
        kind = jax.devices()[0].device_kind.lower()
    except Exception:
        pass
    is_v5e = ("v5e" in kind) or ("v5 lite" in kind) or ("v5litepod" in kind)
    is_v7 = "v7" in kind
    target_rows = 128 if is_v5e else 256      # MXU M fill target per grid step
    min_grid_steps = 2 if is_v7 else 1        # v7x has 2 TensorCores
    try:
        vmem_cap = int(pltpu.get_tpu_info().vmem_capacity_bytes)
    except Exception:
        vmem_cap = 64 * 2 ** 20               # conservative (v7x physical VMEM)
    return target_rows, min_grid_steps, vmem_cap


def _choose_batch_block(B, N, *, target_rows, min_grid_steps):
    """Graphs folded per grid step.  Largest divisor of B with bt*N near the
    per-generation row target (bounds the working set); on v7x we then shrink
    bt until there are >= 2 grid steps so both TensorCores get work (the MXU
    is K-starved at these sizes, so losing M rows per step is nearly free)."""
    divisors = [d for d in range(1, B + 1) if B % d == 0]
    fit = [d for d in divisors if d * N <= max(target_rows, N)]
    bt = max(fit) if fit else 1
    while B // bt < min_grid_steps and bt > 1:
        smaller = [d for d in divisors if d < bt]
        if not smaller:
            break
        bt = max(smaller)
    return bt


def _vmem_limit_bytes(bt, N, E, R, T, mlp_dims, vmem_cap, use_blockdiag):
    """VMEM budget: double-buffered input blocks + resident weights + the
    in-kernel working set (attention scores, Fn copies, readout scratch),
    capped at 75% of the queried physical VMEM (=> ~48 MiB on v7x)."""
    f32 = 4
    rows = bt * N
    att = rows * rows if use_blockdiag else bt * N * N
    blocks = 2 * bt * N * (E + N)
    weights = (E * R + 2 * R * R + 3 * R
               + sum(di * do + do for di, do in mlp_dims))
    work = (10 * rows * R                     # F1 / Fn / WwF / AF / g (+bf16)
            + 6 * att                         # keep / fill / S / exp / A
            + 2 * bt * T * R                  # readout scratch + fT
            + 2 * sum(max(di, do) for di, do in mlp_dims))
    est = f32 * (blocks + 2 * weights + work)
    hi = int(0.75 * max(vmem_cap, 32 * 2 ** 20))
    return int(min(hi, max(24 * 2 ** 20, 2 * est)))


# ----------------------------------------------------------------------------
# Fused kernel: Wv/Ww/Wg linears + walk loop + readout + normalise + target MLP
# ----------------------------------------------------------------------------
def aware_fused_kernel(node_ref, adj_ref, wv_ref, bv_ref, ww_ref, bw_ref,
                       wg_ref, bg_ref, *rest, max_walk_len, n_mlp,
                       use_blockdiag):
    mlp_refs = rest[:2 * n_mlp]
    out_ref = rest[2 * n_mlp]
    ft_ref = rest[2 * n_mlp + 1]              # VMEM scratch (Bt, T*R)

    Bt, N, E = node_ref.shape
    R = wv_ref.shape[1]
    T = max_walk_len
    rows = Bt * N
    bf16, f32 = jnp.bfloat16, jnp.float32

    # Resident weights: cast to bf16 once (MXU inputs); biases stay f32.
    wv = wv_ref[...].astype(bf16)
    ww = ww_ref[...].astype(bf16)
    wg = wg_ref[...].astype(bf16)
    bv = bv_ref[...]                                        # (1, R)
    bw_b = jnp.broadcast_to(bw_ref[...], (rows, R))         # hoisted broadcasts
    bg_b = jnp.broadcast_to(bg_ref[...], (rows, R))

    x_bf = node_ref[...].reshape(rows, E).astype(bf16)
    adj = adj_ref[...]                                      # (Bt, N, N) f32

    # F_1 = SiLU(Wv x): batch folded into the matmul M dimension.
    F1 = _silu(jnp.dot(x_bf, wv, preferred_element_type=f32) + bv)   # (rows, R)

    if use_blockdiag:
        # Hoisted block-diagonal structures, built only from splat constants,
        # static slicing and concatenation (robust Mosaic lowering):
        #   keep2[i,j]  : True where the edge exists (same graph & adj != 0)
        #   fill2[i,j]  : -1e8 intra-graph (== torch masked_fill), -3e38
        #                 cross-graph (so an all-masked intra column still
        #                 normalises over exactly N rows, like the reference)
        #   seg[b,j]    : one-hot segment matrix for the per-graph node sum
        keepf = (adj != 0.0).astype(f32)                    # (Bt, N, N)
        keep_slabs, fill_slabs, seg_slabs = [], [], []
        for b in range(Bt):
            left, right = b * N, (Bt - 1 - b) * N
            kp, fp, sp = [], [], []
            if left:
                kp.append(jnp.zeros((N, left), f32))
                fp.append(jnp.full((N, left), -3e38, f32))
                sp.append(jnp.zeros((1, left), f32))
            kp.append(keepf[b])
            fp.append(jnp.full((N, N), -1e8, f32))
            sp.append(jnp.ones((1, N), f32))
            if right:
                kp.append(jnp.zeros((N, right), f32))
                fp.append(jnp.full((N, right), -3e38, f32))
                sp.append(jnp.zeros((1, right), f32))
            cat1 = lambda ps: ps[0] if len(ps) == 1 else jnp.concatenate(ps, axis=1)
            keep_slabs.append(cat1(kp))
            fill_slabs.append(cat1(fp))
            seg_slabs.append(cat1(sp))
        cat0 = lambda ps: ps[0] if len(ps) == 1 else jnp.concatenate(ps, axis=0)
        keep2 = cat0(keep_slabs) != 0.0                     # (rows, rows) bool
        fill2 = cat0(fill_slabs)                            # (rows, rows) f32
        seg_bf = cat0(seg_slabs).astype(bf16)               # (Bt, rows)
    else:
        keep3 = adj != 0.0                                  # (Bt, N, N) bool

    def readout(t, fn_bf):
        # Streamed Wg readout: per-graph node sum written into a column slice
        # of the VMEM scratch (no fn_list / concat / T live Fn copies).
        g = _silu(jnp.dot(fn_bf, wg, preferred_element_type=f32) + bg_b)   # (rows, R)
        if use_blockdiag:
            gsum = jnp.dot(seg_bf, g.astype(bf16),
                           preferred_element_type=f32)                     # (Bt, R)
        else:
            gsum = jnp.sum(g.reshape(Bt, N, R), axis=1)
        ft_ref[:, t * R:(t + 1) * R] = gsum

    Fn = F1
    Fn_bf = Fn.astype(bf16)
    readout(0, Fn_bf)

    # max_walk_len is a small static constant -> unrolled Python loop.
    for t in range(1, T):
        WwF = jnp.dot(Fn_bf, ww, preferred_element_type=f32) + bw_b        # (rows, R)
        if use_blockdiag:
            # One (rows, rows) MXU matmul instead of Bt tiny batched ones.
            S2 = lax.dot_general(WwF.astype(bf16), Fn_bf,
                                 dimension_numbers=(((1,), (1,)), ((), ())),
                                 preferred_element_type=f32)               # (rows, rows)
            masked = jnp.where(keep2, S2, fill2)
            # torch nn.Softmax(dim=1) normalises over the first node axis,
            # which is the row axis (axis=0) of the 2-D score matrix.
            cmax = jnp.max(masked, axis=0, keepdims=True)
            expd = jnp.exp(masked - cmax)
            denom = jnp.sum(expd, axis=0, keepdims=True)
            A = expd * pl.reciprocal(denom, approx=True)                   # (rows, rows)
            AF = jnp.dot(A.astype(bf16), Fn_bf,
                         preferred_element_type=f32)                       # (rows, R)
        else:
            # Per-graph batched path for large N (O(rows^2) would lose there).
            Fn3 = Fn_bf.reshape(Bt, N, R)
            WwF3 = WwF.astype(bf16).reshape(Bt, N, R)
            S = lax.dot_general(WwF3, Fn3,
                                dimension_numbers=(((2,), (2,)), ((0,), (0,))),
                                preferred_element_type=f32)                # (Bt,N,N)
            masked = jnp.where(keep3, S, jnp.float32(-1e8))
            rmax = jnp.max(masked, axis=1, keepdims=True)
            expd = jnp.exp(masked - rmax)
            denom = jnp.sum(expd, axis=1, keepdims=True)
            A = expd * pl.reciprocal(denom, approx=True)
            AF = lax.dot_general(A.astype(bf16), Fn3,
                                 dimension_numbers=(((2,), (1,)), ((0,), (0,))),
                                 preferred_element_type=f32).reshape(rows, R)
        Fn = (Fn + AF) * F1
        Fn_bf = Fn.astype(bf16)
        readout(t, Fn_bf)

    # F.normalize: per-graph L2 normalisation (rsqrt -> EUP slot).
    fT = ft_ref[...]                                                       # (Bt, T*R)
    nsq = jnp.sum(fT * fT, axis=1, keepdims=True)
    fT = fT * lax.rsqrt(jnp.maximum(nsq, jnp.float32(1e-24)))

    # Target MLP fused into the epilogue; tiny weights stay VMEM resident.
    h = fT
    for i in range(n_mlp):
        w = mlp_refs[2 * i][...].astype(bf16)
        b = mlp_refs[2 * i + 1][...]
        h = jnp.dot(h.astype(bf16), w, preferred_element_type=f32) + b
        if i < n_mlp - 1:
            h = _silu(h)
    out_ref[...] = h[:, None, :]                                           # (Bt,1,out)


def aware_forward(node, adj, params, mlp_params, r_prime, max_walk_len):
    B, N, E = node.shape
    R, T = r_prime, max_walk_len
    n_mlp = len(mlp_params)
    out_dim = mlp_params[-1][0].shape[1]
    mlp_dims = [(w.shape[0], w.shape[1]) for w, _ in mlp_params]

    target_rows, min_steps, vmem_cap = _tpu_generation_params()
    bt = _choose_batch_block(B, N, target_rows=target_rows,
                             min_grid_steps=min_steps)
    rows = bt * N
    use_blockdiag = (N <= 64) and (rows <= 1024)
    grid = (B // bt,)

    weight_args = [params["wv"], params["bv"], params["ww"], params["bw"],
                   params["wg"], params["bg"]]
    for w, b in mlp_params:
        weight_args.extend([w, b])

    vmem_limit = _vmem_limit_bytes(bt, N, E, R, T, mlp_dims, vmem_cap,
                                   use_blockdiag)
    kernel = functools.partial(aware_fused_kernel, max_walk_len=T,
                               n_mlp=n_mlp, use_blockdiag=use_blockdiag)

    # NOTE: adjacency stays f32 here; casting it to int8/bf16 on the way in
    # would further cut HBM traffic on v5e if N grows.
    def _run(weights_single_buffered):
        wkw = dict(pipeline_mode=pl.Buffered(1)) if weights_single_buffered else {}
        in_specs = [
            pl.BlockSpec((bt, N, E), lambda i: (i, 0, 0)),
            pl.BlockSpec((bt, N, N), lambda i: (i, 0, 0)),
        ]
        # Weights never change across grid steps -> single-buffer them.
        in_specs += [pl.BlockSpec(a.shape, lambda i: (0, 0), **wkw)
                     for a in weight_args]
        call = pl.pallas_call(
            kernel,
            out_shape=jax.ShapeDtypeStruct((B, 1, out_dim), jnp.float32),
            grid_spec=pltpu.PrefetchScalarGridSpec(
                num_scalar_prefetch=0,
                grid=grid,
                in_specs=in_specs,
                out_specs=pl.BlockSpec((bt, 1, out_dim), lambda i: (i, 0, 0)),
                scratch_shapes=[pltpu.VMEM((bt, T * R), jnp.float32)]),
            compiler_params=pltpu.CompilerParams(
                dimension_semantics=("parallel",),
                vmem_limit_bytes=vmem_limit),
        )
        return call(node, adj, *weight_args)

    try:
        if not hasattr(pl, "Buffered"):
            raise AttributeError("pl.Buffered unavailable")
        out = _run(True)
    except Exception:
        # Single-buffered resident weights rejected on this jax version ->
        # fall back to default double-buffered specs (identical semantics).
        out = _run(False)
    return out.reshape(B, out_dim)


# ----------------------------------------------------------------------------
# Pure-JAX reference (sanity check of the Pallas implementation)
# ----------------------------------------------------------------------------
def aware_reference(node, adj, params, mlp_params, r_prime, max_walk_len):
    F1 = jax.nn.silu(node @ params["wv"] + params["bv"])
    Fn = F1
    fs = [jnp.sum(jax.nn.silu(Fn @ params["wg"] + params["bg"]), axis=1)]
    for _ in range(max_walk_len - 1):
        WwF = Fn @ params["ww"] + params["bw"]
        S = jnp.einsum("bnr,bmr->bnm", WwF, Fn)
        masked = jnp.where(adj == 0, -1e8, S)
        A = jax.nn.softmax(masked, axis=1)
        Fn = (Fn + jnp.einsum("bnm,bmr->bnr", A, Fn)) * F1
        fs.append(jnp.sum(jax.nn.silu(Fn @ params["wg"] + params["bg"]), axis=1))
    fT = jnp.concatenate(fs, axis=1)
    fT = fT / jnp.maximum(jnp.linalg.norm(fT, axis=1, keepdims=True), 1e-12)
    h = fT
    for i, (w, b) in enumerate(mlp_params):
        h = h @ w + b
        if i < len(mlp_params) - 1:
            h = jax.nn.silu(h)
    return h


# ----------------------------------------------------------------------------
# Deterministic parameter construction (matches nn.Linear shapes, transposed)
# ----------------------------------------------------------------------------
def init_linear(key, din, dout):
    kw, kb = jax.random.split(key)
    bound = 1.0 / float(din) ** 0.5
    w = jax.random.uniform(kw, (din, dout), jnp.float32, -bound, bound)
    b = jax.random.uniform(kb, (1, dout), jnp.float32, -bound, bound)
    return w, b


def build_params(key, emb_dim, r_prime, max_walk_len, num_layers, out_dim):
    keys = jax.random.split(key, 3 + num_layers + 1)
    wv, bv = init_linear(keys[0], emb_dim, r_prime)
    ww, bw = init_linear(keys[1], r_prime, r_prime)
    wg, bg = init_linear(keys[2], r_prime, r_prime)
    params = {"wv": wv, "bv": bv, "ww": ww, "bw": bw, "wg": wg, "bg": bg}

    # Target MLP layer sizes, replicating the PyTorch __init__ logic.
    mlp_params = []
    in_dim = r_prime * max_walk_len
    for i in range(num_layers + 1):
        if i == 0:
            out_d = r_prime * max_walk_len
        elif i != num_layers:
            out_d = in_dim // (2 ** (1 - i % 2))
        else:
            out_d = out_dim
        mlp_params.append(init_linear(keys[3 + i], in_dim, out_d))
        in_dim = out_d
    return params, mlp_params


if __name__ == "__main__":
    # Small, shape-consistent config.
    B, N = 2, 8
    emb_dim = 16
    r_prime = 32
    max_walk_len = 4
    num_layers = 2
    out_dim = 8
    # use_bond=False path (adj_attr_matrix unused).
    # TODO(synk): bond_mlp branch (use_bond=True) not implemented.

    key = jax.random.PRNGKey(0)
    k_node, k_adj, k_param = jax.random.split(key, 3)

    node_attribute_matrix = jax.random.normal(k_node, (B, N, emb_dim), jnp.float32)
    adjacent_matrix = jax.random.bernoulli(k_adj, 0.5, (B, N, N)).astype(jnp.float32)
    adj_attr_matrix = jnp.zeros((B, N, N, emb_dim), jnp.float32)  # unused

    params, mlp_params = build_params(
        k_param, emb_dim, r_prime, max_walk_len, num_layers, out_dim)

    out = aware_forward(node_attribute_matrix, adjacent_matrix, params,
                        mlp_params, r_prime, max_walk_len)
    out = jax.block_until_ready(out)

    ref = aware_reference(node_attribute_matrix, adjacent_matrix, params,
                          mlp_params, r_prime, max_walk_len)
    ref = jax.block_until_ready(ref)

    assert out.shape == (B, out_dim)
    assert bool(jnp.all(jnp.isfinite(out)))
    assert float(jnp.max(jnp.abs(out - ref))) < 5e-2

    print("KERNEL_OK")
</pallas_src>

<mosaic_0001>
module attributes {stable_mosaic.version = 11 : i64} {
  func.func @aware_fused_kernel(%arg0: i32, %arg1: memref<2x8x16xf32, #tpu.memory_space<vmem>>, %arg2: memref<2x8x8xf32, #tpu.memory_space<vmem>>, %arg3: memref<16x32xf32, #tpu.memory_space<vmem>>, %arg4: memref<1x32xf32, #tpu.memory_space<vmem>>, %arg5: memref<32x32xf32, #tpu.memory_space<vmem>>, %arg6: memref<1x32xf32, #tpu.memory_space<vmem>>, %arg7: memref<32x32xf32, #tpu.memory_space<vmem>>, %arg8: memref<1x32xf32, #tpu.memory_space<vmem>>, %arg9: memref<128x128xf32, #tpu.memory_space<vmem>>, %arg10: memref<1x128xf32, #tpu.memory_space<vmem>>, %arg11: memref<128x128xf32, #tpu.memory_space<vmem>>, %arg12: memref<1x128xf32, #tpu.memory_space<vmem>>, %arg13: memref<128x8xf32, #tpu.memory_space<vmem>>, %arg14: memref<1x8xf32, #tpu.memory_space<vmem>>, %arg15: memref<2x1x8xf32, #tpu.memory_space<vmem>>, %arg16: memref<2x128xf32, #tpu.memory_space<vmem>>) attributes {dimension_semantics = [#tpu.dimension_semantics<parallel>], iteration_bounds = array<i64: 1>, scalar_prefetch = 0 : i64, scratch_operands = 1 : i64, tpu.core_type = #tpu.core_type<tc>, window_params = [{transform_indices = @transform_0, window_bounds = array<i64: 2, 8, 16>}, {transform_indices = @transform_1, window_bounds = array<i64: 2, 8, 8>}, {pipeline_mode = #tpu.pipeline_mode<synchronous>, transform_indices = @transform_2, window_bounds = array<i64: 16, 32>}, {pipeline_mode = #tpu.pipeline_mode<synchronous>, transform_indices = @transform_3, window_bounds = array<i64: 1, 32>}, {pipeline_mode = #tpu.pipeline_mode<synchronous>, transform_indices = @transform_4, window_bounds = array<i64: 32, 32>}, {pipeline_mode = #tpu.pipeline_mode<synchronous>, transform_indices = @transform_5, window_bounds = array<i64: 1, 32>}, {pipeline_mode = #tpu.pipeline_mode<synchronous>, transform_indices = @transform_6, window_bounds = array<i64: 32, 32>}, {pipeline_mode = #tpu.pipeline_mode<synchronous>, transform_indices = @transform_7, window_bounds = array<i64: 1, 32>}, {pipeline_mode = #tpu.pipeline_mode<synchronous>, transform_indices = @transform_8, window_bounds = array<i64: 128, 128>}, {pipeline_mode = #tpu.pipeline_mode<synchronous>, transform_indices = @transform_9, window_bounds = array<i64: 1, 128>}, {pipeline_mode = #tpu.pipeline_mode<synchronous>, transform_indices = @transform_10, window_bounds = array<i64: 128, 128>}, {pipeline_mode = #tpu.pipeline_mode<synchronous>, transform_indices = @transform_11, window_bounds = array<i64: 1, 128>}, {pipeline_mode = #tpu.pipeline_mode<synchronous>, transform_indices = @transform_12, window_bounds = array<i64: 128, 8>}, {pipeline_mode = #tpu.pipeline_mode<synchronous>, transform_indices = @transform_13, window_bounds = array<i64: 1, 8>}, {transform_indices = @transform_14, window_bounds = array<i64: 2, 1, 8>}]} {
    %c0 = arith.constant 0 : index
    %c0_0 = arith.constant 0 : index
    %0 = vector.load %arg3[%c0, %c0_0] : memref<16x32xf32, #tpu.memory_space<vmem>>, vector<16x32xf32>
    %1 = arith.truncf %0 : vector<16x32xf32> to vector<16x32xbf16>
    %c0_1 = arith.constant 0 : index
    %c0_2 = arith.constant 0 : index
    %2 = vector.load %arg5[%c0_1, %c0_2] : memref<32x32xf32, #tpu.memory_space<vmem>>, vector<32x32xf32>
    %3 = arith.truncf %2 : vector<32x32xf32> to vector<32x32xbf16>
    %c0_3 = arith.constant 0 : index
    %c0_4 = arith.constant 0 : index
    %4 = vector.load %arg7[%c0_3, %c0_4] : memref<32x32xf32, #tpu.memory_space<vmem>>, vector<32x32xf32>
    %5 = arith.truncf %4 : vector<32x32xf32> to vector<32x32xbf16>
    %c0_5 = arith.constant 0 : index
    %c0_6 = arith.constant 0 : index
    %6 = vector.load %arg4[%c0_5, %c0_6] : memref<1x32xf32, #tpu.memory_space<vmem>>, vector<1x32xf32>
    %c0_7 = arith.constant 0 : index
    %c0_8 = arith.constant 0 : index
    %7 = vector.load %arg6[%c0_7, %c0_8] : memref<1x32xf32, #tpu.memory_space<vmem>>, vector<1x32xf32>
    %8 = vector.shape_cast %7 : vector<1x32xf32> to vector<1x32xf32>
    %9 = vector.broadcast %8 : vector<1x32xf32> to vector<16x32xf32>
    %c0_9 = arith.constant 0 : index
    %c0_10 = arith.constant 0 : index
    %10 = vector.load %arg8[%c0_9, %c0_10] : memref<1x32xf32, #tpu.memory_space<vmem>>, vector<1x32xf32>
    %11 = vector.shape_cast %10 : vector<1x32xf32> to vector<1x32xf32>
    %12 = vector.broadcast %11 : vector<1x32xf32> to vector<16x32xf32>
    %c0_11 = arith.constant 0 : index
    %c0_12 = arith.constant 0 : index
    %c0_13 = arith.constant 0 : index
    %13 = vector.load %arg1[%c0_11, %c0_12, %c0_13] : memref<2x8x16xf32, #tpu.memory_space<vmem>>, vector<2x8x16xf32>
    %14 = vector.shape_cast %13 : vector<2x8x16xf32> to vector<16x16xf32>
    %15 = arith.truncf %14 : vector<16x16xf32> to vector<16x16xbf16>
    %c0_14 = arith.constant 0 : index
    %c0_15 = arith.constant 0 : index
    %c0_16 = arith.constant 0 : index
    %16 = vector.load %arg2[%c0_14, %c0_15, %c0_16] : memref<2x8x8xf32, #tpu.memory_space<vmem>>, vector<2x8x8xf32>
    %cst = arith.constant dense<0.000000e+00> : vector<16x32xf32>
    %17 = tpu.matmul %15, %1, %cst {dimension_numbers = #tpu.dot_dimension_numbers<[1], [0], [0], [1], [0, 0, 1, 1], [], []>} : vector<16x16xbf16>, vector<16x32xbf16>, vector<16x32xf32> -> vector<16x32xf32>
    %18 = vector.broadcast %6 : vector<1x32xf32> to vector<16x32xf32>
    %19 = arith.addf %17, %18 : vector<16x32xf32>
    %20 = arith.negf %19 : vector<16x32xf32>
    %21 = math.exp %20 : vector<16x32xf32>
    %cst_17 = arith.constant 1.000000e+00 : f32
    %22 = vector.broadcast %cst_17 : f32 to vector<16x32xf32>
    %23 = arith.addf %22, %21 : vector<16x32xf32>
    %24 = arith.divf %22, %23 : vector<16x32xf32>
    %25 = arith.mulf %19, %24 : vector<16x32xf32>
    %cst_18 = arith.constant 0.000000e+00 : f32
    %26 = vector.broadcast %cst_18 : f32 to vector<2x8x8xf32>
    %27 = arith.cmpf one, %16, %26 : vector<2x8x8xf32>
    %28 = arith.extui %27 : vector<2x8x8xi1> to vector<2x8x8xi32>
    %29 = arith.sitofp %28 : vector<2x8x8xi32> to vector<2x8x8xf32>
    %30 = vector.extract_strided_slice %29 {offsets = [0, 0, 0], sizes = [1, 8, 8], strides = [1, 1, 1]} : vector<2x8x8xf32> to vector<1x8x8xf32>
    %31 = vector.shape_cast %30 : vector<1x8x8xf32> to vector<8x8xf32>
    %cst_19 = arith.constant -1.000000e+08 : f32
    %32 = vector.broadcast %cst_19 : f32 to vector<8x8xf32>
    %cst_20 = arith.constant 1.000000e+00 : f32
    %33 = vector.broadcast %cst_20 : f32 to vector<1x8xf32>
    %cst_21 = arith.constant 0.000000e+00 : f32
    %34 = vector.broadcast %cst_21 : f32 to vector<8x8xf32>
    %cst_22 = arith.constant -3.000000e+38 : f32
    %35 = vector.broadcast %cst_22 : f32 to vector<8x8xf32>
    %cst_23 = arith.constant 0.000000e+00 : f32
    %36 = vector.broadcast %cst_23 : f32 to vector<1x8xf32>
    %37 = tpu.concatenate %31, %34 in 1 : vector<8x8xf32>, vector<8x8xf32> -> vector<8x16xf32>
    %38 = tpu.concatenate %32, %35 in 1 : vector<8x8xf32>, vector<8x8xf32> -> vector<8x16xf32>
    %39 = tpu.concatenate %33, %36 in 1 : vector<1x8xf32>, vector<1x8xf32> -> vector<1x16xf32>
    %cst_24 = arith.constant 0.000000e+00 : f32
    %40 = vector.broadcast %cst_24 : f32 to vector<8x8xf32>
    %cst_25 = arith.constant -3.000000e+38 : f32
    %41 = vector.broadcast %cst_25 : f32 to vector<8x8xf32>
    %cst_26 = arith.constant 0.000000e+00 : f32
    %42 = vector.broadcast %cst_26 : f32 to vector<1x8xf32>
    %43 = vector.extract_strided_slice %29 {offsets = [1, 0, 0], sizes = [1, 8, 8], strides = [1, 1, 1]} : vector<2x8x8xf32> to vector<1x8x8xf32>
    %44 = vector.shape_cast %43 : vector<1x8x8xf32> to vector<8x8xf32>
    %cst_27 = arith.constant -1.000000e+08 : f32
    %45 = vector.broadcast %cst_27 : f32 to vector<8x8xf32>
    %cst_28 = arith.constant 1.000000e+00 : f32
    %46 = vector.broadcast %cst_28 : f32 to vector<1x8xf32>
    %47 = tpu.concatenate %40, %44 in 1 : vector<8x8xf32>, vector<8x8xf32> -> vector<8x16xf32>
    %48 = tpu.concatenate %41, %45 in 1 : vector<8x8xf32>, vector<8x8xf32> -> vector<8x16xf32>
    %49 = tpu.concatenate %42, %46 in 1 : vector<1x8xf32>, vector<1x8xf32> -> vector<1x16xf32>
    %50 = tpu.concatenate %37, %47 in 0 : vector<8x16xf32>, vector<8x16xf32> -> vector<16x16xf32>
    %cst_29 = arith.constant 0.000000e+00 : f32
    %51 = vector.broadcast %cst_29 : f32 to vector<16x16xf32>
    %52 = arith.cmpf one, %50, %51 : vector<16x16xf32>
    %53 = tpu.concatenate %38, %48 in 0 : vector<8x16xf32>, vector<8x16xf32> -> vector<16x16xf32>
    %54 = tpu.concatenate %39, %49 in 0 : vector<1x16xf32>, vector<1x16xf32> -> vector<2x16xf32>
    %55 = arith.truncf %54 : vector<2x16xf32> to vector<2x16xbf16>
    %56 = arith.truncf %25 : vector<16x32xf32> to vector<16x32xbf16>
    %cst_30 = arith.constant dense<0.000000e+00> : vector<16x32xf32>
    %57 = tpu.matmul %56, %5, %cst_30 {dimension_numbers = #tpu.dot_dimension_numbers<[1], [0], [0], [1], [0, 0, 1, 1], [], []>} : vector<16x32xbf16>, vector<32x32xbf16>, vector<16x32xf32> -> vector<16x32xf32>
    %58 = arith.addf %57, %12 : vector<16x32xf32>
    %59 = arith.negf %58 : vector<16x32xf32>
    %60 = math.exp %59 : vector<16x32xf32>
    %cst_31 = arith.constant 1.000000e+00 : f32
    %61 = vector.broadcast %cst_31 : f32 to vector<16x32xf32>
    %62 = arith.addf %61, %60 : vector<16x32xf32>
    %63 = arith.divf %61, %62 : vector<16x32xf32>
    %64 = arith.mulf %58, %63 : vector<16x32xf32>
    %65 = arith.truncf %64 : vector<16x32xf32> to vector<16x32xbf16>
    %cst_32 = arith.constant dense<0.000000e+00> : vector<2x32xf32>
    %66 = tpu.matmul %55, %65, %cst_32 {dimension_numbers = #tpu.dot_dimension_numbers<[1], [0], [0], [1], [0, 0, 1, 1], [], []>} : vector<2x16xbf16>, vector<16x32xbf16>, vector<2x32xf32> -> vector<2x32xf32>
    %c0_33 = arith.constant 0 : index
    %c0_34 = arith.constant 0 : index
    %67 = vector.load %arg16[%c0_33, %c0_34] : memref<2x128xf32, #tpu.memory_space<vmem>>, vector<2x32xf32>
    tpu.vector_store %arg16[%c0_33, %c0_34], %66 {strides = array<i32>} : memref<2x128xf32, #tpu.memory_space<vmem>>, vector<2x32xf32>,
    %cst_35 = arith.constant dense<0.000000e+00> : vector<16x32xf32>
    %68 = tpu.matmul %56, %3, %cst_35 {dimension_numbers = #tpu.dot_dimension_numbers<[1], [0], [0], [1], [0, 0, 1, 1], [], []>} : vector<16x32xbf16>, vector<32x32xbf16>, vector<16x32xf32> -> vector<16x32xf32>
    %69 = arith.addf %68, %9 : vector<16x32xf32>
    %70 = arith.truncf %69 : vector<16x32xf32> to vector<16x32xbf16>
    %cst_36 = arith.constant dense<0.000000e+00> : vector<16x16xf32>
    %71 = tpu.matmul %70, %56, %cst_36 {dimension_numbers = #tpu.dot_dimension_numbers<[1], [1], [0], [0], [0, 0, 1, 0], [], []>} : vector<16x32xbf16>, vector<16x32xbf16>, vector<16x16xf32> -> vector<16x16xf32>
    %72 = arith.select %52, %71, %53 : vector<16x16xi1>, vector<16x16xf32>
    %cst_37 = arith.constant dense<0xFF800000> : vector<16xf32>
    %73 = vector.multi_reduction <maximumf>, %72, %cst_37 [0] : vector<16x16xf32> to vector<16xf32>
    %74 = vector.shape_cast %73 : vector<16xf32> to vector<1x16xf32>
    %75 = vector.broadcast %74 : vector<1x16xf32> to vector<16x16xf32>
    %76 = arith.subf %72, %75 : vector<16x16xf32>
    %77 = math.exp %76 : vector<16x16xf32>
    %cst_38 = arith.constant dense<0.000000e+00> : vector<16xf32>
    %78 = vector.multi_reduction <add>, %77, %cst_38 [0] : vector<16x16xf32> to vector<16xf32>
    %79 = vector.shape_cast %78 : vector<16xf32> to vector<1x16xf32>
    %80 = tpu.reciprocal %79 {approx = true} : vector<1x16xf32> -> vector<1x16xf32>
    %81 = vector.broadcast %80 : vector<1x16xf32> to vector<16x16xf32>
    %82 = arith.mulf %77, %81 : vector<16x16xf32>
    %83 = arith.truncf %82 : vector<16x16xf32> to vector<16x16xbf16>
    %cst_39 = arith.constant dense<0.000000e+00> : vector<16x32xf32>
    %84 = tpu.matmul %83, %56, %cst_39 {dimension_numbers = #tpu.dot_dimension_numbers<[1], [0], [0], [1], [0, 0, 1, 1], [], []>} : vector<16x16xbf16>, vector<16x32xbf16>, vector<16x32xf32> -> vector<16x32xf32>
    %85 = arith.addf %25, %84 : vector<16x32xf32>
    %86 = arith.mulf %85, %25 : vector<16x32xf32>
    %87 = arith.truncf %86 : vector<16x32xf32> to vector<16x32xbf16>
    %cst_40 = arith.constant dense<0.000000e+00> : vector<16x32xf32>
    %88 = tpu.matmul %87, %5, %cst_40 {dimension_numbers = #tpu.dot_dimension_numbers<[1], [0], [0], [1], [0, 0, 1, 1], [], []>} : vector<16x32xbf16>, vector<32x32xbf16>, vector<16x32xf32> -> vector<16x32xf32>
    %89 = arith.addf %88, %12 : vector<16x32xf32>
    %90 = arith.negf %89 : vector<16x32xf32>
    %91 = math.exp %90 : vector<16x32xf32>
    %cst_41 = arith.constant 1.000000e+00 : f32
    %92 = vector.broadcast %cst_41 : f32 to vector<16x32xf32>
    %93 = arith.addf %92, %91 : vector<16x32xf32>
    %94 = arith.divf %92, %93 : vector<16x32xf32>
    %95 = arith.mulf %89, %94 : vector<16x32xf32>
    %96 = arith.truncf %95 : vector<16x32xf32> to vector<16x32xbf16>
    %cst_42 = arith.constant dense<0.000000e+00> : vector<2x32xf32>
    %97 = tpu.matmul %55, %96, %cst_42 {dimension_numbers = #tpu.dot_dimension_numbers<[1], [0], [0], [1], [0, 0, 1, 1], [], []>} : vector<2x16xbf16>, vector<16x32xbf16>, vector<2x32xf32> -> vector<2x32xf32>
    %c0_43 = arith.constant 0 : index
    %c32 = arith.constant 32 : index
    %98 = vector.load %arg16[%c0_43, %c32] : memref<2x128xf32, #tpu.memory_space<vmem>>, vector<2x32xf32>
    tpu.vector_store %arg16[%c0_43, %c32], %97 {strides = array<i32>} : memref<2x128xf32, #tpu.memory_space<vmem>>, vector<2x32xf32>,
    %cst_44 = arith.constant dense<0.000000e+00> : vector<16x32xf32>
    %99 = tpu.matmul %87, %3, %cst_44 {dimension_numbers = #tpu.dot_dimension_numbers<[1], [0], [0], [1], [0, 0, 1, 1], [], []>} : vector<16x32xbf16>, vector<32x32xbf16>, vector<16x32xf32> -> vector<16x32xf32>
    %100 = arith.addf %99, %9 : vector<16x32xf32>
    %101 = arith.truncf %100 : vector<16x32xf32> to vector<16x32xbf16>
    %cst_45 = arith.constant dense<0.000000e+00> : vector<16x16xf32>
    %102 = tpu.matmul %101, %87, %cst_45 {dimension_numbers = #tpu.dot_dimension_numbers<[1], [1], [0], [0], [0, 0, 1, 0], [], []>} : vector<16x32xbf16>, vector<16x32xbf16>, vector<16x16xf32> -> vector<16x16xf32>
    %103 = arith.select %52, %102, %53 : vector<16x16xi1>, vector<16x16xf32>
    %cst_46 = arith.constant dense<0xFF800000> : vector<16xf32>
    %104 = vector.multi_reduction <maximumf>, %103, %cst_46 [0] : vector<16x16xf32> to vector<16xf32>
    %105 = vector.shape_cast %104 : vector<16xf32> to vector<1x16xf32>
    %106 = vector.broadcast %105 : vector<1x16xf32> to vector<16x16xf32>
    %107 = arith.subf %103, %106 : vector<16x16xf32>
    %108 = math.exp %107 : vector<16x16xf32>
    %cst_47 = arith.constant dense<0.000000e+00> : vector<16xf32>
    %109 = vector.multi_reduction <add>, %108, %cst_47 [0] : vector<16x16xf32> to vector<16xf32>
    %110 = vector.shape_cast %109 : vector<16xf32> to vector<1x16xf32>
    %111 = tpu.reciprocal %110 {approx = true} : vector<1x16xf32> -> vector<1x16xf32>
    %112 = vector.broadcast %111 : vector<1x16xf32> to vector<16x16xf32>
    %113 = arith.mulf %108, %112 : vector<16x16xf32>
    %114 = arith.truncf %113 : vector<16x16xf32> to vector<16x16xbf16>
    %cst_48 = arith.constant dense<0.000000e+00> : vector<16x32xf32>
    %115 = tpu.matmul %114, %87, %cst_48 {dimension_numbers = #tpu.dot_dimension_numbers<[1], [0], [0], [1], [0, 0, 1, 1], [], []>} : vector<16x16xbf16>, vector<16x32xbf16>, vector<16x32xf32> -> vector<16x32xf32>
    %116 = arith.addf %86, %115 : vector<16x32xf32>
    %117 = arith.mulf %116, %25 : vector<16x32xf32>
    %118 = arith.truncf %117 : vector<16x32xf32> to vector<16x32xbf16>
    %cst_49 = arith.constant dense<0.000000e+00> : vector<16x32xf32>
    %119 = tpu.matmul %118, %5, %cst_49 {dimension_numbers = #tpu.dot_dimension_numbers<[1], [0], [0], [1], [0, 0, 1, 1], [], []>} : vector<16x32xbf16>, vector<32x32xbf16>, vector<16x32xf32> -> vector<16x32xf32>
    %120 = arith.addf %119, %12 : vector<16x32xf32>
    %121 = arith.negf %120 : vector<16x32xf32>
    %122 = math.exp %121 : vector<16x32xf32>
    %cst_50 = arith.constant 1.000000e+00 : f32
    %123 = vector.broadcast %cst_50 : f32 to vector<16x32xf32>
    %124 = arith.addf %123, %122 : vector<16x32xf32>
    %125 = arith.divf %123, %124 : vector<16x32xf32>
    %126 = arith.mulf %120, %125 : vector<16x32xf32>
    %127 = arith.truncf %126 : vector<16x32xf32> to vector<16x32xbf16>
    %cst_51 = arith.constant dense<0.000000e+00> : vector<2x32xf32>
    %128 = tpu.matmul %55, %127, %cst_51 {dimension_numbers = #tpu.dot_dimension_numbers<[1], [0], [0], [1], [0, 0, 1, 1], [], []>} : vector<2x16xbf16>, vector<16x32xbf16>, vector<2x32xf32> -> vector<2x32xf32>
    %c0_52 = arith.constant 0 : index
    %c64 = arith.constant 64 : index
    %129 = vector.load %arg16[%c0_52, %c64] : memref<2x128xf32, #tpu.memory_space<vmem>>, vector<2x32xf32>
    tpu.vector_store %arg16[%c0_52, %c64], %128 {strides = array<i32>} : memref<2x128xf32, #tpu.memory_space<vmem>>, vector<2x32xf32>,
    %cst_53 = arith.constant dense<0.000000e+00> : vector<16x32xf32>
    %130 = tpu.matmul %118, %3, %cst_53 {dimension_numbers = #tpu.dot_dimension_numbers<[1], [0], [0], [1], [0, 0, 1, 1], [], []>} : vector<16x32xbf16>, vector<32x32xbf16>, vector<16x32xf32> -> vector<16x32xf32>
    %131 = arith.addf %130, %9 : vector<16x32xf32>
    %132 = arith.truncf %131 : vector<16x32xf32> to vector<16x32xbf16>
    %cst_54 = arith.constant dense<0.000000e+00> : vector<16x16xf32>
    %133 = tpu.matmul %132, %118, %cst_54 {dimension_numbers = #tpu.dot_dimension_numbers<[1], [1], [0], [0], [0, 0, 1, 0], [], []>} : vector<16x32xbf16>, vector<16x32xbf16>, vector<16x16xf32> -> vector<16x16xf32>
    %134 = arith.select %52, %133, %53 : vector<16x16xi1>, vector<16x16xf32>
    %cst_55 = arith.constant dense<0xFF800000> : vector<16xf32>
    %135 = vector.multi_reduction <maximumf>, %134, %cst_55 [0] : vector<16x16xf32> to vector<16xf32>
    %136 = vector.shape_cast %135 : vector<16xf32> to vector<1x16xf32>
    %137 = vector.broadcast %136 : vector<1x16xf32> to vector<16x16xf32>
    %138 = arith.subf %134, %137 : vector<16x16xf32>
    %139 = math.exp %138 : vector<16x16xf32>
    %cst_56 = arith.constant dense<0.000000e+00> : vector<16xf32>
    %140 = vector.multi_reduction <add>, %139, %cst_56 [0] : vector<16x16xf32> to vector<16xf32>
    %141 = vector.shape_cast %140 : vector<16xf32> to vector<1x16xf32>
    %142 = tpu.reciprocal %141 {approx = true} : vector<1x16xf32> -> vector<1x16xf32>
    %143 = vector.broadcast %142 : vector<1x16xf32> to vector<16x16xf32>
    %144 = arith.mulf %139, %143 : vector<16x16xf32>
    %145 = arith.truncf %144 : vector<16x16xf32> to vector<16x16xbf16>
    %cst_57 = arith.constant dense<0.000000e+00> : vector<16x32xf32>
    %146 = tpu.matmul %145, %118, %cst_57 {dimension_numbers = #tpu.dot_dimension_numbers<[1], [0], [0], [1], [0, 0, 1, 1], [], []>} : vector<16x16xbf16>, vector<16x32xbf16>, vector<16x32xf32> -> vector<16x32xf32>
    %147 = arith.addf %117, %146 : vector<16x32xf32>
    %148 = arith.mulf %147, %25 : vector<16x32xf32>
    %149 = arith.truncf %148 : vector<16x32xf32> to vector<16x32xbf16>
    %cst_58 = arith.constant dense<0.000000e+00> : vector<16x32xf32>
    %150 = tpu.matmul %149, %5, %cst_58 {dimension_numbers = #tpu.dot_dimension_numbers<[1], [0], [0], [1], [0, 0, 1, 1], [], []>} : vector<16x32xbf16>, vector<32x32xbf16>, vector<16x32xf32> -> vector<16x32xf32>
    %151 = arith.addf %150, %12 : vector<16x32xf32>
    %152 = arith.negf %151 : vector<16x32xf32>
    %153 = math.exp %152 : vector<16x32xf32>
    %cst_59 = arith.constant 1.000000e+00 : f32
    %154 = vector.broadcast %cst_59 : f32 to vector<16x32xf32>
    %155 = arith.addf %154, %153 : vector<16x32xf32>
    %156 = arith.divf %154, %155 : vector<16x32xf32>
    %157 = arith.mulf %151, %156 : vector<16x32xf32>
    %158 = arith.truncf %157 : vector<16x32xf32> to vector<16x32xbf16>
    %cst_60 = arith.constant dense<0.000000e+00> : vector<2x32xf32>
    %159 = tpu.matmul %55, %158, %cst_60 {dimension_numbers = #tpu.dot_dimension_numbers<[1], [0], [0], [1], [0, 0, 1, 1], [], []>} : vector<2x16xbf16>, vector<16x32xbf16>, vector<2x32xf32> -> vector<2x32xf32>
    %c0_61 = arith.constant 0 : index
    %c96 = arith.constant 96 : index
    %160 = vector.load %arg16[%c0_61, %c96] : memref<2x128xf32, #tpu.memory_space<vmem>>, vector<2x32xf32>
    tpu.vector_store %arg16[%c0_61, %c96], %159 {strides = array<i32>} : memref<2x128xf32, #tpu.memory_space<vmem>>, vector<2x32xf32>,
    %c0_62 = arith.constant 0 : index
    %c0_63 = arith.constant 0 : index
    %161 = vector.load %arg16[%c0_62, %c0_63] : memref<2x128xf32, #tpu.memory_space<vmem>>, vector<2x128xf32>
    %162 = arith.mulf %161, %161 : vector<2x128xf32>
    %cst_64 = arith.constant dense<0.000000e+00> : vector<2xf32>
    %163 = vector.multi_reduction <add>, %162, %cst_64 [1] : vector<2x128xf32> to vector<2xf32>
    %164 = vector.shape_cast %163 : vector<2xf32> to vector<2x1xf32>
    %cst_65 = arith.constant 1.000000e-24 : f32
    %165 = vector.broadcast %cst_65 : f32 to vector<2x1xf32>
    %166 = arith.maximumf %164, %165 : vector<2x1xf32>
    %167 = math.rsqrt %166 : vector<2x1xf32>
    %168 = vector.broadcast %167 : vector<2x1xf32> to vector<2x128xf32>
    %169 = arith.mulf %161, %168 : vector<2x128xf32>
    %c0_66 = arith.constant 0 : index
    %c0_67 = arith.constant 0 : index
    %170 = vector.load %arg9[%c0_66, %c0_67] : memref<128x128xf32, #tpu.memory_space<vmem>>, vector<128x128xf32>
    %171 = arith.truncf %170 : vector<128x128xf32> to vector<128x128xbf16>
    %c0_68 = arith.constant 0 : index
    %c0_69 = arith.constant 0 : index
    %172 = vector.load %arg10[%c0_68, %c0_69] : memref<1x128xf32, #tpu.memory_space<vmem>>, vector<1x128xf32>
    %173 = arith.truncf %169 : vector<2x128xf32> to vector<2x128xbf16>
    %cst_70 = arith.constant dense<0.000000e+00> : vector<2x128xf32>
    %174 = tpu.matmul %173, %171, %cst_70 {dimension_numbers = #tpu.dot_dimension_numbers<[1], [0], [0], [1], [0, 0, 1, 1], [], []>} : vector<2x128xbf16>, vector<128x128xbf16>, vector<2x128xf32> -> vector<2x128xf32>
    %175 = vector.broadcast %172 : vector<1x128xf32> to vector<2x128xf32>
    %176 = arith.addf %174, %175 : vector<2x128xf32>
    %177 = arith.negf %176 : vector<2x128xf32>
    %178 = math.exp %177 : vector<2x128xf32>
    %cst_71 = arith.constant 1.000000e+00 : f32
    %179 = vector.broadcast %cst_71 : f32 to vector<2x128xf32>
    %180 = arith.addf %179, %178 : vector<2x128xf32>
    %181 = arith.divf %179, %180 : vector<2x128xf32>
    %182 = arith.mulf %176, %181 : vector<2x128xf32>
    %c0_72 = arith.constant 0 : index
    %c0_73 = arith.constant 0 : index
    %183 = vector.load %arg11[%c0_72, %c0_73] : memref<128x128xf32, #tpu.memory_space<vmem>>, vector<128x128xf32>
    %184 = arith.truncf %183 : vector<128x128xf32> to vector<128x128xbf16>
    %c0_74 = arith.constant 0 : index
    %c0_75 = arith.constant 0 : index
    %185 = vector.load %arg12[%c0_74, %c0_75] : memref<1x128xf32, #tpu.memory_space<vmem>>, vector<1x128xf32>
    %186 = arith.truncf %182 : vector<2x128xf32> to vector<2x128xbf16>
    %cst_76 = arith.constant dense<0.000000e+00> : vector<2x128xf32>
    %187 = tpu.matmul %186, %184, %cst_76 {dimension_numbers = #tpu.dot_dimension_numbers<[1], [0], [0], [1], [0, 0, 1, 1], [], []>} : vector<2x128xbf16>, vector<128x128xbf16>, vector<2x128xf32> -> vector<2x128xf32>
    %188 = vector.broadcast %185 : vector<1x128xf32> to vector<2x128xf32>
    %189 = arith.addf %187, %188 : vector<2x128xf32>
    %190 = arith.negf %189 : vector<2x128xf32>
    %191 = math.exp %190 : vector<2x128xf32>
    %cst_77 = arith.constant 1.000000e+00 : f32
    %192 = vector.broadcast %cst_77 : f32 to vector<2x128xf32>
    %193 = arith.addf %192, %191 : vector<2x128xf32>
    %194 = arith.divf %192, %193 : vector<2x128xf32>
    %195 = arith.mulf %189, %194 : vector<2x128xf32>
    %c0_78 = arith.constant 0 : index
    %c0_79 = arith.constant 0 : index
    %196 = vector.load %arg13[%c0_78, %c0_79] : memref<128x8xf32, #tpu.memory_space<vmem>>, vector<128x8xf32>
    %197 = arith.truncf %196 : vector<128x8xf32> to vector<128x8xbf16>
    %c0_80 = arith.constant 0 : index
    %c0_81 = arith.constant 0 : index
    %198 = vector.load %arg14[%c0_80, %c0_81] : memref<1x8xf32, #tpu.memory_space<vmem>>, vector<1x8xf32>
    %199 = arith.truncf %195 : vector<2x128xf32> to vector<2x128xbf16>
    %cst_82 = arith.constant dense<0.000000e+00> : vector<2x8xf32>
    %200 = tpu.matmul %199, %197, %cst_82 {dimension_numbers = #tpu.dot_dimension_numbers<[1], [0], [0], [1], [0, 0, 1, 1], [], []>} : vector<2x128xbf16>, vector<128x8xbf16>, vector<2x8xf32> -> vector<2x8xf32>
    %201 = vector.broadcast %198 : vector<1x8xf32> to vector<2x8xf32>
    %202 = arith.addf %200, %201 : vector<2x8xf32>
    %203 = vector.shape_cast %202 : vector<2x8xf32> to vector<2x1x8xf32>
    %c0_83 = arith.constant 0 : index
    %c0_84 = arith.constant 0 : index
    %c0_85 = arith.constant 0 : index
    %204 = vector.load %arg15[%c0_83, %c0_84, %c0_85] : memref<2x1x8xf32, #tpu.memory_space<vmem>>, vector<2x1x8xf32>
    tpu.vector_store %arg15[%c0_83, %c0_84, %c0_85], %203 {strides = array<i32>} : memref<2x1x8xf32, #tpu.memory_space<vmem>>, vector<2x1x8xf32>,
    return
  }
  func.func @transform_0(%arg0: i32) -> (i32, i32, i32) {
    %c0_i32 = arith.constant 0 : i32
    %c0_i32_0 = arith.constant 0 : i32
    %c0_i32_1 = arith.constant 0 : i32
    return %arg0, %c0_i32, %c0_i32_0 : i32, i32, i32
  }
  func.func @transform_1(%arg0: i32) -> (i32, i32, i32) {
    %c0_i32 = arith.constant 0 : i32
    %c0_i32_0 = arith.constant 0 : i32
    %c0_i32_1 = arith.constant 0 : i32
    return %arg0, %c0_i32, %c0_i32_0 : i32, i32, i32
  }
  func.func @transform_2(%arg0: i32) -> (i32, i32) {
    %c0_i32 = arith.constant 0 : i32
    %c0_i32_0 = arith.constant 0 : i32
    %c0_i32_1 = arith.constant 0 : i32
    return %c0_i32, %c0_i32_0 : i32, i32
  }
  func.func @transform_3(%arg0: i32) -> (i32, i32) {
    %c0_i32 = arith.constant 0 : i32
    %c0_i32_0 = arith.constant 0 : i32
    %c0_i32_1 = arith.constant 0 : i32
    return %c0_i32, %c0_i32_0 : i32, i32
  }
  func.func @transform_4(%arg0: i32) -> (i32, i32) {
    %c0_i32 = arith.constant 0 : i32
    %c0_i32_0 = arith.constant 0 : i32
    %c0_i32_1 = arith.constant 0 : i32
    return %c0_i32, %c0_i32_0 : i32, i32
  }
  func.func @transform_5(%arg0: i32) -> (i32, i32) {
    %c0_i32 = arith.constant 0 : i32
    %c0_i32_0 = arith.constant 0 : i32
    %c0_i32_1 = arith.constant 0 : i32
    return %c0_i32, %c0_i32_0 : i32, i32
  }
  func.func @transform_6(%arg0: i32) -> (i32, i32) {
    %c0_i32 = arith.constant 0 : i32
    %c0_i32_0 = arith.constant 0 : i32
    %c0_i32_1 = arith.constant 0 : i32
    return %c0_i32, %c0_i32_0 : i32, i32
  }
  func.func @transform_7(%arg0: i32) -> (i32, i32) {
    %c0_i32 = arith.constant 0 : i32
    %c0_i32_0 = arith.constant 0 : i32
    %c0_i32_1 = arith.constant 0 : i32
    return %c0_i32, %c0_i32_0 : i32, i32
  }
  func.func @transform_8(%arg0: i32) -> (i32, i32) {
    %c0_i32 = arith.constant 0 : i32
    %c0_i32_0 = arith.constant 0 : i32
    %c0_i32_1 = arith.constant 0 : i32
    return %c0_i32, %c0_i32_0 : i32, i32
  }
  func.func @transform_9(%arg0: i32) -> (i32, i32) {
    %c0_i32 = arith.constant 0 : i32
    %c0_i32_0 = arith.constant 0 : i32
    %c0_i32_1 = arith.constant 0 : i32
    return %c0_i32, %c0_i32_0 : i32, i32
  }
  func.func @transform_10(%arg0: i32) -> (i32, i32) {
    %c0_i32 = arith.constant 0 : i32
    %c0_i32_0 = arith.constant 0 : i32
    %c0_i32_1 = arith.constant 0 : i32
    return %c0_i32, %c0_i32_0 : i32, i32
  }
  func.func @transform_11(%arg0: i32) -> (i32, i32) {
    %c0_i32 = arith.constant 0 : i32
    %c0_i32_0 = arith.constant 0 : i32
    %c0_i32_1 = arith.constant 0 : i32
    return %c0_i32, %c0_i32_0 : i32, i32
  }
  func.func @transform_12(%arg0: i32) -> (i32, i32) {
    %c0_i32 = arith.constant 0 : i32
    %c0_i32_0 = arith.constant 0 : i32
    %c0_i32_1 = arith.constant 0 : i32
    return %c0_i32, %c0_i32_0 : i32, i32
  }
  func.func @transform_13(%arg0: i32) -> (i32, i32) {
    %c0_i32 = arith.constant 0 : i32
    %c0_i32_0 = arith.constant 0 : i32
    %c0_i32_1 = arith.constant 0 : i32
    return %c0_i32, %c0_i32_0 : i32, i32
  }
  func.func @transform_14(%arg0: i32) -> (i32, i32, i32) {
    %c0_i32 = arith.constant 0 : i32
    %c0_i32_0 = arith.constant 0 : i32
    %c0_i32_1 = arith.constant 0 : i32
    return %arg0, %c0_i32, %c0_i32_0 : i32, i32, i32
  }
}

module attributes {stable_mosaic.version = 11 : i64} {
  func.func @aware_fused_kernel(%arg0: i32, %arg1: memref<2x8x16xf32, #tpu.memory_space<vmem>>, %arg2: memref<2x8x8xf32, #tpu.memory_space<vmem>>, %arg3: memref<16x32xf32, #tpu.memory_space<vmem>>, %arg4: memref<1x32xf32, #tpu.memory_space<vmem>>, %arg5: memref<32x32xf32, #tpu.memory_space<vmem>>, %arg6: memref<1x32xf32, #tpu.memory_space<vmem>>, %arg7: memref<32x32xf32, #tpu.memory_space<vmem>>, %arg8: memref<1x32xf32, #tpu.memory_space<vmem>>, %arg9: memref<128x128xf32, #tpu.memory_space<vmem>>, %arg10: memref<1x128xf32, #tpu.memory_space<vmem>>, %arg11: memref<128x128xf32, #tpu.memory_space<vmem>>, %arg12: memref<1x128xf32, #tpu.memory_space<vmem>>, %arg13: memref<128x8xf32, #tpu.memory_space<vmem>>, %arg14: memref<1x8xf32, #tpu.memory_space<vmem>>, %arg15: memref<2x1x8xf32, #tpu.memory_space<vmem>>, %arg16: memref<2x128xf32, #tpu.memory_space<vmem>>) attributes {dimension_semantics = [#tpu.dimension_semantics<parallel>], iteration_bounds = array<i64: 1>, scalar_prefetch = 0 : i64, scratch_operands = 1 : i64, tpu.core_type = #tpu.core_type<tc>, window_params = [{transform_indices = @transform_0, window_bounds = array<i64: 2, 8, 16>}, {transform_indices = @transform_1, window_bounds = array<i64: 2, 8, 8>}, {pipeline_mode = #tpu.pipeline_mode<synchronous>, transform_indices = @transform_2, window_bounds = array<i64: 16, 32>}, {pipeline_mode = #tpu.pipeline_mode<synchronous>, transform_indices = @transform_3, window_bounds = array<i64: 1, 32>}, {pipeline_mode = #tpu.pipeline_mode<synchronous>, transform_indices = @transform_4, window_bounds = array<i64: 32, 32>}, {pipeline_mode = #tpu.pipeline_mode<synchronous>, transform_indices = @transform_5, window_bounds = array<i64: 1, 32>}, {pipeline_mode = #tpu.pipeline_mode<synchronous>, transform_indices = @transform_6, window_bounds = array<i64: 32, 32>}, {pipeline_mode = #tpu.pipeline_mode<synchronous>, transform_indices = @transform_7, window_bounds = array<i64: 1, 32>}, {pipeline_mode = #tpu.pipeline_mode<synchronous>, transform_indices = @transform_8, window_bounds = array<i64: 128, 128>}, {pipeline_mode = #tpu.pipeline_mode<synchronous>, transform_indices = @transform_9, window_bounds = array<i64: 1, 128>}, {pipeline_mode = #tpu.pipeline_mode<synchronous>, transform_indices = @transform_10, window_bounds = array<i64: 128, 128>}, {pipeline_mode = #tpu.pipeline_mode<synchronous>, transform_indices = @transform_11, window_bounds = array<i64: 1, 128>}, {pipeline_mode = #tpu.pipeline_mode<synchronous>, transform_indices = @transform_12, window_bounds = array<i64: 128, 8>}, {pipeline_mode = #tpu.pipeline_mode<synchronous>, transform_indices = @transform_13, window_bounds = array<i64: 1, 8>}, {transform_indices = @transform_14, window_bounds = array<i64: 2, 1, 8>}]} {
    %c0 = arith.constant 0 : index
    %c0_0 = arith.constant 0 : index
    %0 = vector.load %arg3[%c0, %c0_0] : memref<16x32xf32, #tpu.memory_space<vmem>>, vector<16x32xf32>
    %1 = arith.truncf %0 : vector<16x32xf32> to vector<16x32xbf16>
    %c0_1 = arith.constant 0 : index
    %c0_2 = arith.constant 0 : index
    %2 = vector.load %arg5[%c0_1, %c0_2] : memref<32x32xf32, #tpu.memory_space<vmem>>, vector<32x32xf32>
    %3 = arith.truncf %2 : vector<32x32xf32> to vector<32x32xbf16>
    %c0_3 = arith.constant 0 : index
    %c0_4 = arith.constant 0 : index
    %4 = vector.load %arg7[%c0_3, %c0_4] : memref<32x32xf32, #tpu.memory_space<vmem>>, vector<32x32xf32>
    %5 = arith.truncf %4 : vector<32x32xf32> to vector<32x32xbf16>
    %c0_5 = arith.constant 0 : index
    %c0_6 = arith.constant 0 : index
    %6 = vector.load %arg4[%c0_5, %c0_6] : memref<1x32xf32, #tpu.memory_space<vmem>>, vector<1x32xf32>
    %c0_7 = arith.constant 0 : index
    %c0_8 = arith.constant 0 : index
    %7 = vector.load %arg6[%c0_7, %c0_8] : memref<1x32xf32, #tpu.memory_space<vmem>>, vector<1x32xf32>
    %8 = vector.shape_cast %7 : vector<1x32xf32> to vector<1x32xf32>
    %9 = vector.broadcast %8 : vector<1x32xf32> to vector<16x32xf32>
    %c0_9 = arith.constant 0 : index
    %c0_10 = arith.constant 0 : index
    %10 = vector.load %arg8[%c0_9, %c0_10] : memref<1x32xf32, #tpu.memory_space<vmem>>, vector<1x32xf32>
    %11 = vector.shape_cast %10 : vector<1x32xf32> to vector<1x32xf32>
    %12 = vector.broadcast %11 : vector<1x32xf32> to vector<16x32xf32>
    %c0_11 = arith.constant 0 : index
    %c0_12 = arith.constant 0 : index
    %c0_13 = arith.constant 0 : index
    %13 = vector.load %arg1[%c0_11, %c0_12, %c0_13] : memref<2x8x16xf32, #tpu.memory_space<vmem>>, vector<2x8x16xf32>
    %14 = vector.shape_cast %13 : vector<2x8x16xf32> to vector<16x16xf32>
    %15 = arith.truncf %14 : vector<16x16xf32> to vector<16x16xbf16>
    %c0_14 = arith.constant 0 : index
    %c0_15 = arith.constant 0 : index
    %c0_16 = arith.constant 0 : index
    %16 = vector.load %arg2[%c0_14, %c0_15, %c0_16] : memref<2x8x8xf32, #tpu.memory_space<vmem>>, vector<2x8x8xf32>
    %cst = arith.constant dense<0.000000e+00> : vector<16x32xf32>
    %17 = tpu.matmul %15, %1, %cst {dimension_numbers = #tpu.dot_dimension_numbers<[1], [0], [0], [1], [0, 0, 1, 1], [], []>} : vector<16x16xbf16>, vector<16x32xbf16>, vector<16x32xf32> -> vector<16x32xf32>
    %18 = vector.broadcast %6 : vector<1x32xf32> to vector<16x32xf32>
    %19 = arith.addf %17, %18 : vector<16x32xf32>
    %20 = arith.negf %19 : vector<16x32xf32>
    %21 = math.exp %20 : vector<16x32xf32>
    %cst_17 = arith.constant 1.000000e+00 : f32
    %22 = vector.broadcast %cst_17 : f32 to vector<16x32xf32>
    %23 = arith.addf %22, %21 : vector<16x32xf32>
    %24 = arith.divf %22, %23 : vector<16x32xf32>
    %25 = arith.mulf %19, %24 : vector<16x32xf32>
    %cst_18 = arith.constant 0.000000e+00 : f32
    %26 = vector.broadcast %cst_18 : f32 to vector<2x8x8xf32>
    %27 = arith.cmpf one, %16, %26 : vector<2x8x8xf32>
    %28 = arith.extui %27 : vector<2x8x8xi1> to vector<2x8x8xi32>
    %29 = arith.sitofp %28 : vector<2x8x8xi32> to vector<2x8x8xf32>
    %30 = vector.extract_strided_slice %29 {offsets = [0, 0, 0], sizes = [1, 8, 8], strides = [1, 1, 1]} : vector<2x8x8xf32> to vector<1x8x8xf32>
    %31 = vector.shape_cast %30 : vector<1x8x8xf32> to vector<8x8xf32>
    %cst_19 = arith.constant -1.000000e+08 : f32
    %32 = vector.broadcast %cst_19 : f32 to vector<8x8xf32>
    %cst_20 = arith.constant 1.000000e+00 : f32
    %33 = vector.broadcast %cst_20 : f32 to vector<1x8xf32>
    %cst_21 = arith.constant 0.000000e+00 : f32
    %34 = vector.broadcast %cst_21 : f32 to vector<8x8xf32>
    %cst_22 = arith.constant -3.000000e+38 : f32
    %35 = vector.broadcast %cst_22 : f32 to vector<8x8xf32>
    %cst_23 = arith.constant 0.000000e+00 : f32
    %36 = vector.broadcast %cst_23 : f32 to vector<1x8xf32>
    %37 = tpu.concatenate %31, %34 in 1 : vector<8x8xf32>, vector<8x8xf32> -> vector<8x16xf32>
    %38 = tpu.concatenate %32, %35 in 1 : vector<8x8xf32>, vector<8x8xf32> -> vector<8x16xf32>
    %39 = tpu.concatenate %33, %36 in 1 : vector<1x8xf32>, vector<1x8xf32> -> vector<1x16xf32>
    %cst_24 = arith.constant 0.000000e+00 : f32
    %40 = vector.broadcast %cst_24 : f32 to vector<8x8xf32>
    %cst_25 = arith.constant -3.000000e+38 : f32
    %41 = vector.broadcast %cst_25 : f32 to vector<8x8xf32>
    %cst_26 = arith.constant 0.000000e+00 : f32
    %42 = vector.broadcast %cst_26 : f32 to vector<1x8xf32>
    %43 = vector.extract_strided_slice %29 {offsets = [1, 0, 0], sizes = [1, 8, 8], strides = [1, 1, 1]} : vector<2x8x8xf32> to vector<1x8x8xf32>
    %44 = vector.shape_cast %43 : vector<1x8x8xf32> to vector<8x8xf32>
    %cst_27 = arith.constant -1.000000e+08 : f32
    %45 = vector.broadcast %cst_27 : f32 to vector<8x8xf32>
    %cst_28 = arith.constant 1.000000e+00 : f32
    %46 = vector.broadcast %cst_28 : f32 to vector<1x8xf32>
    %47 = tpu.concatenate %40, %44 in 1 : vector<8x8xf32>, vector<8x8xf32> -> vector<8x16xf32>
    %48 = tpu.concatenate %41, %45 in 1 : vector<8x8xf32>, vector<8x8xf32> -> vector<8x16xf32>
    %49 = tpu.concatenate %42, %46 in 1 : vector<1x8xf32>, vector<1x8xf32> -> vector<1x16xf32>
    %50 = tpu.concatenate %37, %47 in 0 : vector<8x16xf32>, vector<8x16xf32> -> vector<16x16xf32>
    %cst_29 = arith.constant 0.000000e+00 : f32
    %51 = vector.broadcast %cst_29 : f32 to vector<16x16xf32>
    %52 = arith.cmpf one, %50, %51 : vector<16x16xf32>
    %53 = tpu.concatenate %38, %48 in 0 : vector<8x16xf32>, vector<8x16xf32> -> vector<16x16xf32>
    %54 = tpu.concatenate %39, %49 in 0 : vector<1x16xf32>, vector<1x16xf32> -> vector<2x16xf32>
    %55 = arith.truncf %54 : vector<2x16xf32> to vector<2x16xbf16>
    %56 = arith.truncf %25 : vector<16x32xf32> to vector<16x32xbf16>
    %cst_30 = arith.constant dense<0.000000e+00> : vector<16x32xf32>
    %57 = tpu.matmul %56, %5, %cst_30 {dimension_numbers = #tpu.dot_dimension_numbers<[1], [0], [0], [1], [0, 0, 1, 1], [], []>} : vector<16x32xbf16>, vector<32x32xbf16>, vector<16x32xf32> -> vector<16x32xf32>
    %58 = arith.addf %57, %12 : vector<16x32xf32>
    %59 = arith.negf %58 : vector<16x32xf32>
    %60 = math.exp %59 : vector<16x32xf32>
    %cst_31 = arith.constant 1.000000e+00 : f32
    %61 = vector.broadcast %cst_31 : f32 to vector<16x32xf32>
    %62 = arith.addf %61, %60 : vector<16x32xf32>
    %63 = arith.divf %61, %62 : vector<16x32xf32>
    %64 = arith.mulf %58, %63 : vector<16x32xf32>
    %65 = arith.truncf %64 : vector<16x32xf32> to vector<16x32xbf16>
    %cst_32 = arith.constant dense<0.000000e+00> : vector<2x32xf32>
    %66 = tpu.matmul %55, %65, %cst_32 {dimension_numbers = #tpu.dot_dimension_numbers<[1], [0], [0], [1], [0, 0, 1, 1], [], []>} : vector<2x16xbf16>, vector<16x32xbf16>, vector<2x32xf32> -> vector<2x32xf32>
    %c0_33 = arith.constant 0 : index
    %c0_34 = arith.constant 0 : index
    %67 = vector.load %arg16[%c0_33, %c0_34] : memref<2x128xf32, #tpu.memory_space<vmem>>, vector<2x32xf32>
    tpu.vector_store %arg16[%c0_33, %c0_34], %66 {strides = array<i32>} : memref<2x128xf32, #tpu.memory_space<vmem>>, vector<2x32xf32>,
    %cst_35 = arith.constant dense<0.000000e+00> : vector<16x32xf32>
    %68 = tpu.matmul %56, %3, %cst_35 {dimension_numbers = #tpu.dot_dimension_numbers<[1], [0], [0], [1], [0, 0, 1, 1], [], []>} : vector<16x32xbf16>, vector<32x32xbf16>, vector<16x32xf32> -> vector<16x32xf32>
    %69 = arith.addf %68, %9 : vector<16x32xf32>
    %70 = arith.truncf %69 : vector<16x32xf32> to vector<16x32xbf16>
    %cst_36 = arith.constant dense<0.000000e+00> : vector<16x16xf32>
    %71 = tpu.matmul %70, %56, %cst_36 {dimension_numbers = #tpu.dot_dimension_numbers<[1], [1], [0], [0], [0, 0, 1, 0], [], []>} : vector<16x32xbf16>, vector<16x32xbf16>, vector<16x16xf32> -> vector<16x16xf32>
    %72 = arith.select %52, %71, %53 : vector<16x16xi1>, vector<16x16xf32>
    %cst_37 = arith.constant dense<0xFF800000> : vector<16xf32>
    %73 = vector.multi_reduction <maximumf>, %72, %cst_37 [0] : vector<16x16xf32> to vector<16xf32>
    %74 = vector.shape_cast %73 : vector<16xf32> to vector<1x16xf32>
    %75 = vector.broadcast %74 : vector<1x16xf32> to vector<16x16xf32>
    %76 = arith.subf %72, %75 : vector<16x16xf32>
    %77 = math.exp %76 : vector<16x16xf32>
    %cst_38 = arith.constant dense<0.000000e+00> : vector<16xf32>
    %78 = vector.multi_reduction <add>, %77, %cst_38 [0] : vector<16x16xf32> to vector<16xf32>
    %79 = vector.shape_cast %78 : vector<16xf32> to vector<1x16xf32>
    %80 = tpu.reciprocal %79 {approx = true} : vector<1x16xf32> -> vector<1x16xf32>
    %81 = vector.broadcast %80 : vector<1x16xf32> to vector<16x16xf32>
    %82 = arith.mulf %77, %81 : vector<16x16xf32>
    %83 = arith.truncf %82 : vector<16x16xf32> to vector<16x16xbf16>
    %cst_39 = arith.constant dense<0.000000e+00> : vector<16x32xf32>
    %84 = tpu.matmul %83, %56, %cst_39 {dimension_numbers = #tpu.dot_dimension_numbers<[1], [0], [0], [1], [0, 0, 1, 1], [], []>} : vector<16x16xbf16>, vector<16x32xbf16>, vector<16x32xf32> -> vector<16x32xf32>
    %85 = arith.addf %25, %84 : vector<16x32xf32>
    %86 = arith.mulf %85, %25 : vector<16x32xf32>
    %87 = arith.truncf %86 : vector<16x32xf32> to vector<16x32xbf16>
    %cst_40 = arith.constant dense<0.000000e+00> : vector<16x32xf32>
    %88 = tpu.matmul %87, %5, %cst_40 {dimension_numbers = #tpu.dot_dimension_numbers<[1], [0], [0], [1], [0, 0, 1, 1], [], []>} : vector<16x32xbf16>, vector<32x32xbf16>, vector<16x32xf32> -> vector<16x32xf32>
    %89 = arith.addf %88, %12 : vector<16x32xf32>
    %90 = arith.negf %89 : vector<16x32xf32>
    %91 = math.exp %90 : vector<16x32xf32>
    %cst_41 = arith.constant 1.000000e+00 : f32
    %92 = vector.broadcast %cst_41 : f32 to vector<16x32xf32>
    %93 = arith.addf %92, %91 : vector<16x32xf32>
    %94 = arith.divf %92, %93 : vector<16x32xf32>
    %95 = arith.mulf %89, %94 : vector<16x32xf32>
    %96 = arith.truncf %95 : vector<16x32xf32> to vector<16x32xbf16>
    %cst_42 = arith.constant dense<0.000000e+00> : vector<2x32xf32>
    %97 = tpu.matmul %55, %96, %cst_42 {dimension_numbers = #tpu.dot_dimension_numbers<[1], [0], [0], [1], [0, 0, 1, 1], [], []>} : vector<2x16xbf16>, vector<16x32xbf16>, vector<2x32xf32> -> vector<2x32xf32>
    %c0_43 = arith.constant 0 : index
    %c32 = arith.constant 32 : index
    %98 = vector.load %arg16[%c0_43, %c32] : memref<2x128xf32, #tpu.memory_space<vmem>>, vector<2x32xf32>
    tpu.vector_store %arg16[%c0_43, %c32], %97 {strides = array<i32>} : memref<2x128xf32, #tpu.memory_space<vmem>>, vector<2x32xf32>,
    %cst_44 = arith.constant dense<0.000000e+00> : vector<16x32xf32>
    %99 = tpu.matmul %87, %3, %cst_44 {dimension_numbers = #tpu.dot_dimension_numbers<[1], [0], [0], [1], [0, 0, 1, 1], [], []>} : vector<16x32xbf16>, vector<32x32xbf16>, vector<16x32xf32> -> vector<16x32xf32>
    %100 = arith.addf %99, %9 : vector<16x32xf32>
    %101 = arith.truncf %100 : vector<16x32xf32> to vector<16x32xbf16>
    %cst_45 = arith.constant dense<0.000000e+00> : vector<16x16xf32>
    %102 = tpu.matmul %101, %87, %cst_45 {dimension_numbers = #tpu.dot_dimension_numbers<[1], [1], [0], [0], [0, 0, 1, 0], [], []>} : vector<16x32xbf16>, vector<16x32xbf16>, vector<16x16xf32> -> vector<16x16xf32>
    %103 = arith.select %52, %102, %53 : vector<16x16xi1>, vector<16x16xf32>
    %cst_46 = arith.constant dense<0xFF800000> : vector<16xf32>
    %104 = vector.multi_reduction <maximumf>, %103, %cst_46 [0] : vector<16x16xf32> to vector<16xf32>
    %105 = vector.shape_cast %104 : vector<16xf32> to vector<1x16xf32>
    %106 = vector.broadcast %105 : vector<1x16xf32> to vector<16x16xf32>
    %107 = arith.subf %103, %106 : vector<16x16xf32>
    %108 = math.exp %107 : vector<16x16xf32>
    %cst_47 = arith.constant dense<0.000000e+00> : vector<16xf32>
    %109 = vector.multi_reduction <add>, %108, %cst_47 [0] : vector<16x16xf32> to vector<16xf32>
    %110 = vector.shape_cast %109 : vector<16xf32> to vector<1x16xf32>
    %111 = tpu.reciprocal %110 {approx = true} : vector<1x16xf32> -> vector<1x16xf32>
    %112 = vector.broadcast %111 : vector<1x16xf32> to vector<16x16xf32>
    %113 = arith.mulf %108, %112 : vector<16x16xf32>
    %114 = arith.truncf %113 : vector<16x16xf32> to vector<16x16xbf16>
    %cst_48 = arith.constant dense<0.000000e+00> : vector<16x32xf32>
    %115 = tpu.matmul %114, %87, %cst_48 {dimension_numbers = #tpu.dot_dimension_numbers<[1], [0], [0], [1], [0, 0, 1, 1], [], []>} : vector<16x16xbf16>, vector<16x32xbf16>, vector<16x32xf32> -> vector<16x32xf32>
    %116 = arith.addf %86, %115 : vector<16x32xf32>
    %117 = arith.mulf %116, %25 : vector<16x32xf32>
    %118 = arith.truncf %117 : vector<16x32xf32> to vector<16x32xbf16>
    %cst_49 = arith.constant dense<0.000000e+00> : vector<16x32xf32>
    %119 = tpu.matmul %118, %5, %cst_49 {dimension_numbers = #tpu.dot_dimension_numbers<[1], [0], [0], [1], [0, 0, 1, 1], [], []>} : vector<16x32xbf16>, vector<32x32xbf16>, vector<16x32xf32> -> vector<16x32xf32>
    %120 = arith.addf %119, %12 : vector<16x32xf32>
    %121 = arith.negf %120 : vector<16x32xf32>
    %122 = math.exp %121 : vector<16x32xf32>
    %cst_50 = arith.constant 1.000000e+00 : f32
    %123 = vector.broadcast %cst_50 : f32 to vector<16x32xf32>
    %124 = arith.addf %123, %122 : vector<16x32xf32>
    %125 = arith.divf %123, %124 : vector<16x32xf32>
    %126 = arith.mulf %120, %125 : vector<16x32xf32>
    %127 = arith.truncf %126 : vector<16x32xf32> to vector<16x32xbf16>
    %cst_51 = arith.constant dense<0.000000e+00> : vector<2x32xf32>
    %128 = tpu.matmul %55, %127, %cst_51 {dimension_numbers = #tpu.dot_dimension_numbers<[1], [0], [0], [1], [0, 0, 1, 1], [], []>} : vector<2x16xbf16>, vector<16x32xbf16>, vector<2x32xf32> -> vector<2x32xf32>
    %c0_52 = arith.constant 0 : index
    %c64 = arith.constant 64 : index
    %129 = vector.load %arg16[%c0_52, %c64] : memref<2x128xf32, #tpu.memory_space<vmem>>, vector<2x32xf32>
    tpu.vector_store %arg16[%c0_52, %c64], %128 {strides = array<i32>} : memref<2x128xf32, #tpu.memory_space<vmem>>, vector<2x32xf32>,
    %cst_53 = arith.constant dense<0.000000e+00> : vector<16x32xf32>
    %130 = tpu.matmul %118, %3, %cst_53 {dimension_numbers = #tpu.dot_dimension_numbers<[1], [0], [0], [1], [0, 0, 1, 1], [], []>} : vector<16x32xbf16>, vector<32x32xbf16>, vector<16x32xf32> -> vector<16x32xf32>
    %131 = arith.addf %130, %9 : vector<16x32xf32>
    %132 = arith.truncf %131 : vector<16x32xf32> to vector<16x32xbf16>
    %cst_54 = arith.constant dense<0.000000e+00> : vector<16x16xf32>
    %133 = tpu.matmul %132, %118, %cst_54 {dimension_numbers = #tpu.dot_dimension_numbers<[1], [1], [0], [0], [0, 0, 1, 0], [], []>} : vector<16x32xbf16>, vector<16x32xbf16>, vector<16x16xf32> -> vector<16x16xf32>
    %134 = arith.select %52, %133, %53 : vector<16x16xi1>, vector<16x16xf32>
    %cst_55 = arith.constant dense<0xFF800000> : vector<16xf32>
    %135 = vector.multi_reduction <maximumf>, %134, %cst_55 [0] : vector<16x16xf32> to vector<16xf32>
    %136 = vector.shape_cast %135 : vector<16xf32> to vector<1x16xf32>
    %137 = vector.broadcast %136 : vector<1x16xf32> to vector<16x16xf32>
    %138 = arith.subf %134, %137 : vector<16x16xf32>
    %139 = math.exp %138 : vector<16x16xf32>
    %cst_56 = arith.constant dense<0.000000e+00> : vector<16xf32>
    %140 = vector.multi_reduction <add>, %139, %cst_56 [0] : vector<16x16xf32> to vector<16xf32>
    %141 = vector.shape_cast %140 : vector<16xf32> to vector<1x16xf32>
    %142 = tpu.reciprocal %141 {approx = true} : vector<1x16xf32> -> vector<1x16xf32>
    %143 = vector.broadcast %142 : vector<1x16xf32> to vector<16x16xf32>
    %144 = arith.mulf %139, %143 : vector<16x16xf32>
    %145 = arith.truncf %144 : vector<16x16xf32> to vector<16x16xbf16>
    %cst_57 = arith.constant dense<0.000000e+00> : vector<16x32xf32>
    %146 = tpu.matmul %145, %118, %cst_57 {dimension_numbers = #tpu.dot_dimension_numbers<[1], [0], [0], [1], [0, 0, 1, 1], [], []>} : vector<16x16xbf16>, vector<16x32xbf16>, vector<16x32xf32> -> vector<16x32xf32>
    %147 = arith.addf %117, %146 : vector<16x32xf32>
    %148 = arith.mulf %147, %25 : vector<16x32xf32>
    %149 = arith.truncf %148 : vector<16x32xf32> to vector<16x32xbf16>
    %cst_58 = arith.constant dense<0.000000e+00> : vector<16x32xf32>
    %150 = tpu.matmul %149, %5, %cst_58 {dimension_numbers = #tpu.dot_dimension_numbers<[1], [0], [0], [1], [0, 0, 1, 1], [], []>} : vector<16x32xbf16>, vector<32x32xbf16>, vector<16x32xf32> -> vector<16x32xf32>
    %151 = arith.addf %150, %12 : vector<16x32xf32>
    %152 = arith.negf %151 : vector<16x32xf32>
    %153 = math.exp %152 : vector<16x32xf32>
    %cst_59 = arith.constant 1.000000e+00 : f32
    %154 = vector.broadcast %cst_59 : f32 to vector<16x32xf32>
    %155 = arith.addf %154, %153 : vector<16x32xf32>
    %156 = arith.divf %154, %155 : vector<16x32xf32>
    %157 = arith.mulf %151, %156 : vector<16x32xf32>
    %158 = arith.truncf %157 : vector<16x32xf32> to vector<16x32xbf16>
    %cst_60 = arith.constant dense<0.000000e+00> : vector<2x32xf32>
    %159 = tpu.matmul %55, %158, %cst_60 {dimension_numbers = #tpu.dot_dimension_numbers<[1], [0], [0], [1], [0, 0, 1, 1], [], []>} : vector<2x16xbf16>, vector<16x32xbf16>, vector<2x32xf32> -> vector<2x32xf32>
    %c0_61 = arith.constant 0 : index
    %c96 = arith.constant 96 : index
    %160 = vector.load %arg16[%c0_61, %c96] : memref<2x128xf32, #tpu.memory_space<vmem>>, vector<2x32xf32>
    tpu.vector_store %arg16[%c0_61, %c96], %159 {strides = array<i32>} : memref<2x128xf32, #tpu.memory_space<vmem>>, vector<2x32xf32>,
    %c0_62 = arith.constant 0 : index
    %c0_63 = arith.constant 0 : index
    %161 = vector.load %arg16[%c0_62, %c0_63] : memref<2x128xf32, #tpu.memory_space<vmem>>, vector<2x128xf32>
    %162 = arith.mulf %161, %161 : vector<2x128xf32>
    %cst_64 = arith.constant dense<0.000000e+00> : vector<2xf32>
    %163 = vector.multi_reduction <add>, %162, %cst_64 [1] : vector<2x128xf32> to vector<2xf32>
    %164 = vector.shape_cast %163 : vector<2xf32> to vector<2x1xf32>
    %cst_65 = arith.constant 1.000000e-24 : f32
    %165 = vector.broadcast %cst_65 : f32 to vector<2x1xf32>
    %166 = arith.maximumf %164, %165 : vector<2x1xf32>
    %167 = math.rsqrt %166 : vector<2x1xf32>
    %168 = vector.broadcast %167 : vector<2x1xf32> to vector<2x128xf32>
    %169 = arith.mulf %161, %168 : vector<2x128xf32>
    %c0_66 = arith.constant 0 : index
    %c0_67 = arith.constant 0 : index
    %170 = vector.load %arg9[%c0_66, %c0_67] : memref<128x128xf32, #tpu.memory_space<vmem>>, vector<128x128xf32>
    %171 = arith.truncf %170 : vector<128x128xf32> to vector<128x128xbf16>
    %c0_68 = arith.constant 0 : index
    %c0_69 = arith.constant 0 : index
    %172 = vector.load %arg10[%c0_68, %c0_69] : memref<1x128xf32, #tpu.memory_space<vmem>>, vector<1x128xf32>
    %173 = arith.truncf %169 : vector<2x128xf32> to vector<2x128xbf16>
    %cst_70 = arith.constant dense<0.000000e+00> : vector<2x128xf32>
    %174 = tpu.matmul %173, %171, %cst_70 {dimension_numbers = #tpu.dot_dimension_numbers<[1], [0], [0], [1], [0, 0, 1, 1], [], []>} : vector<2x128xbf16>, vector<128x128xbf16>, vector<2x128xf32> -> vector<2x128xf32>
    %175 = vector.broadcast %172 : vector<1x128xf32> to vector<2x128xf32>
    %176 = arith.addf %174, %175 : vector<2x128xf32>
    %177 = arith.negf %176 : vector<2x128xf32>
    %178 = math.exp %177 : vector<2x128xf32>
    %cst_71 = arith.constant 1.000000e+00 : f32
    %179 = vector.broadcast %cst_71 : f32 to vector<2x128xf32>
    %180 = arith.addf %179, %178 : vector<2x128xf32>
    %181 = arith.divf %179, %180 : vector<2x128xf32>
    %182 = arith.mulf %176, %181 : vector<2x128xf32>
    %c0_72 = arith.constant 0 : index
    %c0_73 = arith.constant 0 : index
    %183 = vector.load %arg11[%c0_72, %c0_73] : memref<128x128xf32, #tpu.memory_space<vmem>>, vector<128x128xf32>
    %184 = arith.truncf %183 : vector<128x128xf32> to vector<128x128xbf16>
    %c0_74 = arith.constant 0 : index
    %c0_75 = arith.constant 0 : index
    %185 = vector.load %arg12[%c0_74, %c0_75] : memref<1x128xf32, #tpu.memory_space<vmem>>, vector<1x128xf32>
    %186 = arith.truncf %182 : vector<2x128xf32> to vector<2x128xbf16>
    %cst_76 = arith.constant dense<0.000000e+00> : vector<2x128xf32>
    %187 = tpu.matmul %186, %184, %cst_76 {dimension_numbers = #tpu.dot_dimension_numbers<[1], [0], [0], [1], [0, 0, 1, 1], [], []>} : vector<2x128xbf16>, vector<128x128xbf16>, vector<2x128xf32> -> vector<2x128xf32>
    %188 = vector.broadcast %185 : vector<1x128xf32> to vector<2x128xf32>
    %189 = arith.addf %187, %188 : vector<2x128xf32>
    %190 = arith.negf %189 : vector<2x128xf32>
    %191 = math.exp %190 : vector<2x128xf32>
    %cst_77 = arith.constant 1.000000e+00 : f32
    %192 = vector.broadcast %cst_77 : f32 to vector<2x128xf32>
    %193 = arith.addf %192, %191 : vector<2x128xf32>
    %194 = arith.divf %192, %193 : vector<2x128xf32>
    %195 = arith.mulf %189, %194 : vector<2x128xf32>
    %c0_78 = arith.constant 0 : index
    %c0_79 = arith.constant 0 : index
    %196 = vector.load %arg13[%c0_78, %c0_79] : memref<128x8xf32, #tpu.memory_space<vmem>>, vector<128x8xf32>
    %197 = arith.truncf %196 : vector<128x8xf32> to vector<128x8xbf16>
    %c0_80 = arith.constant 0 : index
    %c0_81 = arith.constant 0 : index
    %198 = vector.load %arg14[%c0_80, %c0_81] : memref<1x8xf32, #tpu.memory_space<vmem>>, vector<1x8xf32>
    %199 = arith.truncf %195 : vector<2x128xf32> to vector<2x128xbf16>
    %cst_82 = arith.constant dense<0.000000e+00> : vector<2x8xf32>
    %200 = tpu.matmul %199, %197, %cst_82 {dimension_numbers = #tpu.dot_dimension_numbers<[1], [0], [0], [1], [0, 0, 1, 1], [], []>} : vector<2x128xbf16>, vector<128x8xbf16>, vector<2x8xf32> -> vector<2x8xf32>
    %201 = vector.broadcast %198 : vector<1x8xf32> to vector<2x8xf32>
    %202 = arith.addf %200, %201 : vector<2x8xf32>
    %203 = vector.shape_cast %202 : vector<2x8xf32> to vector<2x1x8xf32>
    %c0_83 = arith.constant 0 : index
    %c0_84 = arith.constant 0 : index
    %c0_85 = arith.constant 0 : index
    %204 = vector.load %arg15[%c0_83, %c0_84, %c0_85] : memref<2x1x8xf32, #tpu.memory_space<vmem>>, vector<2x1x8xf32>
    tpu.vector_store %arg15[%c0_83, %c0_84, %c0_85], %203 {strides = array<i32>} : memref<2x1x8xf32, #tpu.memory_space<vmem>>, vector<2x1x8xf32>,
    return
  }
  func.func @transform_0(%arg0: i32) -> (i32, i32, i32) {
    %c0_i32 = arith.constant 0 : i32
    %c0_i32_0 = arith.constant 0 : i32
    %c0_i32_1 = arith.constant 0 : i32
    return %arg0, %c0_i32, %c0_i32_0 : i32, i32, i32
  }
  func.func @transform_1(%arg0: i32) -> (i32, i32, i32) {
    %c0_i32 = arith.constant 0 : i32
    %c0_i32_0 = arith.constant 0 : i32
    %c0_i32_1 = arith.constant 0 : i32
    return %arg0, %c0_i32, %c0_i32_0 : i32, i32, i32
  }
  func.func @transform_2(%arg0: i32) -> (i32, i32) {
    %c0_i32 = arith.constant 0 : i32
    %c0_i32_0 = arith.constant 0 : i32
    %c0_i32_1 = arith.constant 0 : i32
    return %c0_i32, %c0_i32_0 : i32, i32
  }
  func.func @transform_3(%arg0: i32) -> (i32, i32) {
    %c0_i32 = arith.constant 0 : i32
    %c0_i32_0 = arith.constant 0 : i32
    %c0_i32_1 = arith.constant 0 : i32
    return %c0_i32, %c0_i32_0 : i32, i32
  }
  func.func @transform_4(%arg0: i32) -> (i32, i32) {
    %c0_i32 = arith.constant 0 : i32
    %c0_i32_0 = arith.constant 0 : i32
    %c0_i32_1 = arith.constant 0 : i32
    return %c0_i32, %c0_i32_0 : i32, i32
  }
  func.func @transform_5(%arg0: i32) -> (i32, i32) {
    %c0_i32 = arith.constant 0 : i32
    %c0_i32_0 = arith.constant 0 : i32
    %c0_i32_1 = arith.constant 0 : i32
    return %c0_i32, %c0_i32_0 : i32, i32
  }
  func.func @transform_6(%arg0: i32) -> (i32, i32) {
    %c0_i32 = arith.constant 0 : i32
    %c0_i32_0 = arith.constant 0 : i32
    %c0_i32_1 = arith.constant 0 : i32
    return %c0_i32, %c0_i32_0 : i32, i32
  }
  func.func @transform_7(%arg0: i32) -> (i32, i32) {
    %c0_i32 = arith.constant 0 : i32
    %c0_i32_0 = arith.constant 0 : i32
    %c0_i32_1 = arith.constant 0 : i32
    return %c0_i32, %c0_i32_0 : i32, i32
  }
  func.func @transform_8(%arg0: i32) -> (i32, i32) {
    %c0_i32 = arith.constant 0 : i32
    %c0_i32_0 = arith.constant 0 : i32
    %c0_i32_1 = arith.constant 0 : i32
    return %c0_i32, %c0_i32_0 : i32, i32
  }
  func.func @transform_9(%arg0: i32) -> (i32, i32) {
    %c0_i32 = arith.constant 0 : i32
    %c0_i32_0 = arith.constant 0 : i32
    %c0_i32_1 = arith.constant 0 : i32
    return %c0_i32, %c0_i32_0 : i32, i32
  }
  func.func @transform_10(%arg0: i32) -> (i32, i32) {
    %c0_i32 = arith.constant 0 : i32
    %c0_i32_0 = arith.constant 0 : i32
    %c0_i32_1 = arith.constant 0 : i32
    return %c0_i32, %c0_i32_0 : i32, i32
  }
  func.func @transform_11(%arg0: i32) -> (i32, i32) {
    %c0_i32 = arith.constant 0 : i32
    %c0_i32_0 = arith.constant 0 : i32
    %c0_i32_1 = arith.constant 0 : i32
    return %c0_i32, %c0_i32_0 : i32, i32
  }
  func.func @transform_12(%arg0: i32) -> (i32, i32) {
    %c0_i32 = arith.constant 0 : i32
    %c0_i32_0 = arith.constant 0 : i32
    %c0_i32_1 = arith.constant 0 : i32
    return %c0_i32, %c0_i32_0 : i32, i32
  }
  func.func @transform_13(%arg0: i32) -> (i32, i32) {
    %c0_i32 = arith.constant 0 : i32
    %c0_i32_0 = arith.constant 0 : i32
    %c0_i32_1 = arith.constant 0 : i32
    return %c0_i32, %c0_i32_0 : i32, i32
  }
  func.func @transform_14(%arg0: i32) -> (i32, i32, i32) {
    %c0_i32 = arith.constant 0 : i32
    %c0_i32_0 = arith.constant 0 : i32
    %c0_i32_1 = arith.constant 0 : i32
    return %arg0, %c0_i32, %c0_i32_0 : i32, i32, i32
  }
}

</mosaic_0001>

<llo_original>
// kernel: tpu_custom_call.1
$region0: #{tpu_custom_call.1}
  #allocation0 [shape = 'u32[]', space=smem, size = 0x4, offset = 0x4, fixed_abs, tag = 'smem constant byte address 0x4 - core index']
  #allocation1 [shape = 'u32[72,128]{1,0:T(1,128)}', space=vmem, size = 0x9000, scoped, tag = 'internal scratch']
  #allocation2 [shape = 'f32[2,128]{1,0:T(2,128)}', space=vmem, size = 0x400, scoped, tag = 'scratch operand']
  %s0 = inlined_call_operand.hbm [shape: f32[2,8,16], index: 0, kind: input, shape index: {}]
  %s1 = inlined_call_operand.hbm [shape: f32[2,8,8], index: 1, kind: input, shape index: {}]
  %s2 = inlined_call_operand.hbm [shape: f32[16,32], index: 2, kind: input, shape index: {}]
  %s3 = inlined_call_operand.vmem [shape: f32[1,32], index: 3, kind: input, shape index: {}]
  %s4 = inlined_call_operand.hbm [shape: f32[32,32], index: 4, kind: input, shape index: {}]
  %s5 = inlined_call_operand.vmem [shape: f32[1,32], index: 5, kind: input, shape index: {}]
  %s6 = inlined_call_operand.hbm [shape: f32[32,32], index: 6, kind: input, shape index: {}]
  %s7 = inlined_call_operand.vmem [shape: f32[1,32], index: 7, kind: input, shape index: {}]
  %s8 = inlined_call_operand.vmem [shape: f32[128,128], index: 8, kind: input, shape index: {}]
  %s9 = inlined_call_operand.vmem [shape: f32[1,128], index: 9, kind: input, shape index: {}]
  %s10 = inlined_call_operand.hbm [shape: f32[128,128], index: 10, kind: input, shape index: {}]
  %s11 = inlined_call_operand.vmem [shape: f32[1,128], index: 11, kind: input, shape index: {}]
  %s12 = inlined_call_operand.vmem [shape: f32[128,8], index: 12, kind: input, shape index: {}]
  %s13 = inlined_call_operand.vmem [shape: f32[1,8], index: 13, kind: input, shape index: {}]
  %s14 = inlined_call_operand.hbm [shape: f32[2,1,8], index: 14, kind: output, shape index: {}]
  %s15 = sld [smem:[#allocation0]]
  $region90: #{tpu_custom_call.1} parent=0
    _
  %s17 = ssub.s32 1, %s15
  %s18 = scalar_select 0, %s17, %s15
  $region1: #{tpu_custom_call.1} parent=0
    #allocation3 [shape = 'u8[8192]{0}', space=vmem, size = 0x2000, scoped, tag = 'input window, operand 0, single buffered']
    #allocation4 [shape = 's32[1]{0}', space=sflag, size = 0x4, scoped, tag = 'scoped memory for tpu_custom_call.1']
    #allocation5 [shape = 's32[1]{0}', space=sflag, size = 0x4, scoped, tag = 'scoped memory for tpu_custom_call.1']
    #allocation6 [shape = 'u8[8192]{0}', space=vmem, size = 0x2000, scoped, tag = 'input window, operand 1, single buffered']
    #allocation7 [shape = 's32[1]{0}', space=sflag, size = 0x4, scoped, tag = 'scoped memory for tpu_custom_call.1']
    #allocation8 [shape = 'u8[8192]{0}', space=vmem, size = 0x2000, scoped, tag = 'input window, operand 2, single buffered']
    #allocation9 [shape = 'u8[16384]{0}', space=vmem, size = 0x4000, scoped, tag = 'input window, operand 4, single buffered']
    #allocation10 [shape = 's32[1]{0}', space=sflag, size = 0x4, scoped, tag = 'scoped memory for tpu_custom_call.1']
    #allocation11 [shape = 'u8[16384]{0}', space=vmem, size = 0x4000, scoped, tag = 'input window, operand 6, single buffered']
    #allocation12 [shape = 'u8[65536]{0}', space=vmem, size = 0x10000, scoped, tag = 'input window, operand 10, single buffered']
    #allocation13 [shape = 's32[1]{0}', space=sflag, size = 0x4, scoped, tag = 'scoped memory for tpu_custom_call.1']
    #allocation14 [shape = 'u8[1024]{0}', space=vmem, size = 0x400, scoped, tag = 'output window, operand 0, single buffered']
    %19 = vsyncpa [#allocation4], 0
    %20 = vsyncpa [#allocation7], 0
    %21 = vsyncpa [#allocation10], 0
    %22 = vsyncpa [#allocation13], 0
    %23 = vsyncpa [#allocation5], 0
    // Predicated region
    $region2: #{tpu_custom_call.1} parent=1 // pred_check
      _
    $region3: #{tpu_custom_call.1} parent=1 // pred_check_branch
      %25 = sbr.rel (0) target = $region5
    $region4: #{tpu_custom_call.1} parent=1 // pred_region
      %27 = vsyncadd [#allocation4], 0
      %s28 = sshll.u32 %s0, 4
      %s29 = int_to_ptr.hbm [resolvable:$true] %s28
      %s30 = sshll.u32 [#allocation3], 4
      %s31 = int_to_ptr.vmem [resolvable:$true] %s30
      %36 = dma.hbm_to_vmem [thread:$0]  %s29, 256, %s31, [#allocation4], 128, 128, 8
    $region5: #{tpu_custom_call.1} parent=1 // pred_fallthru
      _
    // Predicated region
    $region6: #{tpu_custom_call.1} parent=1 // pred_check
      _
    $region7: #{tpu_custom_call.1} parent=1 // pred_check_branch
      %38 = sbr.rel (0) target = $region9
    $region8: #{tpu_custom_call.1} parent=1 // pred_region
      %40 = vsyncadd [#allocation7], 0
      %s41 = sshll.u32 %s1, 4
      %s42 = int_to_ptr.hbm [resolvable:$true] %s41
      %s43 = sshll.u32 [#allocation6], 4
      %s44 = int_to_ptr.vmem [resolvable:$true] %s43
      %49 = dma.hbm_to_vmem [thread:$0]  %s42, 256, %s44, [#allocation7], 128, 128, 8
    $region9: #{tpu_custom_call.1} parent=1 // pred_fallthru
      _
    // Predicated region
    $region10: #{tpu_custom_call.1} parent=1 // pred_check
      _
    $region11: #{tpu_custom_call.1} parent=1 // pred_check_branch
      %51 = sbr.rel (0) target = $region13
    $region12: #{tpu_custom_call.1} parent=1 // pred_region
      %53 = vsyncadd [#allocation7], 0
      %s54 = sshll.u32 %s2, 4
      %s55 = int_to_ptr.hbm [resolvable:$true] %s54
      %s56 = sshll.u32 [#allocation8], 4
      %s57 = int_to_ptr.vmem [resolvable:$true] %s56
      %62 = dma.hbm_to_vmem [thread:$0]  %s55, 256, %s57, [#allocation7], 128, 128, 8
    $region13: #{tpu_custom_call.1} parent=1 // pred_fallthru
      _
    // Predicated region
    $region14: #{tpu_custom_call.1} parent=1 // pred_check
      _
    $region15: #{tpu_custom_call.1} parent=1 // pred_check_branch
      %64 = sbr.rel (0) target = $region17
    $region16: #{tpu_custom_call.1} parent=1 // pred_region
      _
    $region17: #{tpu_custom_call.1} parent=1 // pred_fallthru
      _
    // Predicated region
    $region18: #{tpu_custom_call.1} parent=1 // pred_check
      _
    $region19: #{tpu_custom_call.1} parent=1 // pred_check_branch
      %66 = sbr.rel (0) target = $region21
    $region20: #{tpu_custom_call.1} parent=1 // pred_region
      %68 = vsyncadd [#allocation10], 0
      %s69 = sshll.u32 %s4, 4
      %s70 = int_to_ptr.hbm [resolvable:$true] %s69
      %s71 = sshll.u32 [#allocation9], 4
      %s72 = int_to_ptr.vmem [resolvable:$true] %s71
      %77 = dma.hbm_to_vmem [thread:$0]  %s70, 512, %s72, [#allocation10], 128, 128, 8
    $region21: #{tpu_custom_call.1} parent=1 // pred_fallthru
      _
    // Predicated region
    $region22: #{tpu_custom_call.1} parent=1 // pred_check
      _
    $region23: #{tpu_custom_call.1} parent=1 // pred_check_branch
      %79 = sbr.rel (0) target = $region25
    $region24: #{tpu_custom_call.1} parent=1 // pred_region
      _
    $region25: #{tpu_custom_call.1} parent=1 // pred_fallthru
      _
    // Predicated region
    $region26: #{tpu_custom_call.1} parent=1 // pred_check
      _
    $region27: #{tpu_custom_call.1} parent=1 // pred_check_branch
      %81 = sbr.rel (0) target = $region29
    $region28: #{tpu_custom_call.1} parent=1 // pred_region
      %83 = vsyncadd [#allocation10], 0
      %s84 = sshll.u32 %s6, 4
      %s85 = int_to_ptr.hbm [resolvable:$true] %s84
      %s86 = sshll.u32 [#allocation11], 4
      %s87 = int_to_ptr.vmem [resolvable:$true] %s86
      %92 = dma.hbm_to_vmem [thread:$0]  %s85, 512, %s87, [#allocation10], 128, 128, 8
    $region29: #{tpu_custom_call.1} parent=1 // pred_fallthru
      _
    // Predicated region
    $region30: #{tpu_custom_call.1} parent=1 // pred_check
      _
    $region31: #{tpu_custom_call.1} parent=1 // pred_check_branch
      %94 = sbr.rel (0) target = $region33
    $region32: #{tpu_custom_call.1} parent=1 // pred_region
      _
    $region33: #{tpu_custom_call.1} parent=1 // pred_fallthru
      _
    // Predicated region
    $region34: #{tpu_custom_call.1} parent=1 // pred_check
      _
    $region35: #{tpu_custom_call.1} parent=1 // pred_check_branch
      %96 = sbr.rel (0) target = $region37
    $region36: #{tpu_custom_call.1} parent=1 // pred_region
      _
    $region37: #{tpu_custom_call.1} parent=1 // pred_fallthru
      _
    // Predicated region
    $region38: #{tpu_custom_call.1} parent=1 // pred_check
      _
    $region39: #{tpu_custom_call.1} parent=1 // pred_check_branch
      %98 = sbr.rel (0) target = $region41
    $region40: #{tpu_custom_call.1} parent=1 // pred_region
      _
    $region41: #{tpu_custom_call.1} parent=1 // pred_fallthru
      _
    // Predicated region
    $region42: #{tpu_custom_call.1} parent=1 // pred_check
      _
    $region43: #{tpu_custom_call.1} parent=1 // pred_check_branch
      %100 = sbr.rel (0) target = $region45
    $region44: #{tpu_custom_call.1} parent=1 // pred_region
      %102 = vsyncadd [#allocation13], 0
      %s103 = sshll.u32 %s10, 4
      %s104 = int_to_ptr.hbm [resolvable:$true] %s103
      %s105 = sshll.u32 [#allocation12], 4
      %s106 = int_to_ptr.vmem [resolvable:$true] %s105
      %111 = dma.hbm_to_vmem [thread:$0]  %s104, 2048, %s106, [#allocation13], 128, 128, 8
    $region45: #{tpu_custom_call.1} parent=1 // pred_fallthru
      _
    // Predicated region
    $region46: #{tpu_custom_call.1} parent=1 // pred_check
      _
    $region47: #{tpu_custom_call.1} parent=1 // pred_check_branch
      %113 = sbr.rel (0) target = $region49
    $region48: #{tpu_custom_call.1} parent=1 // pred_region
      _
    $region49: #{tpu_custom_call.1} parent=1 // pred_fallthru
      _
    // Predicated region
    $region50: #{tpu_custom_call.1} parent=1 // pred_check
      _
    $region51: #{tpu_custom_call.1} parent=1 // pred_check_branch
      %115 = sbr.rel (0) target = $region53
    $region52: #{tpu_custom_call.1} parent=1 // pred_region
      _
    $region53: #{tpu_custom_call.1} parent=1 // pred_fallthru
      _
    // Predicated region
    $region54: #{tpu_custom_call.1} parent=1 // pred_check
      _
    $region55: #{tpu_custom_call.1} parent=1 // pred_check_branch
      %117 = sbr.rel (0) target = $region57
    $region56: #{tpu_custom_call.1} parent=1 // pred_region
      _
    $region57: #{tpu_custom_call.1} parent=1 // pred_fallthru
      _
    // Predicated region
    $region58: #{tpu_custom_call.1} parent=1 // pred_check
      _
    $region59: #{tpu_custom_call.1} parent=1 // pred_check_branch
      %119 = sbr.rel (0) target = $region61
    $region60: #{tpu_custom_call.1} parent=1 // pred_region
      %121 = dma.done [#allocation4], 256
    $region61: #{tpu_custom_call.1} parent=1 // pred_fallthru
      _
    // Predicated region
    $region62: #{tpu_custom_call.1} parent=1 // pred_check
      _
    $region63: #{tpu_custom_call.1} parent=1 // pred_check_branch
      %123 = sbr.rel (0) target = $region65
    $region64: #{tpu_custom_call.1} parent=1 // pred_region
      %125 = dma.done [#allocation7], 256
    $region65: #{tpu_custom_call.1} parent=1 // pred_fallthru
      _
    // Predicated region
    $region66: #{tpu_custom_call.1} parent=1 // pred_check
      _
    $region67: #{tpu_custom_call.1} parent=1 // pred_check_branch
      %127 = sbr.rel (0) target = $region69
    $region68: #{tpu_custom_call.1} parent=1 // pred_region
      %129 = dma.done [#allocation7], 256
    $region69: #{tpu_custom_call.1} parent=1 // pred_fallthru
      _
    // Predicated region
    $region70: #{tpu_custom_call.1} parent=1 // pred_check
      _
    $region71: #{tpu_custom_call.1} parent=1 // pred_check_branch
      %131 = sbr.rel (0) target = $region73
    $region72: #{tpu_custom_call.1} parent=1 // pred_region
      %133 = dma.done [#allocation10], 512
    $region73: #{tpu_custom_call.1} parent=1 // pred_fallthru
      _
    // Predicated region
    $region74: #{tpu_custom_call.1} parent=1 // pred_check
      _
    $region75: #{tpu_custom_call.1} parent=1 // pred_check_branch
      %135 = sbr.rel (0) target = $region77
    $region76: #{tpu_custom_call.1} parent=1 // pred_region
      %137 = dma.done [#allocation10], 512
    $region77: #{tpu_custom_call.1} parent=1 // pred_fallthru
      _
    // Predicated region
    $region78: #{tpu_custom_call.1} parent=1 // pred_check
      _
    $region79: #{tpu_custom_call.1} parent=1 // pred_check_branch
      %139 = sbr.rel (0) target = $region81
    $region80: #{tpu_custom_call.1} parent=1 // pred_region
      %141 = dma.done [#allocation13], 2048
    $region81: #{tpu_custom_call.1} parent=1 // pred_fallthru
      _
    %v143 = vld [vmem:[#allocation8] sm:$0xff]
    %v144 = vld [vmem:[#allocation8 + $0x8] sm:$0xff]
    %v145 = vpack.c.bf16 %v144, %v143
    %v146 = vld [vmem:[#allocation9] sm:$0xff]
    %v147 = vld [vmem:[#allocation9 + $0x8] sm:$0xff]
    %v148 = vld [vmem:[#allocation9 + $0x10] sm:$0xff]
    %v149 = vld [vmem:[#allocation9 + $0x18] sm:$0xff]
    %v150 = vpack.c.bf16 %v147, %v146
    %v151 = vpack.c.bf16 %v149, %v148
    %v152 = vld [vmem:[#allocation11] sm:$0xff]
    %v153 = vld [vmem:[#allocation11 + $0x8] sm:$0xff]
    %v154 = vld [vmem:[#allocation11 + $0x10] sm:$0xff]
    %v155 = vld [vmem:[#allocation11 + $0x18] sm:$0xff]
    %v156 = vpack.c.bf16 %v153, %v152
    %v157 = vpack.c.bf16 %v155, %v154
    %v158 = vld [vmem:[%s3] sm:$0x1]
    %v159 = vld [vmem:[%s5] sm:$0x1]
    %v161 = vperm.slane %v159, 0
    %v163 = vld [vmem:[%s7] sm:$0x1]
    %v165 = vperm.slane %v163, 0
    %v167 = vld [vmem:[#allocation3] sm:$0xff]
    %v168 = vld [vmem:[#allocation3 + $0x8] sm:$0xff]
    %v169 = vpack.c.bf16 %v168, %v167
    %v170 = vld [vmem:[#allocation6] sm:$0xff]
    %v171 = vld [vmem:[#allocation6 + $0x8] sm:$0xff]
    %v173 = vperm.slane %v158, 0
    %vm175 = vcmask 130048
    %v177 = vsel %vm175, %v169, 0
    %179 = vmatpush.bf16.msra.mxu0 0
    %180 = vmatpush.bf16.msra.mxu0 0
    %181 = vmatpush.bf16.msra.mxu0 0
    %182 = vmatpush.bf16.msra.mxu0 0
    %183 = vmatpush.bf16.msra.mxu0 0
    %184 = vmatpush.bf16.msra.mxu0 0
    %185 = vmatpush.bf16.msra.mxu0 0
    %186 = vmatpush.bf16.msra.mxu0 %v145
    %187 = vmatmul.bf16.gmra.mxu0 %v177
    %v188 = vpop.f32.mrf.mxu0
    %v189 = vadd.f32 %v173, %v188
    %v190 = vpop.f32.mrf.mxu0
    %v191 = vadd.f32 %v173, %v190
    %192 = vdwg.mxu0
    %v193 = vxor.u32 %v189, 2147483648
    %v194 = vxor.u32 %v191, 2147483648
    %v195 = vmul.f32 %v193, 1.442695
    %v196 = vpow.pop %v195
    %v197 = vmul.f32 %v194, 1.442695
    %v198 = vpow.pop %v197
    %v199 = vadd.f32 %v196, 1.0
    %v200 = vadd.f32 %v198, 1.0
    %v201 = vrcp.pop %v199
    %v202 = vmul.f32 %v199, %v201
    %v203 = vsub.f32 1.0, %v202
    %v204 = vmul.f32 %v201, %v203
    %v205 = vadd.f32 %v201, %v204
    %vm206 = vweird.f32 %v199
    %vm207 = vweird.f32 %v201
    %vm208 = vmor %vm206, %vm207
    %v209 = vsel %vm208, %v201, %v205
    %v210 = vand.u32 2147483647, %v199
    %vm211 = vcmp.eq.f32.partialorder %v210, 8.507059e+37
    %v212 = vand.u32 %v199, 2147483648
    %v213 = vor.u32 1.1754944e-38, %v212
    %v214 = vsel %vm211, %v213, %v209
    %v215 = vmul.f32 1.0, %v214
    %v216 = vrcp.pop %v200
    %v217 = vmul.f32 %v200, %v216
    %v218 = vsub.f32 1.0, %v217
    %v219 = vmul.f32 %v216, %v218
    %v220 = vadd.f32 %v216, %v219
    %vm221 = vweird.f32 %v200
    %vm222 = vweird.f32 %v216
    %vm223 = vmor %vm221, %vm222
    %v224 = vsel %vm223, %v216, %v220
    %v225 = vand.u32 2147483647, %v200
    %vm226 = vcmp.eq.f32.partialorder %v225, 8.507059e+37
    %v227 = vand.u32 %v200, 2147483648
    %v228 = vor.u32 1.1754944e-38, %v227
    %v229 = vsel %vm226, %v228, %v224
    %v230 = vmul.f32 1.0, %v229
    %v231 = vmul.f32 %v189, %v215
    %v232 = vmul.f32 %v191, %v230
    %vm233 = vcmp.ne.f32.partialorder %v170, 0.0
    %vm234 = vcmp.ne.f32.partialorder %v171, 0.0
    %v235 = vsel %vm233, 1, 0
    %v236 = vsel %vm234, 1, 0
    %v237 = vcvt.s32.f32 %v235
    %v238 = vcvt.s32.f32 %v236
    %vm239 = vcmask 64512
    %v240 = vsel %vm239, %v237, 0.0
    %v241 = vsel %vm239, -1e+08, -3e+38
    %v242 = vsel %vm239, 1.0, 0.0
    %244 = vrot.lane.b32.xlu0 %v238, 8
    %v245 = vpop.permute.xlu0 %244
    %v247 = vsel %vm239, 0.0, %v245
    %v248 = vsel %vm239, -3e+38, -1e+08
    %v249 = vsel %vm239, 0.0, 1.0
    %vm250 = vcmp.ne.f32.partialorder %v240, 0.0
    %vm251 = vcmp.ne.f32.partialorder %v247, 0.0
    %v253 = vrot.slane %v249, 7
    %vm255 = vcmask 1040384
    %v256 = vsel %vm255, %v242, %v253
    %v257 = vpack.c.bf16 %v256, %v256
    %v258 = vpack.c.bf16 %v232, %v231
    %vm259 = vcmask 261120
    %v261 = vsel %vm259, %v258, 0
    %263 = vmatpush.bf16.msra.mxu0 0
    %264 = vmatpush.bf16.msra.mxu0 0
    %265 = vmatpush.bf16.msra.mxu0 0
    %266 = vmatpush.bf16.msra.mxu0 0
    %267 = vmatpush.bf16.msra.mxu0 0
    %268 = vmatpush.bf16.msra.mxu0 0
    %269 = vmatpush.bf16.msra.mxu0 %v157
    %270 = vmatpush.bf16.msra.mxu0 %v156
    %271 = vmatmul.bf16.gmra.mxu0 %v261
    %v272 = vpop.f32.mrf.mxu0
    %v273 = vadd.f32 %v165, %v272
    %v274 = vpop.f32.mrf.mxu0
    %v275 = vadd.f32 %v165, %v274
    %276 = vdwg.mxu0
    %v277 = vxor.u32 %v273, 2147483648
    %v278 = vxor.u32 %v275, 2147483648
    %v279 = vmul.f32 %v277, 1.442695
    %v280 = vpow.pop %v279
    %v281 = vmul.f32 %v278, 1.442695
    %v282 = vpow.pop %v281
    %v283 = vadd.f32 %v280, 1.0
    %v284 = vadd.f32 %v282, 1.0
    %v285 = vrcp.pop %v283
    %v286 = vmul.f32 %v283, %v285
    %v287 = vsub.f32 1.0, %v286
    %v288 = vmul.f32 %v285, %v287
    %v289 = vadd.f32 %v285, %v288
    %vm290 = vweird.f32 %v283
    %vm291 = vweird.f32 %v285
    %vm292 = vmor %vm290, %vm291
    %v293 = vsel %vm292, %v285, %v289
    %v294 = vand.u32 2147483647, %v283
    %vm295 = vcmp.eq.f32.partialorder %v294, 8.507059e+37
    %v296 = vand.u32 %v283, 2147483648
    %v297 = vor.u32 1.1754944e-38, %v296
    %v298 = vsel %vm295, %v297, %v293
    %v299 = vmul.f32 1.0, %v298
    %v300 = vrcp.pop %v284
    %v301 = vmul.f32 %v284, %v300
    %v302 = vsub.f32 1.0, %v301
    %v303 = vmul.f32 %v300, %v302
    %v304 = vadd.f32 %v300, %v303
    %vm305 = vweird.f32 %v284
    %vm306 = vweird.f32 %v300
    %vm307 = vmor %vm305, %vm306
    %v308 = vsel %vm307, %v300, %v304
    %v309 = vand.u32 2147483647, %v284
    %vm310 = vcmp.eq.f32.partialorder %v309, 8.507059e+37
    %v311 = vand.u32 %v284, 2147483648
    %v312 = vor.u32 1.1754944e-38, %v311
    %v313 = vsel %vm310, %v312, %v308
    %v314 = vmul.f32 1.0, %v313
    %v315 = vmul.f32 %v273, %v299
    %v316 = vmul.f32 %v275, %v314
    %v317 = vpack.c.bf16 %v316, %v315
    %v319 = vsel %vm175, %v257, 0
    %321 = vmatpush.bf16.msra.mxu0 0
    %322 = vmatpush.bf16.msra.mxu0 0
    %323 = vmatpush.bf16.msra.mxu0 0
    %324 = vmatpush.bf16.msra.mxu0 0
    %325 = vmatpush.bf16.msra.mxu0 0
    %326 = vmatpush.bf16.msra.mxu0 0
    %327 = vmatpush.bf16.msra.mxu0 0
    %328 = vmatpush.bf16.msra.mxu0 %v317
    %329 = vmatmul.bf16.gmra.mxu0 %v319
    %v330 = vpop.f32.mrf.mxu0
    %v331 = vadd.f32 0.0, %v330
    %v332 = vpop.f32.mrf.mxu0
    %333 = vdwg.mxu0
    %vm334 = vcmask 254976
    %335 = vst.msk [vmem:[#allocation2] sm:$0x3] %vm334, %v331
    %336 = vmatpush.bf16.msra.mxu0 0
    %337 = vmatpush.bf16.msra.mxu0 0
    %338 = vmatpush.bf16.msra.mxu0 0
    %339 = vmatpush.bf16.msra.mxu0 0
    %340 = vmatpush.bf16.msra.mxu0 0
    %341 = vmatpush.bf16.msra.mxu0 0
    %342 = vmatpush.bf16.msra.mxu0 %v151
    %343 = vmatpush.bf16.msra.mxu0 %v150
    %344 = vmatmul.bf16.gmra.mxu0 %v261
    %v345 = vpop.f32.mrf.mxu0
    %v346 = vadd.f32 %v161, %v345
    %v347 = vpop.f32.mrf.mxu0
    %v348 = vadd.f32 %v161, %v347
    %349 = vdwg.mxu0
    %v350 = vpack.c.bf16 %v348, %v346
    %v352 = vsel %vm259, %v350, 0
    %354 = vmatpush.bf16.xpose.msra.mxu0 0
    %355 = vmatpush.bf16.xpose.msra.mxu0 0
    %356 = vmatpush.bf16.xpose.msra.mxu0 0
    %357 = vmatpush.bf16.xpose.msra.mxu0 0
    %358 = vmatpush.bf16.xpose.msra.mxu0 0
    %359 = vmatpush.bf16.xpose.msra.mxu0 0
    %360 = vmatpush.bf16.xpose.msra.mxu0 0
    %361 = vmatpush.bf16.xpose.msra.mxu0 %v261
    %362 = vmatmul.bf16.gmra.mxu0 %v352
    %v363 = vpop.f32.mrf.mxu0
    %v364 = vadd.f32 0.0, %v363
    %v365 = vpop.f32.mrf.mxu0
    %v366 = vadd.f32 0.0, %v365
    %367 = vdwg.mxu0
    %v368 = vsel %vm250, %v364, %v241
    %v369 = vsel %vm251, %v366, %v248
    %v370 = vsel %vm175, %v368, -inf
    %v371 = vsel %vm175, %v369, -inf
    %v372 = vmax.f32 %v370, %v371
    %v373 = vrot.slane %v372, 4
    %v374 = vmax.f32 %v372, %v373
    %v375 = vrot.slane %v374, 2
    %v376 = vmax.f32 %v374, %v375
    %v377 = vrot.slane %v376, 1
    %v378 = vmax.f32 %v376, %v377
    %v379 = vsub.f32 %v368, %v378
    %v380 = vsub.f32 %v369, %v378
    %v381 = vmul.f32 %v379, 1.442695
    %v382 = vpow.pop %v381
    %v383 = vmul.f32 %v380, 1.442695
    %v384 = vpow.pop %v383
    %v385 = vsel %vm175, %v382, 0.0
    %v386 = vsel %vm175, %v384, 0.0
    %v387 = vadd.f32 %v385, %v386
    %v388 = vrot.slane %v387, 4
    %v389 = vadd.f32 %v387, %v388
    %v390 = vrot.slane %v389, 2
    %v391 = vadd.f32 %v389, %v390
    %v392 = vrot.slane %v391, 1
    %v393 = vadd.f32 %v391, %v392
    %v394 = vrcp.pop %v393
    %v395 = vmul.f32 %v382, %v394
    %v396 = vmul.f32 %v384, %v394
    %v397 = vpack.c.bf16 %v396, %v395
    %v399 = vsel %vm175, %v397, 0
    %401 = vmatpush.bf16.msra.mxu0 0
    %402 = vmatpush.bf16.msra.mxu0 0
    %403 = vmatpush.bf16.msra.mxu0 0
    %404 = vmatpush.bf16.msra.mxu0 0
    %405 = vmatpush.bf16.msra.mxu0 0
    %406 = vmatpush.bf16.msra.mxu0 0
    %407 = vmatpush.bf16.msra.mxu0 0
    %408 = vmatpush.bf16.msra.mxu0 %v258
    %409 = vmatmul.bf16.gmra.mxu0 %v399
    %v410 = vpop.f32.mrf.mxu0
    %v411 = vadd.f32 0.0, %v410
    %v412 = vpop.f32.mrf.mxu0
    %v413 = vadd.f32 0.0, %v412
    %414 = vdwg.mxu0
    %v415 = vadd.f32 %v231, %v411
    %v416 = vadd.f32 %v232, %v413
    %v417 = vmul.f32 %v415, %v231
    %v418 = vmul.f32 %v416, %v232
    %v419 = vpack.c.bf16 %v418, %v417
    %v421 = vsel %vm259, %v419, 0
    %423 = vmatpush.bf16.msra.mxu0 0
    %424 = vmatpush.bf16.msra.mxu0 0
    %425 = vmatpush.bf16.msra.mxu0 0
    %426 = vmatpush.bf16.msra.mxu0 0
    %427 = vmatpush.bf16.msra.mxu0 0
    %428 = vmatpush.bf16.msra.mxu0 0
    %429 = vmatpush.bf16.msra.mxu0 %v157
    %430 = vmatpush.bf16.msra.mxu0 %v156
    %431 = vmatmul.bf16.gmra.mxu0 %v421
    %v432 = vpop.f32.mrf.mxu0
    %v433 = vadd.f32 %v165, %v432
    %v434 = vpop.f32.mrf.mxu0
    %v435 = vadd.f32 %v165, %v434
    %436 = vdwg.mxu0
    %v437 = vxor.u32 %v433, 2147483648
    %v438 = vxor.u32 %v435, 2147483648
    %v439 = vmul.f32 %v437, 1.442695
    %v440 = vpow.pop %v439
    %v441 = vmul.f32 %v438, 1.442695
    %v442 = vpow.pop %v441
    %v443 = vadd.f32 %v440, 1.0
    %v444 = vadd.f32 %v442, 1.0
    %v445 = vrcp.pop %v443
    %v446 = vmul.f32 %v443, %v445
    %v447 = vsub.f32 1.0, %v446
    %v448 = vmul.f32 %v445, %v447
    %v449 = vadd.f32 %v445, %v448
    %vm450 = vweird.f32 %v443
    %vm451 = vweird.f32 %v445
    %vm452 = vmor %vm450, %vm451
    %v453 = vsel %vm452, %v445, %v449
    %v454 = vand.u32 2147483647, %v443
    %vm455 = vcmp.eq.f32.partialorder %v454, 8.507059e+37
    %v456 = vand.u32 %v443, 2147483648
    %v457 = vor.u32 1.1754944e-38, %v456
    %v458 = vsel %vm455, %v457, %v453
    %v459 = vmul.f32 1.0, %v458
    %v460 = vrcp.pop %v444
    %v461 = vmul.f32 %v444, %v460
    %v462 = vsub.f32 1.0, %v461
    %v463 = vmul.f32 %v460, %v462
    %v464 = vadd.f32 %v460, %v463
    %vm465 = vweird.f32 %v444
    %vm466 = vweird.f32 %v460
    %vm467 = vmor %vm465, %vm466
    %v468 = vsel %vm467, %v460, %v464
    %v469 = vand.u32 2147483647, %v444
    %vm470 = vcmp.eq.f32.partialorder %v469, 8.507059e+37
    %v471 = vand.u32 %v444, 2147483648
    %v472 = vor.u32 1.1754944e-38, %v471
    %v473 = vsel %vm470, %v472, %v468
    %v474 = vmul.f32 1.0, %v473
    %v475 = vmul.f32 %v433, %v459
    %v476 = vmul.f32 %v435, %v474
    %v477 = vpack.c.bf16 %v476, %v475
    %478 = vmatpush.bf16.msra.mxu0 0
    %479 = vmatpush.bf16.msra.mxu0 0
    %480 = vmatpush.bf16.msra.mxu0 0
    %481 = vmatpush.bf16.msra.mxu0 0
    %482 = vmatpush.bf16.msra.mxu0 0
    %483 = vmatpush.bf16.msra.mxu0 0
    %484 = vmatpush.bf16.msra.mxu0 0
    %485 = vmatpush.bf16.msra.mxu0 %v477
    %486 = vmatmul.bf16.gmra.mxu0 %v319
    %v487 = vpop.f32.mrf.mxu0
    %v488 = vadd.f32 0.0, %v487
    %v489 = vpop.f32.mrf.mxu0
    %490 = vdwg.mxu0
    %492 = vrot.lane.b32.xlu0 %v488, 32
    %v493 = vpop.permute.xlu0 %492
    %vm495 = vcmask 517376
    %496 = vst.msk [vmem:[#allocation2] sm:$0x3] %vm495, %v493
    %497 = vmatpush.bf16.msra.mxu0 0
    %498 = vmatpush.bf16.msra.mxu0 0
    %499 = vmatpush.bf16.msra.mxu0 0
    %500 = vmatpush.bf16.msra.mxu0 0
    %501 = vmatpush.bf16.msra.mxu0 0
    %502 = vmatpush.bf16.msra.mxu0 0
    %503 = vmatpush.bf16.msra.mxu0 %v151
    %504 = vmatpush.bf16.msra.mxu0 %v150
    %505 = vmatmul.bf16.gmra.mxu0 %v421
    %v506 = vpop.f32.mrf.mxu0
    %v507 = vadd.f32 %v161, %v506
    %v508 = vpop.f32.mrf.mxu0
    %v509 = vadd.f32 %v161, %v508
    %510 = vdwg.mxu0
    %v511 = vpack.c.bf16 %v509, %v507
    %v513 = vsel %vm259, %v511, 0
    %515 = vmatpush.bf16.xpose.msra.mxu0 0
    %516 = vmatpush.bf16.xpose.msra.mxu0 0
    %517 = vmatpush.bf16.xpose.msra.mxu0 0
    %518 = vmatpush.bf16.xpose.msra.mxu0 0
    %519 = vmatpush.bf16.xpose.msra.mxu0 0
    %520 = vmatpush.bf16.xpose.msra.mxu0 0
    %521 = vmatpush.bf16.xpose.msra.mxu0 0
    %522 = vmatpush.bf16.xpose.msra.mxu0 %v421
    %523 = vmatmul.bf16.gmra.mxu0 %v513
    %v524 = vpop.f32.mrf.mxu0
    %v525 = vadd.f32 0.0, %v524
    %v526 = vpop.f32.mrf.mxu0
    %v527 = vadd.f32 0.0, %v526
    %528 = vdwg.mxu0
    %v529 = vsel %vm250, %v525, %v241
    %v530 = vsel %vm251, %v527, %v248
    %v531 = vsel %vm175, %v529, -inf
    %v532 = vsel %vm175, %v530, -inf
    %v533 = vmax.f32 %v531, %v532
    %v534 = vrot.slane %v533, 4
    %v535 = vmax.f32 %v533, %v534
    %v536 = vrot.slane %v535, 2
    %v537 = vmax.f32 %v535, %v536
    %v538 = vrot.slane %v537, 1
    %v539 = vmax.f32 %v537, %v538
    %v540 = vsub.f32 %v529, %v539
    %v541 = vsub.f32 %v530, %v539
    %v542 = vmul.f32 %v540, 1.442695
    %v543 = vpow.pop %v542
    %v544 = vmul.f32 %v541, 1.442695
    %v545 = vpow.pop %v544
    %v546 = vsel %vm175, %v543, 0.0
    %v547 = vsel %vm175, %v545, 0.0
    %v548 = vadd.f32 %v546, %v547
    %v549 = vrot.slane %v548, 4
    %v550 = vadd.f32 %v548, %v549
    %v551 = vrot.slane %v550, 2
    %v552 = vadd.f32 %v550, %v551
    %v553 = vrot.slane %v552, 1
    %v554 = vadd.f32 %v552, %v553
    %v555 = vrcp.pop %v554
    %v556 = vmul.f32 %v543, %v555
    %v557 = vmul.f32 %v545, %v555
    %v558 = vpack.c.bf16 %v557, %v556
    %v560 = vsel %vm175, %v558, 0
    %562 = vmatpush.bf16.msra.mxu0 0
    %563 = vmatpush.bf16.msra.mxu0 0
    %564 = vmatpush.bf16.msra.mxu0 0
    %565 = vmatpush.bf16.msra.mxu0 0
    %566 = vmatpush.bf16.msra.mxu0 0
    %567 = vmatpush.bf16.msra.mxu0 0
    %568 = vmatpush.bf16.msra.mxu0 0
    %569 = vmatpush.bf16.msra.mxu0 %v419
    %570 = vmatmul.bf16.gmra.mxu0 %v560
    %v571 = vpop.f32.mrf.mxu0
    %v572 = vadd.f32 0.0, %v571
    %v573 = vpop.f32.mrf.mxu0
    %v574 = vadd.f32 0.0, %v573
    %575 = vdwg.mxu0
    %v576 = vadd.f32 %v417, %v572
    %v577 = vadd.f32 %v418, %v574
    %v578 = vmul.f32 %v576, %v231
    %v579 = vmul.f32 %v577, %v232
    %v580 = vpack.c.bf16 %v579, %v578
    %v582 = vsel %vm259, %v580, 0
    %584 = vmatpush.bf16.msra.mxu0 0
    %585 = vmatpush.bf16.msra.mxu0 0
    %586 = vmatpush.bf16.msra.mxu0 0
    %587 = vmatpush.bf16.msra.mxu0 0
    %588 = vmatpush.bf16.msra.mxu0 0
    %589 = vmatpush.bf16.msra.mxu0 0
    %590 = vmatpush.bf16.msra.mxu0 %v157
    %591 = vmatpush.bf16.msra.mxu0 %v156
    %592 = vmatmul.bf16.gmra.mxu0 %v582
    %v593 = vpop.f32.mrf.mxu0
    %v594 = vadd.f32 %v165, %v593
    %v595 = vpop.f32.mrf.mxu0
    %v596 = vadd.f32 %v165, %v595
    %597 = vdwg.mxu0
    %v598 = vxor.u32 %v594, 2147483648
    %v599 = vxor.u32 %v596, 2147483648
    %v600 = vmul.f32 %v598, 1.442695
    %v601 = vpow.pop %v600
    %v602 = vmul.f32 %v599, 1.442695
    %v603 = vpow.pop %v602
    %v604 = vadd.f32 %v601, 1.0
    %v605 = vadd.f32 %v603, 1.0
    %v606 = vrcp.pop %v604
    %v607 = vmul.f32 %v604, %v606
    %v608 = vsub.f32 1.0, %v607
    %v609 = vmul.f32 %v606, %v608
    %v610 = vadd.f32 %v606, %v609
    %vm611 = vweird.f32 %v604
    %vm612 = vweird.f32 %v606
    %vm613 = vmor %vm611, %vm612
    %v614 = vsel %vm613, %v606, %v610
    %v615 = vand.u32 2147483647, %v604
    %vm616 = vcmp.eq.f32.partialorder %v615, 8.507059e+37
    %v617 = vand.u32 %v604, 2147483648
    %v618 = vor.u32 1.1754944e-38, %v617
    %v619 = vsel %vm616, %v618, %v614
    %v620 = vmul.f32 1.0, %v619
    %v621 = vrcp.pop %v605
    %v622 = vmul.f32 %v605, %v621
    %v623 = vsub.f32 1.0, %v622
    %v624 = vmul.f32 %v621, %v623
    %v625 = vadd.f32 %v621, %v624
    %vm626 = vweird.f32 %v605
    %vm627 = vweird.f32 %v621
    %vm628 = vmor %vm626, %vm627
    %v629 = vsel %vm628, %v621, %v625
    %v630 = vand.u32 2147483647, %v605
    %vm631 = vcmp.eq.f32.partialorder %v630, 8.507059e+37
    %v632 = vand.u32 %v605, 2147483648
    %v633 = vor.u32 1.1754944e-38, %v632
    %v634 = vsel %vm631, %v633, %v629
    %v635 = vmul.f32 1.0, %v634
    %v636 = vmul.f32 %v594, %v620
    %v637 = vmul.f32 %v596, %v635
    %v638 = vpack.c.bf16 %v637, %v636
    %639 = vmatpush.bf16.msra.mxu0 0
    %640 = vmatpush.bf16.msra.mxu0 0
    %641 = vmatpush.bf16.msra.mxu0 0
    %642 = vmatpush.bf16.msra.mxu0 0
    %643 = vmatpush.bf16.msra.mxu0 0
    %644 = vmatpush.bf16.msra.mxu0 0
    %645 = vmatpush.bf16.msra.mxu0 0
    %646 = vmatpush.bf16.msra.mxu0 %v638
    %647 = vmatmul.bf16.gmra.mxu0 %v319
    %v648 = vpop.f32.mrf.mxu0
    %v649 = vadd.f32 0.0, %v648
    %v650 = vpop.f32.mrf.mxu0
    %651 = vdwg.mxu0
    %653 = vrot.lane.b32.xlu0 %v649, 64
    %v654 = vpop.permute.xlu0 %653
    %vm656 = vcmask 779776
    %657 = vst.msk [vmem:[#allocation2] sm:$0x3] %vm656, %v654
    %658 = vmatpush.bf16.msra.mxu0 0
    %659 = vmatpush.bf16.msra.mxu0 0
    %660 = vmatpush.bf16.msra.mxu0 0
    %661 = vmatpush.bf16.msra.mxu0 0
    %662 = vmatpush.bf16.msra.mxu0 0
    %663 = vmatpush.bf16.msra.mxu0 0
    %664 = vmatpush.bf16.msra.mxu0 %v151
    %665 = vmatpush.bf16.msra.mxu0 %v150
    %666 = vmatmul.bf16.gmra.mxu0 %v582
    %v667 = vpop.f32.mrf.mxu0
    %v668 = vadd.f32 %v161, %v667
    %v669 = vpop.f32.mrf.mxu0
    %v670 = vadd.f32 %v161, %v669
    %671 = vdwg.mxu0
    %v672 = vpack.c.bf16 %v670, %v668
    %v674 = vsel %vm259, %v672, 0
    %676 = vmatpush.bf16.xpose.msra.mxu0 0
    %677 = vmatpush.bf16.xpose.msra.mxu0 0
    %678 = vmatpush.bf16.xpose.msra.mxu0 0
    %679 = vmatpush.bf16.xpose.msra.mxu0 0
    %680 = vmatpush.bf16.xpose.msra.mxu0 0
    %681 = vmatpush.bf16.xpose.msra.mxu0 0
    %682 = vmatpush.bf16.xpose.msra.mxu0 0
    %683 = vmatpush.bf16.xpose.msra.mxu0 %v582
    %684 = vmatmul.bf16.gmra.mxu0 %v674
    %v685 = vpop.f32.mrf.mxu0
    %v686 = vadd.f32 0.0, %v685
    %v687 = vpop.f32.mrf.mxu0
    %v688 = vadd.f32 0.0, %v687
    %689 = vdwg.mxu0
    %v690 = vsel %vm250, %v686, %v241
    %v691 = vsel %vm251, %v688, %v248
    %v692 = vsel %vm175, %v690, -inf
    %v693 = vsel %vm175, %v691, -inf
    %v694 = vmax.f32 %v692, %v693
    %v695 = vrot.slane %v694, 4
    %v696 = vmax.f32 %v694, %v695
    %v697 = vrot.slane %v696, 2
    %v698 = vmax.f32 %v696, %v697
    %v699 = vrot.slane %v698, 1
    %v700 = vmax.f32 %v698, %v699
    %v701 = vsub.f32 %v690, %v700
    %v702 = vsub.f32 %v691, %v700
    %v703 = vmul.f32 %v701, 1.442695
    %v704 = vpow.pop %v703
    %v705 = vmul.f32 %v702, 1.442695
    %v706 = vpow.pop %v705
    %v707 = vsel %vm175, %v704, 0.0
    %v708 = vsel %vm175, %v706, 0.0
    %v709 = vadd.f32 %v707, %v708
    %v710 = vrot.slane %v709, 4
    %v711 = vadd.f32 %v709, %v710
    %v712 = vrot.slane %v711, 2
    %v713 = vadd.f32 %v711, %v712
    %v714 = vrot.slane %v713, 1
    %v715 = vadd.f32 %v713, %v714
    %v716 = vrcp.pop %v715
    %v717 = vmul.f32 %v704, %v716
    %v718 = vmul.f32 %v706, %v716
    %v719 = vpack.c.bf16 %v718, %v717
    %v721 = vsel %vm175, %v719, 0
    %723 = vmatpush.bf16.msra.mxu0 0
    %724 = vmatpush.bf16.msra.mxu0 0
    %725 = vmatpush.bf16.msra.mxu0 0
    %726 = vmatpush.bf16.msra.mxu0 0
    %727 = vmatpush.bf16.msra.mxu0 0
    %728 = vmatpush.bf16.msra.mxu0 0
    %729 = vmatpush.bf16.msra.mxu0 0
    %730 = vmatpush.bf16.msra.mxu0 %v580
    %731 = vmatmul.bf16.gmra.mxu0 %v721
    %v732 = vpop.f32.mrf.mxu0
    %v733 = vadd.f32 0.0, %v732
    %v734 = vpop.f32.mrf.mxu0
    %v735 = vadd.f32 0.0, %v734
    %736 = vdwg.mxu0
    %v737 = vadd.f32 %v578, %v733
    %v738 = vadd.f32 %v579, %v735
    %v739 = vmul.f32 %v737, %v231
    %v740 = vmul.f32 %v738, %v232
    %v741 = vpack.c.bf16 %v740, %v739
    %v743 = vsel %vm259, %v741, 0
    %745 = vmatpush.bf16.msra.mxu0 0
    %746 = vmatpush.bf16.msra.mxu0 0
    %747 = vmatpush.bf16.msra.mxu0 0
    %748 = vmatpush.bf16.msra.mxu0 0
    %749 = vmatpush.bf16.msra.mxu0 0
    %750 = vmatpush.bf16.msra.mxu0 0
    %751 = vmatpush.bf16.msra.mxu0 %v157
    %752 = vmatpush.bf16.msra.mxu0 %v156
    %753 = vmatmul.bf16.gmra.mxu0 %v743
    %v754 = vpop.f32.mrf.mxu0
    %v755 = vadd.f32 %v165, %v754
    %v756 = vpop.f32.mrf.mxu0
    %v757 = vadd.f32 %v165, %v756
    %758 = vdwg.mxu0
    %v759 = vxor.u32 %v755, 2147483648
    %v760 = vxor.u32 %v757, 2147483648
    %v761 = vmul.f32 %v759, 1.442695
    %v762 = vpow.pop %v761
    %v763 = vmul.f32 %v760, 1.442695
    %v764 = vpow.pop %v763
    %v765 = vadd.f32 %v762, 1.0
    %v766 = vadd.f32 %v764, 1.0
    %v767 = vrcp.pop %v765
    %v768 = vmul.f32 %v765, %v767
    %v769 = vsub.f32 1.0, %v768
    %v770 = vmul.f32 %v767, %v769
    %v771 = vadd.f32 %v767, %v770
    %vm772 = vweird.f32 %v765
    %vm773 = vweird.f32 %v767
    %vm774 = vmor %vm772, %vm773
    %v775 = vsel %vm774, %v767, %v771
    %v776 = vand.u32 2147483647, %v765
    %vm777 = vcmp.eq.f32.partialorder %v776, 8.507059e+37
    %v778 = vand.u32 %v765, 2147483648
    %v779 = vor.u32 1.1754944e-38, %v778
    %v780 = vsel %vm777, %v779, %v775
    %v781 = vmul.f32 1.0, %v780
    %v782 = vrcp.pop %v766
    %v783 = vmul.f32 %v766, %v782
    %v784 = vsub.f32 1.0, %v783
    %v785 = vmul.f32 %v782, %v784
    %v786 = vadd.f32 %v782, %v785
    %vm787 = vweird.f32 %v766
    %vm788 = vweird.f32 %v782
    %vm789 = vmor %vm787, %vm788
    %v790 = vsel %vm789, %v782, %v786
    %v791 = vand.u32 2147483647, %v766
    %vm792 = vcmp.eq.f32.partialorder %v791, 8.507059e+37
    %v793 = vand.u32 %v766, 2147483648
    %v794 = vor.u32 1.1754944e-38, %v793
    %v795 = vsel %vm792, %v794, %v790
    %v796 = vmul.f32 1.0, %v795
    %v797 = vmul.f32 %v755, %v781
    %v798 = vmul.f32 %v757, %v796
    %v799 = vpack.c.bf16 %v798, %v797
    %800 = vmatpush.bf16.msra.mxu0 0
    %801 = vmatpush.bf16.msra.mxu0 0
    %802 = vmatpush.bf16.msra.mxu0 0
    %803 = vmatpush.bf16.msra.mxu0 0
    %804 = vmatpush.bf16.msra.mxu0 0
    %805 = vmatpush.bf16.msra.mxu0 0
    %806 = vmatpush.bf16.msra.mxu0 0
    %807 = vmatpush.bf16.msra.mxu0 %v799
    %808 = vmatmul.bf16.gmra.mxu0 %v319
    %v809 = vpop.f32.mrf.mxu0
    %v810 = vadd.f32 0.0, %v809
    %v811 = vpop.f32.mrf.mxu0
    %812 = vdwg.mxu0
    %814 = vrot.lane.b32.xlu0 %v810, 96
    %v815 = vpop.permute.xlu0 %814
    %vm817 = vcmask 1042176
    %818 = vst.msk [vmem:[#allocation2] sm:$0x3] %vm817, %v815
    %v819 = vld [vmem:[#allocation2] sm:$0x3]
    %v820 = vmul.f32 %v819, %v819
    %vm821 = vcmask 1041408
    %v822 = vsel %vm821, %v820, 0.0
    %823 = vadd.xlane.f32.xlu0 %v822
    %v824 = vpop.xlane.xlu0 %823
    %v825 = vmax.f32 %v824, 1e-24
    %v826 = vrsqrt.pop %v825
    %v827 = vmul.f32 %v826, %v825
    %v828 = vmul.f32 %v827, %v826
    %v829 = vmul.f32 0.5, %v828
    %v830 = vsub.f32 1.5, %v829
    %v831 = vmul.f32 %v826, %v830
    %vm832 = vweird.f32 %v825
    %vm833 = vweird.f32 %v826
    %vm834 = vmor %vm832, %vm833
    %v835 = vsel %vm834, %v826, %v831
    %v836 = vmul.f32 %v819, %v835
    %v837 = vld [vmem:[%s8] sm:$0xff]
    %v838 = vld [vmem:[%s8 + $0x8] sm:$0xff]
    %v839 = vld [vmem:[%s8 + $0x10] sm:$0xff]
    %v840 = vld [vmem:[%s8 + $0x18] sm:$0xff]
    %v841 = vld [vmem:[%s8 + $0x20] sm:$0xff]
    %v842 = vld [vmem:[%s8 + $0x28] sm:$0xff]
    %v843 = vld [vmem:[%s8 + $0x30] sm:$0xff]
    %v844 = vld [vmem:[%s8 + $0x38] sm:$0xff]
    %v845 = vld [vmem:[%s8 + $0x40] sm:$0xff]
    %v846 = vld [vmem:[%s8 + $0x48] sm:$0xff]
    %v847 = vld [vmem:[%s8 + $0x50] sm:$0xff]
    %v848 = vld [vmem:[%s8 + $0x58] sm:$0xff]
    %v849 = vld [vmem:[%s8 + $0x60] sm:$0xff]
    %v850 = vld [vmem:[%s8 + $0x68] sm:$0xff]
    %v851 = vld [vmem:[%s8 + $0x70] sm:$0xff]
    %v852 = vld [vmem:[%s8 + $0x78] sm:$0xff]
    %v853 = vpack.c.bf16 %v838, %v837
    %v854 = vpack.c.bf16 %v840, %v839
    %v855 = vpack.c.bf16 %v842, %v841
    %v856 = vpack.c.bf16 %v844, %v843
    %v857 = vpack.c.bf16 %v846, %v845
    %v858 = vpack.c.bf16 %v848, %v847
    %v859 = vpack.c.bf16 %v850, %v849
    %v860 = vpack.c.bf16 %v852, %v851
    %v861 = vld [vmem:[%s9] sm:$0x1]
    %v862 = vpack.c.bf16 %v836, %v836
    %v864 = vperm.slane %v861, 0
    %866 = vmatpush.bf16.msra.mxu0 %v860
    %867 = vmatpush.bf16.msra.mxu0 %v859
    %868 = vmatpush.bf16.msra.mxu0 %v858
    %869 = vmatpush.bf16.msra.mxu0 %v857
    %870 = vmatpush.bf16.msra.mxu0 %v856
    %871 = vmatpush.bf16.msra.mxu0 %v855
    %872 = vmatpush.bf16.msra.mxu0 %v854
    %873 = vmatpush.bf16.msra.mxu0 %v853
    %874 = vmatmul.bf16.gmra.mxu0 %v862
    %v875 = vpop.f32.mrf.mxu0
    %v876 = vadd.f32 %v864, %v875
    %v877 = vpop.f32.mrf.mxu0
    %878 = vdwg.mxu0
    %v879 = vxor.u32 %v876, 2147483648
    %v880 = vmul.f32 %v879, 1.442695
    %v881 = vpow.pop %v880
    %v882 = vadd.f32 %v881, 1.0
    %v883 = vrcp.pop %v882
    %v884 = vmul.f32 %v882, %v883
    %v885 = vsub.f32 1.0, %v884
    %v886 = vmul.f32 %v883, %v885
    %v887 = vadd.f32 %v883, %v886
    %vm888 = vweird.f32 %v882
    %vm889 = vweird.f32 %v883
    %vm890 = vmor %vm888, %vm889
    %v891 = vsel %vm890, %v883, %v887
    %v892 = vand.u32 2147483647, %v882
    %vm893 = vcmp.eq.f32.partialorder %v892, 8.507059e+37
    %v894 = vand.u32 %v882, 2147483648
    %v895 = vor.u32 1.1754944e-38, %v894
    %v896 = vsel %vm893, %v895, %v891
    %v897 = vmul.f32 1.0, %v896
    %v898 = vmul.f32 %v876, %v897
    %v899 = vld [vmem:[#allocation12] sm:$0xff]
    %v900 = vld [vmem:[#allocation12 + $0x8] sm:$0xff]
    %v901 = vld [vmem:[#allocation12 + $0x10] sm:$0xff]
    %v902 = vld [vmem:[#allocation12 + $0x18] sm:$0xff]
    %v903 = vld [vmem:[#allocation12 + $0x20] sm:$0xff]
    %v904 = vld [vmem:[#allocation12 + $0x28] sm:$0xff]
    %v905 = vld [vmem:[#allocation12 + $0x30] sm:$0xff]
    %v906 = vld [vmem:[#allocation12 + $0x38] sm:$0xff]
    %v907 = vld [vmem:[#allocation12 + $0x40] sm:$0xff]
    %v908 = vld [vmem:[#allocation12 + $0x48] sm:$0xff]
    %v909 = vld [vmem:[#allocation12 + $0x50] sm:$0xff]
    %v910 = vld [vmem:[#allocation12 + $0x58] sm:$0xff]
    %v911 = vld [vmem:[#allocation12 + $0x60] sm:$0xff]
    %v912 = vld [vmem:[#allocation12 + $0x68] sm:$0xff]
    %v913 = vld [vmem:[#allocation12 + $0x70] sm:$0xff]
    %v914 = vld [vmem:[#allocation12 + $0x78] sm:$0xff]
    %v915 = vpack.c.bf16 %v900, %v899
    %v916 = vpack.c.bf16 %v902, %v901
    %v917 = vpack.c.bf16 %v904, %v903
    %v918 = vpack.c.bf16 %v906, %v905
    %v919 = vpack.c.bf16 %v908, %v907
    %v920 = vpack.c.bf16 %v910, %v909
    %v921 = vpack.c.bf16 %v912, %v911
    %v922 = vpack.c.bf16 %v914, %v913
    %v923 = vld [vmem:[%s11] sm:$0x1]
    %v924 = vpack.c.bf16 %v898, %v898
    %v926 = vperm.slane %v923, 0
    %928 = vmatpush.bf16.msra.mxu0 %v922
    %929 = vmatpush.bf16.msra.mxu0 %v921
    %930 = vmatpush.bf16.msra.mxu0 %v920
    %931 = vmatpush.bf16.msra.mxu0 %v919
    %932 = vmatpush.bf16.msra.mxu0 %v918
    %933 = vmatpush.bf16.msra.mxu0 %v917
    %934 = vmatpush.bf16.msra.mxu0 %v916
    %935 = vmatpush.bf16.msra.mxu0 %v915
    %936 = vmatmul.bf16.gmra.mxu0 %v924
    %v937 = vpop.f32.mrf.mxu0
    %v938 = vadd.f32 %v926, %v937
    %v939 = vpop.f32.mrf.mxu0
    %940 = vdwg.mxu0
    %v941 = vxor.u32 %v938, 2147483648
    %v942 = vmul.f32 %v941, 1.442695
    %v943 = vpow.pop %v942
    %v944 = vadd.f32 %v943, 1.0
    %v945 = vrcp.pop %v944
    %v946 = vmul.f32 %v944, %v945
    %v947 = vsub.f32 1.0, %v946
    %v948 = vmul.f32 %v945, %v947
    %v949 = vadd.f32 %v945, %v948
    %vm950 = vweird.f32 %v944
    %vm951 = vweird.f32 %v945
    %vm952 = vmor %vm950, %vm951
    %v953 = vsel %vm952, %v945, %v949
    %v954 = vand.u32 2147483647, %v944
    %vm955 = vcmp.eq.f32.partialorder %v954, 8.507059e+37
    %v956 = vand.u32 %v944, 2147483648
    %v957 = vor.u32 1.1754944e-38, %v956
    %v958 = vsel %vm955, %v957, %v953
    %v959 = vmul.f32 1.0, %v958
    %v960 = vmul.f32 %v938, %v959
    %v961 = vld [vmem:[%s12] sm:$0xff]
    %v962 = vld [vmem:[%s12 + $0x8] sm:$0xff]
    %v963 = vld [vmem:[%s12 + $0x10] sm:$0xff]
    %v964 = vld [vmem:[%s12 + $0x18] sm:$0xff]
    %v965 = vld [vmem:[%s12 + $0x20] sm:$0xff]
    %v966 = vld [vmem:[%s12 + $0x28] sm:$0xff]
    %v967 = vld [vmem:[%s12 + $0x30] sm:$0xff]
    %v968 = vld [vmem:[%s12 + $0x38] sm:$0xff]
    %v969 = vld [vmem:[%s12 + $0x40] sm:$0xff]
    %v970 = vld [vmem:[%s12 + $0x48] sm:$0xff]
    %v971 = vld [vmem:[%s12 + $0x50] sm:$0xff]
    %v972 = vld [vmem:[%s12 + $0x58] sm:$0xff]
    %v973 = vld [vmem:[%s12 + $0x60] sm:$0xff]
    %v974 = vld [vmem:[%s12 + $0x68] sm:$0xff]
    %v975 = vld [vmem:[%s12 + $0x70] sm:$0xff]
    %v976 = vld [vmem:[%s12 + $0x78] sm:$0xff]
    %v977 = vpack.c.bf16 %v962, %v961
    %v978 = vpack.c.bf16 %v964, %v963
    %v979 = vpack.c.bf16 %v966, %v965
    %v980 = vpack.c.bf16 %v968, %v967
    %v981 = vpack.c.bf16 %v970, %v969
    %v982 = vpack.c.bf16 %v972, %v971
    %v983 = vpack.c.bf16 %v974, %v973
    %v984 = vpack.c.bf16 %v976, %v975
    %v985 = vld [vmem:[%s13] sm:$0x1]
    %v986 = vpack.c.bf16 %v960, %v960
    %v988 = vperm.slane %v985, 0
    %990 = vmatpush.bf16.msra.mxu0 %v984
    %991 = vmatpush.bf16.msra.mxu0 %v983
    %992 = vmatpush.bf16.msra.mxu0 %v982
    %993 = vmatpush.bf16.msra.mxu0 %v981
    %994 = vmatpush.bf16.msra.mxu0 %v980
    %995 = vmatpush.bf16.msra.mxu0 %v979
    %996 = vmatpush.bf16.msra.mxu0 %v978
    %997 = vmatpush.bf16.msra.mxu0 %v977
    %998 = vmatmul.bf16.gmra.mxu0 %v986
    %v999 = vpop.f32.mrf.mxu0
    %v1000 = vadd.f32 %v988, %v999
    %v1001 = vpop.f32.mrf.mxu0
    %1002 = vdwg.mxu0
    %v1004 = vrot.slane %v1000, 1
    %vm1006 = vcmask 57344
    %1007 = vst.msk [vmem:[#allocation14] sm:$0x1] %vm1006, %v1000
    %1008 = vst.msk [vmem:[#allocation14 + $0x1] sm:$0x1] %vm1006, %v1004
    // Predicated region
    $region82: #{tpu_custom_call.1} parent=1 // pred_check
      _
    $region83: #{tpu_custom_call.1} parent=1 // pred_check_branch
      %1010 = sbr.rel (0) target = $region85
    $region84: #{tpu_custom_call.1} parent=1 // pred_region
      %1012 = vsyncadd [#allocation5], 0
      %s1013 = sshll.u32 [#allocation14], 4
      %s1014 = int_to_ptr.vmem [resolvable:$true] %s1013
      %s1015 = sshll.u32 %s14, 4
      %s1016 = int_to_ptr.hbm [resolvable:$true] %s1015
      %1021 = dma.vmem_to_hbm [thread:$0]  %s1014, 32, %s1016, [#allocation5], 16, 16, 1
    $region85: #{tpu_custom_call.1} parent=1 // pred_fallthru
      _
    // Predicated region
    $region86: #{tpu_custom_call.1} parent=1 // pred_check
      _
    $region87: #{tpu_custom_call.1} parent=1 // pred_check_branch
      %1023 = sbr.rel (0) target = $region89
    $region88: #{tpu_custom_call.1} parent=1 // pred_region
      %1025 = dma.done [#allocation5], 32
    $region89: #{tpu_custom_call.1} parent=1 // pred_fallthru
      _
    %1026 = vsyncpa [#allocation4], 1
    %1027 = vsyncpa [#allocation7], 1
    %1028 = vsyncpa [#allocation10], 1
    %1029 = vsyncpa [#allocation13], 1
    %1030 = vsyncpa [#allocation5], 1

// kernel: tpu_custom_call.1
$region0: #{tpu_custom_call.1}
  #allocation0 [shape = 'u32[]', space=smem, size = 0x4, offset = 0x4, fixed_abs, tag = 'smem constant byte address 0x4 - core index']
  #allocation1 [shape = 'u32[72,128]{1,0:T(1,128)}', space=vmem, size = 0x9000, scoped, tag = 'internal scratch']
  #allocation2 [shape = 'f32[2,128]{1,0:T(2,128)}', space=vmem, size = 0x400, scoped, tag = 'scratch operand']
  %s0 = inlined_call_operand.hbm [shape: f32[2,8,16], index: 0, kind: input, shape index: {}]
  %s1 = inlined_call_operand.hbm [shape: f32[2,8,8], index: 1, kind: input, shape index: {}]
  %s2 = inlined_call_operand.hbm [shape: f32[16,32], index: 2, kind: input, shape index: {}]
  %s3 = inlined_call_operand.vmem [shape: f32[1,32], index: 3, kind: input, shape index: {}]
  %s4 = inlined_call_operand.hbm [shape: f32[32,32], index: 4, kind: input, shape index: {}]
  %s5 = inlined_call_operand.vmem [shape: f32[1,32], index: 5, kind: input, shape index: {}]
  %s6 = inlined_call_operand.hbm [shape: f32[32,32], index: 6, kind: input, shape index: {}]
  %s7 = inlined_call_operand.vmem [shape: f32[1,32], index: 7, kind: input, shape index: {}]
  %s8 = inlined_call_operand.vmem [shape: f32[128,128], index: 8, kind: input, shape index: {}]
  %s9 = inlined_call_operand.vmem [shape: f32[1,128], index: 9, kind: input, shape index: {}]
  %s10 = inlined_call_operand.hbm [shape: f32[128,128], index: 10, kind: input, shape index: {}]
  %s11 = inlined_call_operand.vmem [shape: f32[1,128], index: 11, kind: input, shape index: {}]
  %s12 = inlined_call_operand.vmem [shape: f32[128,8], index: 12, kind: input, shape index: {}]
  %s13 = inlined_call_operand.vmem [shape: f32[1,8], index: 13, kind: input, shape index: {}]
  %s14 = inlined_call_operand.hbm [shape: f32[2,1,8], index: 14, kind: output, shape index: {}]
  %s15 = sld [smem:[#allocation0]]
  $region90: #{tpu_custom_call.1} parent=0
    _
  %s17 = ssub.s32 1, %s15
  %s18 = scalar_select 0, %s17, %s15
  $region1: #{tpu_custom_call.1} parent=0
    #allocation3 [shape = 'u8[8192]{0}', space=vmem, size = 0x2000, scoped, tag = 'input window, operand 0, single buffered']
    #allocation4 [shape = 's32[1]{0}', space=sflag, size = 0x4, scoped, tag = 'scoped memory for tpu_custom_call.1']
    #allocation5 [shape = 's32[1]{0}', space=sflag, size = 0x4, scoped, tag = 'scoped memory for tpu_custom_call.1']
    #allocation6 [shape = 'u8[8192]{0}', space=vmem, size = 0x2000, scoped, tag = 'input window, operand 1, single buffered']
    #allocation7 [shape = 's32[1]{0}', space=sflag, size = 0x4, scoped, tag = 'scoped memory for tpu_custom_call.1']
    #allocation8 [shape = 'u8[8192]{0}', space=vmem, size = 0x2000, scoped, tag = 'input window, operand 2, single buffered']
    #allocation9 [shape = 'u8[16384]{0}', space=vmem, size = 0x4000, scoped, tag = 'input window, operand 4, single buffered']
    #allocation10 [shape = 's32[1]{0}', space=sflag, size = 0x4, scoped, tag = 'scoped memory for tpu_custom_call.1']
    #allocation11 [shape = 'u8[16384]{0}', space=vmem, size = 0x4000, scoped, tag = 'input window, operand 6, single buffered']
    #allocation12 [shape = 'u8[65536]{0}', space=vmem, size = 0x10000, scoped, tag = 'input window, operand 10, single buffered']
    #allocation13 [shape = 's32[1]{0}', space=sflag, size = 0x4, scoped, tag = 'scoped memory for tpu_custom_call.1']
    #allocation14 [shape = 'u8[1024]{0}', space=vmem, size = 0x400, scoped, tag = 'output window, operand 0, single buffered']
    %19 = vsyncpa [#allocation4], 0
    %20 = vsyncpa [#allocation7], 0
    %21 = vsyncpa [#allocation10], 0
    %22 = vsyncpa [#allocation13], 0
    %23 = vsyncpa [#allocation5], 0
    // Predicated region
    $region2: #{tpu_custom_call.1} parent=1 // pred_check
      _
    $region3: #{tpu_custom_call.1} parent=1 // pred_check_branch
      %25 = sbr.rel (0) target = $region5
    $region4: #{tpu_custom_call.1} parent=1 // pred_region
      %27 = vsyncadd [#allocation4], 0
      %s28 = sshll.u32 %s0, 4
      %s29 = int_to_ptr.hbm [resolvable:$true] %s28
      %s30 = sshll.u32 [#allocation3], 4
      %s31 = int_to_ptr.vmem [resolvable:$true] %s30
      %36 = dma.hbm_to_vmem [thread:$0]  %s29, 256, %s31, [#allocation4], 128, 128, 8
    $region5: #{tpu_custom_call.1} parent=1 // pred_fallthru
      _
    // Predicated region
    $region6: #{tpu_custom_call.1} parent=1 // pred_check
      _
    $region7: #{tpu_custom_call.1} parent=1 // pred_check_branch
      %38 = sbr.rel (0) target = $region9
    $region8: #{tpu_custom_call.1} parent=1 // pred_region
      %40 = vsyncadd [#allocation7], 0
      %s41 = sshll.u32 %s1, 4
      %s42 = int_to_ptr.hbm [resolvable:$true] %s41
      %s43 = sshll.u32 [#allocation6], 4
      %s44 = int_to_ptr.vmem [resolvable:$true] %s43
      %49 = dma.hbm_to_vmem [thread:$0]  %s42, 256, %s44, [#allocation7], 128, 128, 8
    $region9: #{tpu_custom_call.1} parent=1 // pred_fallthru
      _
    // Predicated region
    $region10: #{tpu_custom_call.1} parent=1 // pred_check
      _
    $region11: #{tpu_custom_call.1} parent=1 // pred_check_branch
      %51 = sbr.rel (0) target = $region13
    $region12: #{tpu_custom_call.1} parent=1 // pred_region
      %53 = vsyncadd [#allocation7], 0
      %s54 = sshll.u32 %s2, 4
      %s55 = int_to_ptr.hbm [resolvable:$true] %s54
      %s56 = sshll.u32 [#allocation8], 4
      %s57 = int_to_ptr.vmem [resolvable:$true] %s56
      %62 = dma.hbm_to_vmem [thread:$0]  %s55, 256, %s57, [#allocation7], 128, 128, 8
    $region13: #{tpu_custom_call.1} parent=1 // pred_fallthru
      _
    // Predicated region
    $region14: #{tpu_custom_call.1} parent=1 // pred_check
      _
    $region15: #{tpu_custom_call.1} parent=1 // pred_check_branch
      %64 = sbr.rel (0) target = $region17
    $region16: #{tpu_custom_call.1} parent=1 // pred_region
      _
    $region17: #{tpu_custom_call.1} parent=1 // pred_fallthru
      _
    // Predicated region
    $region18: #{tpu_custom_call.1} parent=1 // pred_check
      _
    $region19: #{tpu_custom_call.1} parent=1 // pred_check_branch
      %66 = sbr.rel (0) target = $region21
    $region20: #{tpu_custom_call.1} parent=1 // pred_region
      %68 = vsyncadd [#allocation10], 0
      %s69 = sshll.u32 %s4, 4
      %s70 = int_to_ptr.hbm [resolvable:$true] %s69
      %s71 = sshll.u32 [#allocation9], 4
      %s72 = int_to_ptr.vmem [resolvable:$true] %s71
      %77 = dma.hbm_to_vmem [thread:$0]  %s70, 512, %s72, [#allocation10], 128, 128, 8
    $region21: #{tpu_custom_call.1} parent=1 // pred_fallthru
      _
    // Predicated region
    $region22: #{tpu_custom_call.1} parent=1 // pred_check
      _
    $region23: #{tpu_custom_call.1} parent=1 // pred_check_branch
      %79 = sbr.rel (0) target = $region25
    $region24: #{tpu_custom_call.1} parent=1 // pred_region
      _
    $region25: #{tpu_custom_call.1} parent=1 // pred_fallthru
      _
    // Predicated region
    $region26: #{tpu_custom_call.1} parent=1 // pred_check
      _
    $region27: #{tpu_custom_call.1} parent=1 // pred_check_branch
      %81 = sbr.rel (0) target = $region29
    $region28: #{tpu_custom_call.1} parent=1 // pred_region
      %83 = vsyncadd [#allocation10], 0
      %s84 = sshll.u32 %s6, 4
      %s85 = int_to_ptr.hbm [resolvable:$true] %s84
      %s86 = sshll.u32 [#allocation11], 4
      %s87 = int_to_ptr.vmem [resolvable:$true] %s86
      %92 = dma.hbm_to_vmem [thread:$0]  %s85, 512, %s87, [#allocation10], 128, 128, 8
    $region29: #{tpu_custom_call.1} parent=1 // pred_fallthru
      _
    // Predicated region
    $region30: #{tpu_custom_call.1} parent=1 // pred_check
      _
    $region31: #{tpu_custom_call.1} parent=1 // pred_check_branch
      %94 = sbr.rel (0) target = $region33
    $region32: #{tpu_custom_call.1} parent=1 // pred_region
      _
    $region33: #{tpu_custom_call.1} parent=1 // pred_fallthru
      _
    // Predicated region
    $region34: #{tpu_custom_call.1} parent=1 // pred_check
      _
    $region35: #{tpu_custom_call.1} parent=1 // pred_check_branch
      %96 = sbr.rel (0) target = $region37
    $region36: #{tpu_custom_call.1} parent=1 // pred_region
      _
    $region37: #{tpu_custom_call.1} parent=1 // pred_fallthru
      _
    // Predicated region
    $region38: #{tpu_custom_call.1} parent=1 // pred_check
      _
    $region39: #{tpu_custom_call.1} parent=1 // pred_check_branch
      %98 = sbr.rel (0) target = $region41
    $region40: #{tpu_custom_call.1} parent=1 // pred_region
      _
    $region41: #{tpu_custom_call.1} parent=1 // pred_fallthru
      _
    // Predicated region
    $region42: #{tpu_custom_call.1} parent=1 // pred_check
      _
    $region43: #{tpu_custom_call.1} parent=1 // pred_check_branch
      %100 = sbr.rel (0) target = $region45
    $region44: #{tpu_custom_call.1} parent=1 // pred_region
      %102 = vsyncadd [#allocation13], 0
      %s103 = sshll.u32 %s10, 4
      %s104 = int_to_ptr.hbm [resolvable:$true] %s103
      %s105 = sshll.u32 [#allocation12], 4
      %s106 = int_to_ptr.vmem [resolvable:$true] %s105
      %111 = dma.hbm_to_vmem [thread:$0]  %s104, 2048, %s106, [#allocation13], 128, 128, 8
    $region45: #{tpu_custom_call.1} parent=1 // pred_fallthru
      _
    // Predicated region
    $region46: #{tpu_custom_call.1} parent=1 // pred_check
      _
    $region47: #{tpu_custom_call.1} parent=1 // pred_check_branch
      %113 = sbr.rel (0) target = $region49
    $region48: #{tpu_custom_call.1} parent=1 // pred_region
      _
    $region49: #{tpu_custom_call.1} parent=1 // pred_fallthru
      _
    // Predicated region
    $region50: #{tpu_custom_call.1} parent=1 // pred_check
      _
    $region51: #{tpu_custom_call.1} parent=1 // pred_check_branch
      %115 = sbr.rel (0) target = $region53
    $region52: #{tpu_custom_call.1} parent=1 // pred_region
      _
    $region53: #{tpu_custom_call.1} parent=1 // pred_fallthru
      _
    // Predicated region
    $region54: #{tpu_custom_call.1} parent=1 // pred_check
      _
    $region55: #{tpu_custom_call.1} parent=1 // pred_check_branch
      %117 = sbr.rel (0) target = $region57
    $region56: #{tpu_custom_call.1} parent=1 // pred_region
      _
    $region57: #{tpu_custom_call.1} parent=1 // pred_fallthru
      _
    // Predicated region
    $region58: #{tpu_custom_call.1} parent=1 // pred_check
      _
    $region59: #{tpu_custom_call.1} parent=1 // pred_check_branch
      %119 = sbr.rel (0) target = $region61
    $region60: #{tpu_custom_call.1} parent=1 // pred_region
      %121 = dma.done [#allocation4], 256
    $region61: #{tpu_custom_call.1} parent=1 // pred_fallthru
      _
    // Predicated region
    $region62: #{tpu_custom_call.1} parent=1 // pred_check
      _
    $region63: #{tpu_custom_call.1} parent=1 // pred_check_branch
      %123 = sbr.rel (0) target = $region65
    $region64: #{tpu_custom_call.1} parent=1 // pred_region
      %125 = dma.done [#allocation7], 256
    $region65: #{tpu_custom_call.1} parent=1 // pred_fallthru
      _
    // Predicated region
    $region66: #{tpu_custom_call.1} parent=1 // pred_check
      _
    $region67: #{tpu_custom_call.1} parent=1 // pred_check_branch
      %127 = sbr.rel (0) target = $region69
    $region68: #{tpu_custom_call.1} parent=1 // pred_region
      %129 = dma.done [#allocation7], 256
    $region69: #{tpu_custom_call.1} parent=1 // pred_fallthru
      _
    // Predicated region
    $region70: #{tpu_custom_call.1} parent=1 // pred_check
      _
    $region71: #{tpu_custom_call.1} parent=1 // pred_check_branch
      %131 = sbr.rel (0) target = $region73
    $region72: #{tpu_custom_call.1} parent=1 // pred_region
      %133 = dma.done [#allocation10], 512
    $region73: #{tpu_custom_call.1} parent=1 // pred_fallthru
      _
    // Predicated region
    $region74: #{tpu_custom_call.1} parent=1 // pred_check
      _
    $region75: #{tpu_custom_call.1} parent=1 // pred_check_branch
      %135 = sbr.rel (0) target = $region77
    $region76: #{tpu_custom_call.1} parent=1 // pred_region
      %137 = dma.done [#allocation10], 512
    $region77: #{tpu_custom_call.1} parent=1 // pred_fallthru
      _
    // Predicated region
    $region78: #{tpu_custom_call.1} parent=1 // pred_check
      _
    $region79: #{tpu_custom_call.1} parent=1 // pred_check_branch
      %139 = sbr.rel (0) target = $region81
    $region80: #{tpu_custom_call.1} parent=1 // pred_region
      %141 = dma.done [#allocation13], 2048
    $region81: #{tpu_custom_call.1} parent=1 // pred_fallthru
      _
    %v143 = vld [vmem:[#allocation8] sm:$0xff]
    %v144 = vld [vmem:[#allocation8 + $0x8] sm:$0xff]
    %v145 = vpack.c.bf16 %v144, %v143
    %v146 = vld [vmem:[#allocation9] sm:$0xff]
    %v147 = vld [vmem:[#allocation9 + $0x8] sm:$0xff]
    %v148 = vld [vmem:[#allocation9 + $0x10] sm:$0xff]
    %v149 = vld [vmem:[#allocation9 + $0x18] sm:$0xff]
    %v150 = vpack.c.bf16 %v147, %v146
    %v151 = vpack.c.bf16 %v149, %v148
    %v152 = vld [vmem:[#allocation11] sm:$0xff]
    %v153 = vld [vmem:[#allocation11 + $0x8] sm:$0xff]
    %v154 = vld [vmem:[#allocation11 + $0x10] sm:$0xff]
    %v155 = vld [vmem:[#allocation11 + $0x18] sm:$0xff]
    %v156 = vpack.c.bf16 %v153, %v152
    %v157 = vpack.c.bf16 %v155, %v154
    %v158 = vld [vmem:[%s3] sm:$0x1]
    %v159 = vld [vmem:[%s5] sm:$0x1]
    %v161 = vperm.slane %v159, 0
    %v163 = vld [vmem:[%s7] sm:$0x1]
    %v165 = vperm.slane %v163, 0
    %v167 = vld [vmem:[#allocation3] sm:$0xff]
    %v168 = vld [vmem:[#allocation3 + $0x8] sm:$0xff]
    %v169 = vpack.c.bf16 %v168, %v167
    %v170 = vld [vmem:[#allocation6] sm:$0xff]
    %v171 = vld [vmem:[#allocation6 + $0x8] sm:$0xff]
    %v173 = vperm.slane %v158, 0
    %vm175 = vcmask 130048
    %v177 = vsel %vm175, %v169, 0
    %179 = vmatpush.bf16.msra.mxu0 0
    %180 = vmatpush.bf16.msra.mxu0 0
    %181 = vmatpush.bf16.msra.mxu0 0
    %182 = vmatpush.bf16.msra.mxu0 0
    %183 = vmatpush.bf16.msra.mxu0 0
    %184 = vmatpush.bf16.msra.mxu0 0
    %185 = vmatpush.bf16.msra.mxu0 0
    %186 = vmatpush.bf16.msra.mxu0 %v145
    %187 = vmatmul.bf16.gmra.mxu0 %v177
    %v188 = vpop.f32.mrf.mxu0
    %v189 = vadd.f32 %v173, %v188
    %v190 = vpop.f32.mrf.mxu0
    %v191 = vadd.f32 %v173, %v190
    %192 = vdwg.mxu0
    %v193 = vxor.u32 %v189, 2147483648
    %v194 = vxor.u32 %v191, 2147483648
    %v195 = vmul.f32 %v193, 1.442695
    %v196 = vpow.pop %v195
    %v197 = vmul.f32 %v194, 1.442695
    %v198 = vpow.pop %v197
    %v199 = vadd.f32 %v196, 1.0
    %v200 = vadd.f32 %v198, 1.0
    %v201 = vrcp.pop %v199
    %v202 = vmul.f32 %v199, %v201
    %v203 = vsub.f32 1.0, %v202
    %v204 = vmul.f32 %v201, %v203
    %v205 = vadd.f32 %v201, %v204
    %vm206 = vweird.f32 %v199
    %vm207 = vweird.f32 %v201
    %vm208 = vmor %vm206, %vm207
    %v209 = vsel %vm208, %v201, %v205
    %v210 = vand.u32 2147483647, %v199
    %vm211 = vcmp.eq.f32.partialorder %v210, 8.507059e+37
    %v212 = vand.u32 %v199, 2147483648
    %v213 = vor.u32 1.1754944e-38, %v212
    %v214 = vsel %vm211, %v213, %v209
    %v215 = vmul.f32 1.0, %v214
    %v216 = vrcp.pop %v200
    %v217 = vmul.f32 %v200, %v216
    %v218 = vsub.f32 1.0, %v217
    %v219 = vmul.f32 %v216, %v218
    %v220 = vadd.f32 %v216, %v219
    %vm221 = vweird.f32 %v200
    %vm222 = vweird.f32 %v216
    %vm223 = vmor %vm221, %vm222
    %v224 = vsel %vm223, %v216, %v220
    %v225 = vand.u32 2147483647, %v200
    %vm226 = vcmp.eq.f32.partialorder %v225, 8.507059e+37
    %v227 = vand.u32 %v200, 2147483648
    %v228 = vor.u32 1.1754944e-38, %v227
    %v229 = vsel %vm226, %v228, %v224
    %v230 = vmul.f32 1.0, %v229
    %v231 = vmul.f32 %v189, %v215
    %v232 = vmul.f32 %v191, %v230
    %vm233 = vcmp.ne.f32.partialorder %v170, 0.0
    %vm234 = vcmp.ne.f32.partialorder %v171, 0.0
    %v235 = vsel %vm233, 1, 0
    %v236 = vsel %vm234, 1, 0
    %v237 = vcvt.s32.f32 %v235
    %v238 = vcvt.s32.f32 %v236
    %vm239 = vcmask 64512
    %v240 = vsel %vm239, %v237, 0.0
    %v241 = vsel %vm239, -1e+08, -3e+38
    %v242 = vsel %vm239, 1.0, 0.0
    %244 = vrot.lane.b32.xlu0 %v238, 8
    %v245 = vpop.permute.xlu0 %244
    %v247 = vsel %vm239, 0.0, %v245
    %v248 = vsel %vm239, -3e+38, -1e+08
    %v249 = vsel %vm239, 0.0, 1.0
    %vm250 = vcmp.ne.f32.partialorder %v240, 0.0
    %vm251 = vcmp.ne.f32.partialorder %v247, 0.0
    %v253 = vrot.slane %v249, 7
    %vm255 = vcmask 1040384
    %v256 = vsel %vm255, %v242, %v253
    %v257 = vpack.c.bf16 %v256, %v256
    %v258 = vpack.c.bf16 %v232, %v231
    %vm259 = vcmask 261120
    %v261 = vsel %vm259, %v258, 0
    %263 = vmatpush.bf16.msra.mxu0 0
    %264 = vmatpush.bf16.msra.mxu0 0
    %265 = vmatpush.bf16.msra.mxu0 0
    %266 = vmatpush.bf16.msra.mxu0 0
    %267 = vmatpush.bf16.msra.mxu0 0
    %268 = vmatpush.bf16.msra.mxu0 0
    %269 = vmatpush.bf16.msra.mxu0 %v157
    %270 = vmatpush.bf16.msra.mxu0 %v156
    %271 = vmatmul.bf16.gmra.mxu0 %v261
    %v272 = vpop.f32.mrf.mxu0
    %v273 = vadd.f32 %v165, %v272
    %v274 = vpop.f32.mrf.mxu0
    %v275 = vadd.f32 %v165, %v274
    %276 = vdwg.mxu0
    %v277 = vxor.u32 %v273, 2147483648
    %v278 = vxor.u32 %v275, 2147483648
    %v279 = vmul.f32 %v277, 1.442695
    %v280 = vpow.pop %v279
    %v281 = vmul.f32 %v278, 1.442695
    %v282 = vpow.pop %v281
    %v283 = vadd.f32 %v280, 1.0
    %v284 = vadd.f32 %v282, 1.0
    %v285 = vrcp.pop %v283
    %v286 = vmul.f32 %v283, %v285
    %v287 = vsub.f32 1.0, %v286
    %v288 = vmul.f32 %v285, %v287
    %v289 = vadd.f32 %v285, %v288
    %vm290 = vweird.f32 %v283
    %vm291 = vweird.f32 %v285
    %vm292 = vmor %vm290, %vm291
    %v293 = vsel %vm292, %v285, %v289
    %v294 = vand.u32 2147483647, %v283
    %vm295 = vcmp.eq.f32.partialorder %v294, 8.507059e+37
    %v296 = vand.u32 %v283, 2147483648
    %v297 = vor.u32 1.1754944e-38, %v296
    %v298 = vsel %vm295, %v297, %v293
    %v299 = vmul.f32 1.0, %v298
    %v300 = vrcp.pop %v284
    %v301 = vmul.f32 %v284, %v300
    %v302 = vsub.f32 1.0, %v301
    %v303 = vmul.f32 %v300, %v302
    %v304 = vadd.f32 %v300, %v303
    %vm305 = vweird.f32 %v284
    %vm306 = vweird.f32 %v300
    %vm307 = vmor %vm305, %vm306
    %v308 = vsel %vm307, %v300, %v304
    %v309 = vand.u32 2147483647, %v284
    %vm310 = vcmp.eq.f32.partialorder %v309, 8.507059e+37
    %v311 = vand.u32 %v284, 2147483648
    %v312 = vor.u32 1.1754944e-38, %v311
    %v313 = vsel %vm310, %v312, %v308
    %v314 = vmul.f32 1.0, %v313
    %v315 = vmul.f32 %v273, %v299
    %v316 = vmul.f32 %v275, %v314
    %v317 = vpack.c.bf16 %v316, %v315
    %v319 = vsel %vm175, %v257, 0
    %321 = vmatpush.bf16.msra.mxu0 0
    %322 = vmatpush.bf16.msra.mxu0 0
    %323 = vmatpush.bf16.msra.mxu0 0
    %324 = vmatpush.bf16.msra.mxu0 0
    %325 = vmatpush.bf16.msra.mxu0 0
    %326 = vmatpush.bf16.msra.mxu0 0
    %327 = vmatpush.bf16.msra.mxu0 0
    %328 = vmatpush.bf16.msra.mxu0 %v317
    %329 = vmatmul.bf16.gmra.mxu0 %v319
    %v330 = vpop.f32.mrf.mxu0
    %v331 = vadd.f32 0.0, %v330
    %v332 = vpop.f32.mrf.mxu0
    %333 = vdwg.mxu0
    %vm334 = vcmask 254976
    %335 = vst.msk [vmem:[#allocation2] sm:$0x3] %vm334, %v331
    %336 = vmatpush.bf16.msra.mxu0 0
    %337 = vmatpush.bf16.msra.mxu0 0
    %338 = vmatpush.bf16.msra.mxu0 0
    %339 = vmatpush.bf16.msra.mxu0 0
    %340 = vmatpush.bf16.msra.mxu0 0
    %341 = vmatpush.bf16.msra.mxu0 0
    %342 = vmatpush.bf16.msra.mxu0 %v151
    %343 = vmatpush.bf16.msra.mxu0 %v150
    %344 = vmatmul.bf16.gmra.mxu0 %v261
    %v345 = vpop.f32.mrf.mxu0
    %v346 = vadd.f32 %v161, %v345
    %v347 = vpop.f32.mrf.mxu0
    %v348 = vadd.f32 %v161, %v347
    %349 = vdwg.mxu0
    %v350 = vpack.c.bf16 %v348, %v346
    %v352 = vsel %vm259, %v350, 0
    %354 = vmatpush.bf16.xpose.msra.mxu0 0
    %355 = vmatpush.bf16.xpose.msra.mxu0 0
    %356 = vmatpush.bf16.xpose.msra.mxu0 0
    %357 = vmatpush.bf16.xpose.msra.mxu0 0
    %358 = vmatpush.bf16.xpose.msra.mxu0 0
    %359 = vmatpush.bf16.xpose.msra.mxu0 0
    %360 = vmatpush.bf16.xpose.msra.mxu0 0
    %361 = vmatpush.bf16.xpose.msra.mxu0 %v261
    %362 = vmatmul.bf16.gmra.mxu0 %v352
    %v363 = vpop.f32.mrf.mxu0
    %v364 = vadd.f32 0.0, %v363
    %v365 = vpop.f32.mrf.mxu0
    %v366 = vadd.f32 0.0, %v365
    %367 = vdwg.mxu0
    %v368 = vsel %vm250, %v364, %v241
    %v369 = vsel %vm251, %v366, %v248
    %v370 = vsel %vm175, %v368, -inf
    %v371 = vsel %vm175, %v369, -inf
    %v372 = vmax.f32 %v370, %v371
    %v373 = vrot.slane %v372, 4
    %v374 = vmax.f32 %v372, %v373
    %v375 = vrot.slane %v374, 2
    %v376 = vmax.f32 %v374, %v375
    %v377 = vrot.slane %v376, 1
    %v378 = vmax.f32 %v376, %v377
    %v379 = vsub.f32 %v368, %v378
    %v380 = vsub.f32 %v369, %v378
    %v381 = vmul.f32 %v379, 1.442695
    %v382 = vpow.pop %v381
    %v383 = vmul.f32 %v380, 1.442695
    %v384 = vpow.pop %v383
    %v385 = vsel %vm175, %v382, 0.0
    %v386 = vsel %vm175, %v384, 0.0
    %v387 = vadd.f32 %v385, %v386
    %v388 = vrot.slane %v387, 4
    %v389 = vadd.f32 %v387, %v388
    %v390 = vrot.slane %v389, 2
    %v391 = vadd.f32 %v389, %v390
    %v392 = vrot.slane %v391, 1
    %v393 = vadd.f32 %v391, %v392
    %v394 = vrcp.pop %v393
    %v395 = vmul.f32 %v382, %v394
    %v396 = vmul.f32 %v384, %v394
    %v397 = vpack.c.bf16 %v396, %v395
    %v399 = vsel %vm175, %v397, 0
    %401 = vmatpush.bf16.msra.mxu0 0
    %402 = vmatpush.bf16.msra.mxu0 0
    %403 = vmatpush.bf16.msra.mxu0 0
    %404 = vmatpush.bf16.msra.mxu0 0
    %405 = vmatpush.bf16.msra.mxu0 0
    %406 = vmatpush.bf16.msra.mxu0 0
    %407 = vmatpush.bf16.msra.mxu0 0
    %408 = vmatpush.bf16.msra.mxu0 %v258
    %409 = vmatmul.bf16.gmra.mxu0 %v399
    %v410 = vpop.f32.mrf.mxu0
    %v411 = vadd.f32 0.0, %v410
    %v412 = vpop.f32.mrf.mxu0
    %v413 = vadd.f32 0.0, %v412
    %414 = vdwg.mxu0
    %v415 = vadd.f32 %v231, %v411
    %v416 = vadd.f32 %v232, %v413
    %v417 = vmul.f32 %v415, %v231
    %v418 = vmul.f32 %v416, %v232
    %v419 = vpack.c.bf16 %v418, %v417
    %v421 = vsel %vm259, %v419, 0
    %423 = vmatpush.bf16.msra.mxu0 0
    %424 = vmatpush.bf16.msra.mxu0 0
    %425 = vmatpush.bf16.msra.mxu0 0
    %426 = vmatpush.bf16.msra.mxu0 0
    %427 = vmatpush.bf16.msra.mxu0 0
    %428 = vmatpush.bf16.msra.mxu0 0
    %429 = vmatpush.bf16.msra.mxu0 %v157
    %430 = vmatpush.bf16.msra.mxu0 %v156
    %431 = vmatmul.bf16.gmra.mxu0 %v421
    %v432 = vpop.f32.mrf.mxu0
    %v433 = vadd.f32 %v165, %v432
    %v434 = vpop.f32.mrf.mxu0
    %v435 = vadd.f32 %v165, %v434
    %436 = vdwg.mxu0
    %v437 = vxor.u32 %v433, 2147483648
    %v438 = vxor.u32 %v435, 2147483648
    %v439 = vmul.f32 %v437, 1.442695
    %v440 = vpow.pop %v439
    %v441 = vmul.f32 %v438, 1.442695
    %v442 = vpow.pop %v441
    %v443 = vadd.f32 %v440, 1.0
    %v444 = vadd.f32 %v442, 1.0
    %v445 = vrcp.pop %v443
    %v446 = vmul.f32 %v443, %v445
    %v447 = vsub.f32 1.0, %v446
    %v448 = vmul.f32 %v445, %v447
    %v449 = vadd.f32 %v445, %v448
    %vm450 = vweird.f32 %v443
    %vm451 = vweird.f32 %v445
    %vm452 = vmor %vm450, %vm451
    %v453 = vsel %vm452, %v445, %v449
    %v454 = vand.u32 2147483647, %v443
    %vm455 = vcmp.eq.f32.partialorder %v454, 8.507059e+37
    %v456 = vand.u32 %v443, 2147483648
    %v457 = vor.u32 1.1754944e-38, %v456
    %v458 = vsel %vm455, %v457, %v453
    %v459 = vmul.f32 1.0, %v458
    %v460 = vrcp.pop %v444
    %v461 = vmul.f32 %v444, %v460
    %v462 = vsub.f32 1.0, %v461
    %v463 = vmul.f32 %v460, %v462
    %v464 = vadd.f32 %v460, %v463
    %vm465 = vweird.f32 %v444
    %vm466 = vweird.f32 %v460
    %vm467 = vmor %vm465, %vm466
    %v468 = vsel %vm467, %v460, %v464
    %v469 = vand.u32 2147483647, %v444
    %vm470 = vcmp.eq.f32.partialorder %v469, 8.507059e+37
    %v471 = vand.u32 %v444, 2147483648
    %v472 = vor.u32 1.1754944e-38, %v471
    %v473 = vsel %vm470, %v472, %v468
    %v474 = vmul.f32 1.0, %v473
    %v475 = vmul.f32 %v433, %v459
    %v476 = vmul.f32 %v435, %v474
    %v477 = vpack.c.bf16 %v476, %v475
    %478 = vmatpush.bf16.msra.mxu0 0
    %479 = vmatpush.bf16.msra.mxu0 0
    %480 = vmatpush.bf16.msra.mxu0 0
    %481 = vmatpush.bf16.msra.mxu0 0
    %482 = vmatpush.bf16.msra.mxu0 0
    %483 = vmatpush.bf16.msra.mxu0 0
    %484 = vmatpush.bf16.msra.mxu0 0
    %485 = vmatpush.bf16.msra.mxu0 %v477
    %486 = vmatmul.bf16.gmra.mxu0 %v319
    %v487 = vpop.f32.mrf.mxu0
    %v488 = vadd.f32 0.0, %v487
    %v489 = vpop.f32.mrf.mxu0
    %490 = vdwg.mxu0
    %492 = vrot.lane.b32.xlu0 %v488, 32
    %v493 = vpop.permute.xlu0 %492
    %vm495 = vcmask 517376
    %496 = vst.msk [vmem:[#allocation2] sm:$0x3] %vm495, %v493
    %497 = vmatpush.bf16.msra.mxu0 0
    %498 = vmatpush.bf16.msra.mxu0 0
    %499 = vmatpush.bf16.msra.mxu0 0
    %500 = vmatpush.bf16.msra.mxu0 0
    %501 = vmatpush.bf16.msra.mxu0 0
    %502 = vmatpush.bf16.msra.mxu0 0
    %503 = vmatpush.bf16.msra.mxu0 %v151
    %504 = vmatpush.bf16.msra.mxu0 %v150
    %505 = vmatmul.bf16.gmra.mxu0 %v421
    %v506 = vpop.f32.mrf.mxu0
    %v507 = vadd.f32 %v161, %v506
    %v508 = vpop.f32.mrf.mxu0
    %v509 = vadd.f32 %v161, %v508
    %510 = vdwg.mxu0
    %v511 = vpack.c.bf16 %v509, %v507
    %v513 = vsel %vm259, %v511, 0
    %515 = vmatpush.bf16.xpose.msra.mxu0 0
    %516 = vmatpush.bf16.xpose.msra.mxu0 0
    %517 = vmatpush.bf16.xpose.msra.mxu0 0
    %518 = vmatpush.bf16.xpose.msra.mxu0 0
    %519 = vmatpush.bf16.xpose.msra.mxu0 0
    %520 = vmatpush.bf16.xpose.msra.mxu0 0
    %521 = vmatpush.bf16.xpose.msra.mxu0 0
    %522 = vmatpush.bf16.xpose.msra.mxu0 %v421
    %523 = vmatmul.bf16.gmra.mxu0 %v513
    %v524 = vpop.f32.mrf.mxu0
    %v525 = vadd.f32 0.0, %v524
    %v526 = vpop.f32.mrf.mxu0
    %v527 = vadd.f32 0.0, %v526
    %528 = vdwg.mxu0
    %v529 = vsel %vm250, %v525, %v241
    %v530 = vsel %vm251, %v527, %v248
    %v531 = vsel %vm175, %v529, -inf
    %v532 = vsel %vm175, %v530, -inf
    %v533 = vmax.f32 %v531, %v532
    %v534 = vrot.slane %v533, 4
    %v535 = vmax.f32 %v533, %v534
    %v536 = vrot.slane %v535, 2
    %v537 = vmax.f32 %v535, %v536
    %v538 = vrot.slane %v537, 1
    %v539 = vmax.f32 %v537, %v538
    %v540 = vsub.f32 %v529, %v539
    %v541 = vsub.f32 %v530, %v539
    %v542 = vmul.f32 %v540, 1.442695
    %v543 = vpow.pop %v542
    %v544 = vmul.f32 %v541, 1.442695
    %v545 = vpow.pop %v544
    %v546 = vsel %vm175, %v543, 0.0
    %v547 = vsel %vm175, %v545, 0.0
    %v548 = vadd.f32 %v546, %v547
    %v549 = vrot.slane %v548, 4
    %v550 = vadd.f32 %v548, %v549
    %v551 = vrot.slane %v550, 2
    %v552 = vadd.f32 %v550, %v551
    %v553 = vrot.slane %v552, 1
    %v554 = vadd.f32 %v552, %v553
    %v555 = vrcp.pop %v554
    %v556 = vmul.f32 %v543, %v555
    %v557 = vmul.f32 %v545, %v555
    %v558 = vpack.c.bf16 %v557, %v556
    %v560 = vsel %vm175, %v558, 0
    %562 = vmatpush.bf16.msra.mxu0 0
    %563 = vmatpush.bf16.msra.mxu0 0
    %564 = vmatpush.bf16.msra.mxu0 0
    %565 = vmatpush.bf16.msra.mxu0 0
    %566 = vmatpush.bf16.msra.mxu0 0
    %567 = vmatpush.bf16.msra.mxu0 0
    %568 = vmatpush.bf16.msra.mxu0 0
    %569 = vmatpush.bf16.msra.mxu0 %v419
    %570 = vmatmul.bf16.gmra.mxu0 %v560
    %v571 = vpop.f32.mrf.mxu0
    %v572 = vadd.f32 0.0, %v571
    %v573 = vpop.f32.mrf.mxu0
    %v574 = vadd.f32 0.0, %v573
    %575 = vdwg.mxu0
    %v576 = vadd.f32 %v417, %v572
    %v577 = vadd.f32 %v418, %v574
    %v578 = vmul.f32 %v576, %v231
    %v579 = vmul.f32 %v577, %v232
    %v580 = vpack.c.bf16 %v579, %v578
    %v582 = vsel %vm259, %v580, 0
    %584 = vmatpush.bf16.msra.mxu0 0
    %585 = vmatpush.bf16.msra.mxu0 0
    %586 = vmatpush.bf16.msra.mxu0 0
    %587 = vmatpush.bf16.msra.mxu0 0
    %588 = vmatpush.bf16.msra.mxu0 0
    %589 = vmatpush.bf16.msra.mxu0 0
    %590 = vmatpush.bf16.msra.mxu0 %v157
    %591 = vmatpush.bf16.msra.mxu0 %v156
    %592 = vmatmul.bf16.gmra.mxu0 %v582
    %v593 = vpop.f32.mrf.mxu0
    %v594 = vadd.f32 %v165, %v593
    %v595 = vpop.f32.mrf.mxu0
    %v596 = vadd.f32 %v165, %v595
    %597 = vdwg.mxu0
    %v598 = vxor.u32 %v594, 2147483648
    %v599 = vxor.u32 %v596, 2147483648
    %v600 = vmul.f32 %v598, 1.442695
    %v601 = vpow.pop %v600
    %v602 = vmul.f32 %v599, 1.442695
    %v603 = vpow.pop %v602
    %v604 = vadd.f32 %v601, 1.0
    %v605 = vadd.f32 %v603, 1.0
    %v606 = vrcp.pop %v604
    %v607 = vmul.f32 %v604, %v606
    %v608 = vsub.f32 1.0, %v607
    %v609 = vmul.f32 %v606, %v608
    %v610 = vadd.f32 %v606, %v609
    %vm611 = vweird.f32 %v604
    %vm612 = vweird.f32 %v606
    %vm613 = vmor %vm611, %vm612
    %v614 = vsel %vm613, %v606, %v610
    %v615 = vand.u32 2147483647, %v604
    %vm616 = vcmp.eq.f32.partialorder %v615, 8.507059e+37
    %v617 = vand.u32 %v604, 2147483648
    %v618 = vor.u32 1.1754944e-38, %v617
    %v619 = vsel %vm616, %v618, %v614
    %v620 = vmul.f32 1.0, %v619
    %v621 = vrcp.pop %v605
    %v622 = vmul.f32 %v605, %v621
    %v623 = vsub.f32 1.0, %v622
    %v624 = vmul.f32 %v621, %v623
    %v625 = vadd.f32 %v621, %v624
    %vm626 = vweird.f32 %v605
    %vm627 = vweird.f32 %v621
    %vm628 = vmor %vm626, %vm627
    %v629 = vsel %vm628, %v621, %v625
    %v630 = vand.u32 2147483647, %v605
    %vm631 = vcmp.eq.f32.partialorder %v630, 8.507059e+37
    %v632 = vand.u32 %v605, 2147483648
    %v633 = vor.u32 1.1754944e-38, %v632
    %v634 = vsel %vm631, %v633, %v629
    %v635 = vmul.f32 1.0, %v634
    %v636 = vmul.f32 %v594, %v620
    %v637 = vmul.f32 %v596, %v635
    %v638 = vpack.c.bf16 %v637, %v636
    %639 = vmatpush.bf16.msra.mxu0 0
    %640 = vmatpush.bf16.msra.mxu0 0
    %641 = vmatpush.bf16.msra.mxu0 0
    %642 = vmatpush.bf16.msra.mxu0 0
    %643 = vmatpush.bf16.msra.mxu0 0
    %644 = vmatpush.bf16.msra.mxu0 0
    %645 = vmatpush.bf16.msra.mxu0 0
    %646 = vmatpush.bf16.msra.mxu0 %v638
    %647 = vmatmul.bf16.gmra.mxu0 %v319
    %v648 = vpop.f32.mrf.mxu0
    %v649 = vadd.f32 0.0, %v648
    %v650 = vpop.f32.mrf.mxu0
    %651 = vdwg.mxu0
    %653 = vrot.lane.b32.xlu0 %v649, 64
    %v654 = vpop.permute.xlu0 %653
    %vm656 = vcmask 779776
    %657 = vst.msk [vmem:[#allocation2] sm:$0x3] %vm656, %v654
    %658 = vmatpush.bf16.msra.mxu0 0
    %659 = vmatpush.bf16.msra.mxu0 0
    %660 = vmatpush.bf16.msra.mxu0 0
    %661 = vmatpush.bf16.msra.mxu0 0
    %662 = vmatpush.bf16.msra.mxu0 0
    %663 = vmatpush.bf16.msra.mxu0 0
    %664 = vmatpush.bf16.msra.mxu0 %v151
    %665 = vmatpush.bf16.msra.mxu0 %v150
    %666 = vmatmul.bf16.gmra.mxu0 %v582
    %v667 = vpop.f32.mrf.mxu0
    %v668 = vadd.f32 %v161, %v667
    %v669 = vpop.f32.mrf.mxu0
    %v670 = vadd.f32 %v161, %v669
    %671 = vdwg.mxu0
    %v672 = vpack.c.bf16 %v670, %v668
    %v674 = vsel %vm259, %v672, 0
    %676 = vmatpush.bf16.xpose.msra.mxu0 0
    %677 = vmatpush.bf16.xpose.msra.mxu0 0
    %678 = vmatpush.bf16.xpose.msra.mxu0 0
    %679 = vmatpush.bf16.xpose.msra.mxu0 0
    %680 = vmatpush.bf16.xpose.msra.mxu0 0
    %681 = vmatpush.bf16.xpose.msra.mxu0 0
    %682 = vmatpush.bf16.xpose.msra.mxu0 0
    %683 = vmatpush.bf16.xpose.msra.mxu0 %v582
    %684 = vmatmul.bf16.gmra.mxu0 %v674
    %v685 = vpop.f32.mrf.mxu0
    %v686 = vadd.f32 0.0, %v685
    %v687 = vpop.f32.mrf.mxu0
    %v688 = vadd.f32 0.0, %v687
    %689 = vdwg.mxu0
    %v690 = vsel %vm250, %v686, %v241
    %v691 = vsel %vm251, %v688, %v248
    %v692 = vsel %vm175, %v690, -inf
    %v693 = vsel %vm175, %v691, -inf
    %v694 = vmax.f32 %v692, %v693
    %v695 = vrot.slane %v694, 4
    %v696 = vmax.f32 %v694, %v695
    %v697 = vrot.slane %v696, 2
    %v698 = vmax.f32 %v696, %v697
    %v699 = vrot.slane %v698, 1
    %v700 = vmax.f32 %v698, %v699
    %v701 = vsub.f32 %v690, %v700
    %v702 = vsub.f32 %v691, %v700
    %v703 = vmul.f32 %v701, 1.442695
    %v704 = vpow.pop %v703
    %v705 = vmul.f32 %v702, 1.442695
    %v706 = vpow.pop %v705
    %v707 = vsel %vm175, %v704, 0.0
    %v708 = vsel %vm175, %v706, 0.0
    %v709 = vadd.f32 %v707, %v708
    %v710 = vrot.slane %v709, 4
    %v711 = vadd.f32 %v709, %v710
    %v712 = vrot.slane %v711, 2
    %v713 = vadd.f32 %v711, %v712
    %v714 = vrot.slane %v713, 1
    %v715 = vadd.f32 %v713, %v714
    %v716 = vrcp.pop %v715
    %v717 = vmul.f32 %v704, %v716
    %v718 = vmul.f32 %v706, %v716
    %v719 = vpack.c.bf16 %v718, %v717
    %v721 = vsel %vm175, %v719, 0
    %723 = vmatpush.bf16.msra.mxu0 0
    %724 = vmatpush.bf16.msra.mxu0 0
    %725 = vmatpush.bf16.msra.mxu0 0
    %726 = vmatpush.bf16.msra.mxu0 0
    %727 = vmatpush.bf16.msra.mxu0 0
    %728 = vmatpush.bf16.msra.mxu0 0
    %729 = vmatpush.bf16.msra.mxu0 0
    %730 = vmatpush.bf16.msra.mxu0 %v580
    %731 = vmatmul.bf16.gmra.mxu0 %v721
    %v732 = vpop.f32.mrf.mxu0
    %v733 = vadd.f32 0.0, %v732
    %v734 = vpop.f32.mrf.mxu0
    %v735 = vadd.f32 0.0, %v734
    %736 = vdwg.mxu0
    %v737 = vadd.f32 %v578, %v733
    %v738 = vadd.f32 %v579, %v735
    %v739 = vmul.f32 %v737, %v231
    %v740 = vmul.f32 %v738, %v232
    %v741 = vpack.c.bf16 %v740, %v739
    %v743 = vsel %vm259, %v741, 0
    %745 = vmatpush.bf16.msra.mxu0 0
    %746 = vmatpush.bf16.msra.mxu0 0
    %747 = vmatpush.bf16.msra.mxu0 0
    %748 = vmatpush.bf16.msra.mxu0 0
    %749 = vmatpush.bf16.msra.mxu0 0
    %750 = vmatpush.bf16.msra.mxu0 0
    %751 = vmatpush.bf16.msra.mxu0 %v157
    %752 = vmatpush.bf16.msra.mxu0 %v156
    %753 = vmatmul.bf16.gmra.mxu0 %v743
    %v754 = vpop.f32.mrf.mxu0
    %v755 = vadd.f32 %v165, %v754
    %v756 = vpop.f32.mrf.mxu0
    %v757 = vadd.f32 %v165, %v756
    %758 = vdwg.mxu0
    %v759 = vxor.u32 %v755, 2147483648
    %v760 = vxor.u32 %v757, 2147483648
    %v761 = vmul.f32 %v759, 1.442695
    %v762 = vpow.pop %v761
    %v763 = vmul.f32 %v760, 1.442695
    %v764 = vpow.pop %v763
    %v765 = vadd.f32 %v762, 1.0
    %v766 = vadd.f32 %v764, 1.0
    %v767 = vrcp.pop %v765
    %v768 = vmul.f32 %v765, %v767
    %v769 = vsub.f32 1.0, %v768
    %v770 = vmul.f32 %v767, %v769
    %v771 = vadd.f32 %v767, %v770
    %vm772 = vweird.f32 %v765
    %vm773 = vweird.f32 %v767
    %vm774 = vmor %vm772, %vm773
    %v775 = vsel %vm774, %v767, %v771
    %v776 = vand.u32 2147483647, %v765
    %vm777 = vcmp.eq.f32.partialorder %v776, 8.507059e+37
    %v778 = vand.u32 %v765, 2147483648
    %v779 = vor.u32 1.1754944e-38, %v778
    %v780 = vsel %vm777, %v779, %v775
    %v781 = vmul.f32 1.0, %v780
    %v782 = vrcp.pop %v766
    %v783 = vmul.f32 %v766, %v782
    %v784 = vsub.f32 1.0, %v783
    %v785 = vmul.f32 %v782, %v784
    %v786 = vadd.f32 %v782, %v785
    %vm787 = vweird.f32 %v766
    %vm788 = vweird.f32 %v782
    %vm789 = vmor %vm787, %vm788
    %v790 = vsel %vm789, %v782, %v786
    %v791 = vand.u32 2147483647, %v766
    %vm792 = vcmp.eq.f32.partialorder %v791, 8.507059e+37
    %v793 = vand.u32 %v766, 2147483648
    %v794 = vor.u32 1.1754944e-38, %v793
    %v795 = vsel %vm792, %v794, %v790
    %v796 = vmul.f32 1.0, %v795
    %v797 = vmul.f32 %v755, %v781
    %v798 = vmul.f32 %v757, %v796
    %v799 = vpack.c.bf16 %v798, %v797
    %800 = vmatpush.bf16.msra.mxu0 0
    %801 = vmatpush.bf16.msra.mxu0 0
    %802 = vmatpush.bf16.msra.mxu0 0
    %803 = vmatpush.bf16.msra.mxu0 0
    %804 = vmatpush.bf16.msra.mxu0 0
    %805 = vmatpush.bf16.msra.mxu0 0
    %806 = vmatpush.bf16.msra.mxu0 0
    %807 = vmatpush.bf16.msra.mxu0 %v799
    %808 = vmatmul.bf16.gmra.mxu0 %v319
    %v809 = vpop.f32.mrf.mxu0
    %v810 = vadd.f32 0.0, %v809
    %v811 = vpop.f32.mrf.mxu0
    %812 = vdwg.mxu0
    %814 = vrot.lane.b32.xlu0 %v810, 96
    %v815 = vpop.permute.xlu0 %814
    %vm817 = vcmask 1042176
    %818 = vst.msk [vmem:[#allocation2] sm:$0x3] %vm817, %v815
    %v819 = vld [vmem:[#allocation2] sm:$0x3]
    %v820 = vmul.f32 %v819, %v819
    %vm821 = vcmask 1041408
    %v822 = vsel %vm821, %v820, 0.0
    %823 = vadd.xlane.f32.xlu0 %v822
    %v824 = vpop.xlane.xlu0 %823
    %v825 = vmax.f32 %v824, 1e-24
    %v826 = vrsqrt.pop %v825
    %v827 = vmul.f32 %v826, %v825
    %v828 = vmul.f32 %v827, %v826
    %v829 = vmul.f32 0.5, %v828
    %v830 = vsub.f32 1.5, %v829
    %v831 = vmul.f32 %v826, %v830
    %vm832 = vweird.f32 %v825
    %vm833 = vweird.f32 %v826
    %vm834 = vmor %vm832, %vm833
    %v835 = vsel %vm834, %v826, %v831
    %v836 = vmul.f32 %v819, %v835
    %v837 = vld [vmem:[%s8] sm:$0xff]
    %v838 = vld [vmem:[%s8 + $0x8] sm:$0xff]
    %v839 = vld [vmem:[%s8 + $0x10] sm:$0xff]
    %v840 = vld [vmem:[%s8 + $0x18] sm:$0xff]
    %v841 = vld [vmem:[%s8 + $0x20] sm:$0xff]
    %v842 = vld [vmem:[%s8 + $0x28] sm:$0xff]
    %v843 = vld [vmem:[%s8 + $0x30] sm:$0xff]
    %v844 = vld [vmem:[%s8 + $0x38] sm:$0xff]
    %v845 = vld [vmem:[%s8 + $0x40] sm:$0xff]
    %v846 = vld [vmem:[%s8 + $0x48] sm:$0xff]
    %v847 = vld [vmem:[%s8 + $0x50] sm:$0xff]
    %v848 = vld [vmem:[%s8 + $0x58] sm:$0xff]
    %v849 = vld [vmem:[%s8 + $0x60] sm:$0xff]
    %v850 = vld [vmem:[%s8 + $0x68] sm:$0xff]
    %v851 = vld [vmem:[%s8 + $0x70] sm:$0xff]
    %v852 = vld [vmem:[%s8 + $0x78] sm:$0xff]
    %v853 = vpack.c.bf16 %v838, %v837
    %v854 = vpack.c.bf16 %v840, %v839
    %v855 = vpack.c.bf16 %v842, %v841
    %v856 = vpack.c.bf16 %v844, %v843
    %v857 = vpack.c.bf16 %v846, %v845
    %v858 = vpack.c.bf16 %v848, %v847
    %v859 = vpack.c.bf16 %v850, %v849
    %v860 = vpack.c.bf16 %v852, %v851
    %v861 = vld [vmem:[%s9] sm:$0x1]
    %v862 = vpack.c.bf16 %v836, %v836
    %v864 = vperm.slane %v861, 0
    %866 = vmatpush.bf16.msra.mxu0 %v860
    %867 = vmatpush.bf16.msra.mxu0 %v859
    %868 = vmatpush.bf16.msra.mxu0 %v858
    %869 = vmatpush.bf16.msra.mxu0 %v857
    %870 = vmatpush.bf16.msra.mxu0 %v856
    %871 = vmatpush.bf16.msra.mxu0 %v855
    %872 = vmatpush.bf16.msra.mxu0 %v854
    %873 = vmatpush.bf16.msra.mxu0 %v853
    %874 = vmatmul.bf16.gmra.mxu0 %v862
    %v875 = vpop.f32.mrf.mxu0
    %v876 = vadd.f32 %v864, %v875
    %v877 = vpop.f32.mrf.mxu0
    %878 = vdwg.mxu0
    %v879 = vxor.u32 %v876, 2147483648
    %v880 = vmul.f32 %v879, 1.442695
    %v881 = vpow.pop %v880
    %v882 = vadd.f32 %v881, 1.0
    %v883 = vrcp.pop %v882
    %v884 = vmul.f32 %v882, %v883
    %v885 = vsub.f32 1.0, %v884
    %v886 = vmul.f32 %v883, %v885
    %v887 = vadd.f32 %v883, %v886
    %vm888 = vweird.f32 %v882
    %vm889 = vweird.f32 %v883
    %vm890 = vmor %vm888, %vm889
    %v891 = vsel %vm890, %v883, %v887
    %v892 = vand.u32 2147483647, %v882
    %vm893 = vcmp.eq.f32.partialorder %v892, 8.507059e+37
    %v894 = vand.u32 %v882, 2147483648
    %v895 = vor.u32 1.1754944e-38, %v894
    %v896 = vsel %vm893, %v895, %v891
    %v897 = vmul.f32 1.0, %v896
    %v898 = vmul.f32 %v876, %v897
    %v899 = vld [vmem:[#allocation12] sm:$0xff]
    %v900 = vld [vmem:[#allocation12 + $0x8] sm:$0xff]
    %v901 = vld [vmem:[#allocation12 + $0x10] sm:$0xff]
    %v902 = vld [vmem:[#allocation12 + $0x18] sm:$0xff]
    %v903 = vld [vmem:[#allocation12 + $0x20] sm:$0xff]
    %v904 = vld [vmem:[#allocation12 + $0x28] sm:$0xff]
    %v905 = vld [vmem:[#allocation12 + $0x30] sm:$0xff]
    %v906 = vld [vmem:[#allocation12 + $0x38] sm:$0xff]
    %v907 = vld [vmem:[#allocation12 + $0x40] sm:$0xff]
    %v908 = vld [vmem:[#allocation12 + $0x48] sm:$0xff]
    %v909 = vld [vmem:[#allocation12 + $0x50] sm:$0xff]
    %v910 = vld [vmem:[#allocation12 + $0x58] sm:$0xff]
    %v911 = vld [vmem:[#allocation12 + $0x60] sm:$0xff]
    %v912 = vld [vmem:[#allocation12 + $0x68] sm:$0xff]
    %v913 = vld [vmem:[#allocation12 + $0x70] sm:$0xff]
    %v914 = vld [vmem:[#allocation12 + $0x78] sm:$0xff]
    %v915 = vpack.c.bf16 %v900, %v899
    %v916 = vpack.c.bf16 %v902, %v901
    %v917 = vpack.c.bf16 %v904, %v903
    %v918 = vpack.c.bf16 %v906, %v905
    %v919 = vpack.c.bf16 %v908, %v907
    %v920 = vpack.c.bf16 %v910, %v909
    %v921 = vpack.c.bf16 %v912, %v911
    %v922 = vpack.c.bf16 %v914, %v913
    %v923 = vld [vmem:[%s11] sm:$0x1]
    %v924 = vpack.c.bf16 %v898, %v898
    %v926 = vperm.slane %v923, 0
    %928 = vmatpush.bf16.msra.mxu0 %v922
    %929 = vmatpush.bf16.msra.mxu0 %v921
    %930 = vmatpush.bf16.msra.mxu0 %v920
    %931 = vmatpush.bf16.msra.mxu0 %v919
    %932 = vmatpush.bf16.msra.mxu0 %v918
    %933 = vmatpush.bf16.msra.mxu0 %v917
    %934 = vmatpush.bf16.msra.mxu0 %v916
    %935 = vmatpush.bf16.msra.mxu0 %v915
    %936 = vmatmul.bf16.gmra.mxu0 %v924
    %v937 = vpop.f32.mrf.mxu0
    %v938 = vadd.f32 %v926, %v937
    %v939 = vpop.f32.mrf.mxu0
    %940 = vdwg.mxu0
    %v941 = vxor.u32 %v938, 2147483648
    %v942 = vmul.f32 %v941, 1.442695
    %v943 = vpow.pop %v942
    %v944 = vadd.f32 %v943, 1.0
    %v945 = vrcp.pop %v944
    %v946 = vmul.f32 %v944, %v945
    %v947 = vsub.f32 1.0, %v946
    %v948 = vmul.f32 %v945, %v947
    %v949 = vadd.f32 %v945, %v948
    %vm950 = vweird.f32 %v944
    %vm951 = vweird.f32 %v945
    %vm952 = vmor %vm950, %vm951
    %v953 = vsel %vm952, %v945, %v949
    %v954 = vand.u32 2147483647, %v944
    %vm955 = vcmp.eq.f32.partialorder %v954, 8.507059e+37
    %v956 = vand.u32 %v944, 2147483648
    %v957 = vor.u32 1.1754944e-38, %v956
    %v958 = vsel %vm955, %v957, %v953
    %v959 = vmul.f32 1.0, %v958
    %v960 = vmul.f32 %v938, %v959
    %v961 = vld [vmem:[%s12] sm:$0xff]
    %v962 = vld [vmem:[%s12 + $0x8] sm:$0xff]
    %v963 = vld [vmem:[%s12 + $0x10] sm:$0xff]
    %v964 = vld [vmem:[%s12 + $0x18] sm:$0xff]
    %v965 = vld [vmem:[%s12 + $0x20] sm:$0xff]
    %v966 = vld [vmem:[%s12 + $0x28] sm:$0xff]
    %v967 = vld [vmem:[%s12 + $0x30] sm:$0xff]
    %v968 = vld [vmem:[%s12 + $0x38] sm:$0xff]
    %v969 = vld [vmem:[%s12 + $0x40] sm:$0xff]
    %v970 = vld [vmem:[%s12 + $0x48] sm:$0xff]
    %v971 = vld [vmem:[%s12 + $0x50] sm:$0xff]
    %v972 = vld [vmem:[%s12 + $0x58] sm:$0xff]
    %v973 = vld [vmem:[%s12 + $0x60] sm:$0xff]
    %v974 = vld [vmem:[%s12 + $0x68] sm:$0xff]
    %v975 = vld [vmem:[%s12 + $0x70] sm:$0xff]
    %v976 = vld [vmem:[%s12 + $0x78] sm:$0xff]
    %v977 = vpack.c.bf16 %v962, %v961
    %v978 = vpack.c.bf16 %v964, %v963
    %v979 = vpack.c.bf16 %v966, %v965
    %v980 = vpack.c.bf16 %v968, %v967
    %v981 = vpack.c.bf16 %v970, %v969
    %v982 = vpack.c.bf16 %v972, %v971
    %v983 = vpack.c.bf16 %v974, %v973
    %v984 = vpack.c.bf16 %v976, %v975
    %v985 = vld [vmem:[%s13] sm:$0x1]
    %v986 = vpack.c.bf16 %v960, %v960
    %v988 = vperm.slane %v985, 0
    %990 = vmatpush.bf16.msra.mxu0 %v984
    %991 = vmatpush.bf16.msra.mxu0 %v983
    %992 = vmatpush.bf16.msra.mxu0 %v982
    %993 = vmatpush.bf16.msra.mxu0 %v981
    %994 = vmatpush.bf16.msra.mxu0 %v980
    %995 = vmatpush.bf16.msra.mxu0 %v979
    %996 = vmatpush.bf16.msra.mxu0 %v978
    %997 = vmatpush.bf16.msra.mxu0 %v977
    %998 = vmatmul.bf16.gmra.mxu0 %v986
    %v999 = vpop.f32.mrf.mxu0
    %v1000 = vadd.f32 %v988, %v999
    %v1001 = vpop.f32.mrf.mxu0
    %1002 = vdwg.mxu0
    %v1004 = vrot.slane %v1000, 1
    %vm1006 = vcmask 57344
    %1007 = vst.msk [vmem:[#allocation14] sm:$0x1] %vm1006, %v1000
    %1008 = vst.msk [vmem:[#allocation14 + $0x1] sm:$0x1] %vm1006, %v1004
    // Predicated region
    $region82: #{tpu_custom_call.1} parent=1 // pred_check
      _
    $region83: #{tpu_custom_call.1} parent=1 // pred_check_branch
      %1010 = sbr.rel (0) target = $region85
    $region84: #{tpu_custom_call.1} parent=1 // pred_region
      %1012 = vsyncadd [#allocation5], 0
      %s1013 = sshll.u32 [#allocation14], 4
      %s1014 = int_to_ptr.vmem [resolvable:$true] %s1013
      %s1015 = sshll.u32 %s14, 4
      %s1016 = int_to_ptr.hbm [resolvable:$true] %s1015
      %1021 = dma.vmem_to_hbm [thread:$0]  %s1014, 32, %s1016, [#allocation5], 16, 16, 1
    $region85: #{tpu_custom_call.1} parent=1 // pred_fallthru
      _
    // Predicated region
    $region86: #{tpu_custom_call.1} parent=1 // pred_check
      _
    $region87: #{tpu_custom_call.1} parent=1 // pred_check_branch
      %1023 = sbr.rel (0) target = $region89
    $region88: #{tpu_custom_call.1} parent=1 // pred_region
      %1025 = dma.done [#allocation5], 32
    $region89: #{tpu_custom_call.1} parent=1 // pred_fallthru
      _
    %1026 = vsyncpa [#allocation4], 1
    %1027 = vsyncpa [#allocation7], 1
    %1028 = vsyncpa [#allocation10], 1
    %1029 = vsyncpa [#allocation13], 1
    %1030 = vsyncpa [#allocation5], 1

</llo_original>
